<compile_context>
chip_gen: v5e
topology: v5e:2x2
jax: 0.10.0
libtpu: 0.0.40
codegen_flags: <defaults>
</compile_context>

<pallas_src>
import jax
import jax.numpy as jnp
from jax import lax
from jax.experimental import pallas as pl
from jax.experimental.pallas import tpu as pltpu

D_MODEL = 32
NHEAD = 4
HEAD_DIM = D_MODEL // NHEAD
DFF = 64
NUM_LAYERS = 3
EPS = 1e-5

# Column layout of the packed weight slab (D_MODEL rows x 384 cols).
_C_QKV_SA = 0          # (32, 96)  [Wq*scale | Wk | Wv]   self-attention
_C_WO_SA = 96          # (32, 32)  Wo                      self-attention
_C_WQ_CA = 128         # (32, 32)  Wq*scale                cross-attention
_C_WKV_CA = 160        # (32, 64)  [Wk | Wv]               cross-attention
_C_WO_CA = 224         # (32, 32)  Wo                      cross-attention
_C_W1 = 256            # (32, 64)  FFN first linear
_C_W2T = 320           # (32, 64)  FFN second linear, stored transposed
_W_COLS = 384


# ----------------------------- kernel helpers ----------------------------- #
def _layer_norm(x, gamma, beta):
    mu = jnp.mean(x, axis=-1, keepdims=True)
    var = jnp.mean(jnp.square(x - mu), axis=-1, keepdims=True)
    return (x - mu) * lax.rsqrt(var + EPS) * gamma + beta


def _softmax(s):
    s = s - jnp.max(s, axis=-1, keepdims=True)
    p = jnp.exp(s)
    return p * pl.reciprocal(jnp.sum(p, axis=-1, keepdims=True), approx=True)


def _attend(q, k, v, wo, bo):
    """Per-head attention on already-projected q (Lq, D), k/v (Lk, D).

    Head h owns columns h*Hd:(h+1)*Hd.  1/sqrt(Hd) is already folded into the
    Q projection.  Head outputs are merged by accumulating per-head
    output-projection contributions (no concat / reshape)."""
    acc = None
    for h in range(NHEAD):
        lo, hi = h * HEAD_DIM, (h + 1) * HEAD_DIM
        s = lax.dot_general(q[:, lo:hi], k[:, lo:hi],
                            (((1,), (1,)), ((), ())),
                            preferred_element_type=jnp.float32)      # (Lq, Lk)
        o_h = jnp.dot(_softmax(s), v[:, lo:hi],
                      preferred_element_type=jnp.float32)            # (Lq, Hd)
        c = jnp.dot(o_h, wo[lo:hi, :],
                    preferred_element_type=jnp.float32)              # (Lq, D)
        acc = c if acc is None else acc + c
    return acc + bo


# ------------------------------ Pallas kernel ------------------------------ #
def make_fused_decoder_kernel(num_layers):
    def kernel(tgt_ref, mem_ref, w_ref, b_ref, out_ref):
        x = tgt_ref[0]                     # (Q, D) running decoder state
        mem = mem_ref[0]                   # (M, D) encoder memory

        W = w_ref[...]                     # (32, 384) packed weights
        Bs = b_ref[...]                    # (13, 96)  packed biases / LN

        wqkv_sa = W[:, _C_QKV_SA:_C_QKV_SA + 3 * D_MODEL]
        wo_sa = W[:, _C_WO_SA:_C_WO_SA + D_MODEL]
        wq_ca = W[:, _C_WQ_CA:_C_WQ_CA + D_MODEL]
        wkv_ca = W[:, _C_WKV_CA:_C_WKV_CA + 2 * D_MODEL]
        wo_ca = W[:, _C_WO_CA:_C_WO_CA + D_MODEL]
        w1 = W[:, _C_W1:_C_W1 + DFF]
        w2t = W[:, _C_W2T:_C_W2T + DFF]

        b_qkv_sa = Bs[0:1, :]                       # (1, 96)
        bo_sa = Bs[1:2, :D_MODEL]
        bq_ca = Bs[2:3, :D_MODEL]
        bkv_ca = Bs[3:4, :2 * D_MODEL]
        bo_ca = Bs[4:5, :D_MODEL]
        b1 = Bs[5:6, :DFF]
        b2 = Bs[6:7, :D_MODEL]
        ln = [(Bs[7 + 2 * i:8 + 2 * i, :D_MODEL],    # gamma_i
               Bs[8 + 2 * i:9 + 2 * i, :D_MODEL])    # beta_i
              for i in range(3)]

        # Cross-attn K|V of the encoder memory: the layers share weights and
        # memory is constant, so project it ONCE, above the layer loop.
        kv_mem = jnp.dot(mem, wkv_ca,
                         preferred_element_type=jnp.float32) + bkv_ca  # (M, 2D)
        k_mem = kv_mem[:, :D_MODEL]
        v_mem = kv_mem[:, D_MODEL:]

        for layer in range(num_layers):
            # 1) self-attention (fused QKV projection) + residual + LayerNorm
            qkv = jnp.dot(x, wqkv_sa,
                          preferred_element_type=jnp.float32) + b_qkv_sa
            sa = _attend(qkv[:, :D_MODEL],
                         qkv[:, D_MODEL:2 * D_MODEL],
                         qkv[:, 2 * D_MODEL:],
                         wo_sa, bo_sa)
            x = _layer_norm(x + sa, ln[0][0], ln[0][1])

            # 2) cross-attention over encoder memory + residual + LayerNorm
            q_ca = jnp.dot(x, wq_ca,
                           preferred_element_type=jnp.float32) + bq_ca
            ca = _attend(q_ca, k_mem, v_mem, wo_ca, bo_ca)
            x = _layer_norm(x + ca, ln[1][0], ln[1][1])

            # 3) FFN + residual + LayerNorm (W2 stored transposed -> trans_b)
            h = jnp.maximum(
                jnp.dot(x, w1, preferred_element_type=jnp.float32) + b1, 0.0)
            ff = lax.dot_general(h, w2t, (((1,), (1,)), ((), ())),
                                 preferred_element_type=jnp.float32) + b2
            x = _layer_norm(x + ff, ln[2][0], ln[2][1])

            # Emit this layer's intermediate; x stays in registers for layer+1.
            out_ref[0, layer] = x

    return kernel


# ------------------------------ wrapper ------------------------------------ #
def deformable_transformer_decoder(tgt, memory, params, num_layers=NUM_LAYERS):
    """Mirrors DeformableTransformerDecoder.forward (shared-weight layers).

    Returns (final_output, list_of_intermediates)."""
    B, Q, D = tgt.shape
    _, M, _ = memory.shape
    w_slab, bias_slab = params

    inter = pl.pallas_call(
        make_fused_decoder_kernel(num_layers),
        out_shape=jax.ShapeDtypeStruct((B, num_layers, Q, D), jnp.float32),
        grid=(B,),
        in_specs=[
            pl.BlockSpec((1, Q, D), lambda b: (b, 0, 0)),      # tgt (per batch)
            pl.BlockSpec((1, M, D), lambda b: (b, 0, 0)),      # memory
            pl.BlockSpec(w_slab.shape, lambda b: (0, 0)),      # packed weights
            pl.BlockSpec(bias_slab.shape, lambda b: (0, 0)),   # packed biases/LN
        ],
        out_specs=pl.BlockSpec((1, num_layers, Q, D),
                               lambda b: (b, 0, 0, 0)),
        compiler_params=pltpu.CompilerParams(
            # One batch element per TensorCore on v7x; harmless on v5e/v6e.
            dimension_semantics=("parallel",)),
    )(tgt, memory, w_slab, bias_slab)

    output = inter[:, -1]
    intermediate = [inter[:, l] for l in range(num_layers)]
    return output, intermediate


# ------------------------------ param init -------------------------------- #
def _xavier(key, shape):
    fan_in, fan_out = shape[-2], shape[-1]
    limit = (6.0 / (fan_in + fan_out)) ** 0.5
    return jax.random.uniform(key, shape, jnp.float32, -limit, limit)


def _pad_row(v, width=96):
    return jnp.pad(v, (0, width - v.shape[0]))


def init_params(key):
    ks = jax.random.split(key, 10)
    scale = 1.0 / (HEAD_DIM ** 0.5)

    wq_sa = _xavier(ks[0], (D_MODEL, D_MODEL)) * scale   # 1/sqrt(Hd) folded in
    wk_sa = _xavier(ks[1], (D_MODEL, D_MODEL))
    wv_sa = _xavier(ks[2], (D_MODEL, D_MODEL))
    wo_sa = _xavier(ks[3], (D_MODEL, D_MODEL))
    wq_ca = _xavier(ks[4], (D_MODEL, D_MODEL)) * scale
    wk_ca = _xavier(ks[5], (D_MODEL, D_MODEL))
    wv_ca = _xavier(ks[6], (D_MODEL, D_MODEL))
    wo_ca = _xavier(ks[7], (D_MODEL, D_MODEL))
    w1 = _xavier(ks[8], (D_MODEL, DFF))
    w2 = _xavier(ks[9], (DFF, D_MODEL))

    w_slab = jnp.concatenate(
        [wq_sa, wk_sa, wv_sa,          # cols   0: 96  self-attn fused QKV
         wo_sa,                        # cols  96:128
         wq_ca,                        # cols 128:160
         wk_ca, wv_ca,                 # cols 160:224  cross-attn fused KV
         wo_ca,                        # cols 224:256
         w1,                           # cols 256:320
         w2.T],                        # cols 320:384  (stored transposed)
        axis=1)                        # -> (32, 384)
    assert w_slab.shape == (D_MODEL, _W_COLS)

    # All biases zero (scale folding into Wq is exact because bq == 0; a
    # non-zero checkpoint bq would have to be pre-scaled the same way).
    zeros32 = jnp.zeros((D_MODEL,), jnp.float32)
    ones32 = jnp.ones((D_MODEL,), jnp.float32)
    bias_rows = [
        jnp.zeros((96,), jnp.float32),               # b_qkv_sa
        _pad_row(zeros32),                            # bo_sa
        _pad_row(zeros32),                            # bq_ca
        _pad_row(jnp.zeros((2 * D_MODEL,), jnp.float32)),  # bkv_ca
        _pad_row(zeros32),                            # bo_ca
        _pad_row(jnp.zeros((DFF,), jnp.float32)),     # b1
        _pad_row(zeros32),                            # b2
        _pad_row(ones32), _pad_row(zeros32),          # LN0 gamma, beta
        _pad_row(ones32), _pad_row(zeros32),          # LN1 gamma, beta
        _pad_row(ones32), _pad_row(zeros32),          # LN2 gamma, beta
    ]
    bias_slab = jnp.stack(bias_rows)                  # (13, 96)
    return w_slab, bias_slab


# --------------------------------- main ------------------------------------ #
if __name__ == "__main__":
    key = jax.random.PRNGKey(0)
    k_tgt, k_mem, k_par = jax.random.split(key, 3)

    B, Q = 2, 8            # batch, num_queries
    Hs = Ws = 8            # encoder feature map -> memory length M = 64
    M = Hs * Ws

    tgt = jax.random.normal(k_tgt, (B, Q, D_MODEL), jnp.float32)
    memory = jax.random.normal(k_mem, (B, M, D_MODEL), jnp.float32)
    params = init_params(k_par)

    output, intermediate = deformable_transformer_decoder(
        tgt, memory, params, num_layers=NUM_LAYERS)

    jax.block_until_ready(output)
    for inter in intermediate:
        jax.block_until_ready(inter)

    assert output.shape == (B, Q, D_MODEL)
    assert len(intermediate) == NUM_LAYERS
    assert all(x.shape == (B, Q, D_MODEL) for x in intermediate)
    assert jnp.all(jnp.isfinite(output))
    print("KERNEL_OK")
</pallas_src>

<mosaic_0001>
module attributes {stable_mosaic.version = 11 : i64} {
  func.func @kernel(%arg0: i32, %arg1: memref<1x8x32xf32, #tpu.memory_space<vmem>>, %arg2: memref<1x64x32xf32, #tpu.memory_space<vmem>>, %arg3: memref<32x384xf32, #tpu.memory_space<vmem>>, %arg4: memref<13x96xf32, #tpu.memory_space<vmem>>, %arg5: memref<1x3x8x32xf32, #tpu.memory_space<vmem>>) attributes {dimension_semantics = [#tpu.dimension_semantics<parallel>], iteration_bounds = array<i64: 2>, scalar_prefetch = 0 : i64, scratch_operands = 0 : i64, tpu.core_type = #tpu.core_type<tc>, window_params = [{transform_indices = @transform_0, window_bounds = array<i64: 1, 8, 32>}, {transform_indices = @transform_1, window_bounds = array<i64: 1, 64, 32>}, {pipeline_mode = #tpu.pipeline_mode<synchronous>, transform_indices = @transform_2, window_bounds = array<i64: 32, 384>}, {pipeline_mode = #tpu.pipeline_mode<synchronous>, transform_indices = @transform_3, window_bounds = array<i64: 13, 96>}, {transform_indices = @transform_4, window_bounds = array<i64: 1, 3, 8, 32>}]} {
    %c0 = arith.constant 0 : index
    %c0_0 = arith.constant 0 : index
    %c0_1 = arith.constant 0 : index
    %0 = vector.load %arg1[%c0, %c0_0, %c0_1] : memref<1x8x32xf32, #tpu.memory_space<vmem>>, vector<1x8x32xf32>
    %1 = vector.shape_cast %0 : vector<1x8x32xf32> to vector<8x32xf32>
    %c0_2 = arith.constant 0 : index
    %c0_3 = arith.constant 0 : index
    %c0_4 = arith.constant 0 : index
    %2 = vector.load %arg2[%c0_2, %c0_3, %c0_4] : memref<1x64x32xf32, #tpu.memory_space<vmem>>, vector<1x64x32xf32>
    %3 = vector.shape_cast %2 : vector<1x64x32xf32> to vector<64x32xf32>
    %c0_5 = arith.constant 0 : index
    %c0_6 = arith.constant 0 : index
    %4 = vector.load %arg3[%c0_5, %c0_6] : memref<32x384xf32, #tpu.memory_space<vmem>>, vector<32x384xf32>
    %c0_7 = arith.constant 0 : index
    %c0_8 = arith.constant 0 : index
    %5 = vector.load %arg4[%c0_7, %c0_8] : memref<13x96xf32, #tpu.memory_space<vmem>>, vector<13x96xf32>
    %6 = vector.extract_strided_slice %4 {offsets = [0, 0], sizes = [32, 96], strides = [1, 1]} : vector<32x384xf32> to vector<32x96xf32>
    %7 = vector.extract_strided_slice %4 {offsets = [0, 96], sizes = [32, 32], strides = [1, 1]} : vector<32x384xf32> to vector<32x32xf32>
    %8 = vector.extract_strided_slice %4 {offsets = [0, 128], sizes = [32, 32], strides = [1, 1]} : vector<32x384xf32> to vector<32x32xf32>
    %9 = vector.extract_strided_slice %4 {offsets = [0, 160], sizes = [32, 64], strides = [1, 1]} : vector<32x384xf32> to vector<32x64xf32>
    %10 = vector.extract_strided_slice %4 {offsets = [0, 224], sizes = [32, 32], strides = [1, 1]} : vector<32x384xf32> to vector<32x32xf32>
    %11 = vector.extract_strided_slice %4 {offsets = [0, 256], sizes = [32, 64], strides = [1, 1]} : vector<32x384xf32> to vector<32x64xf32>
    %12 = vector.extract_strided_slice %4 {offsets = [0, 320], sizes = [32, 64], strides = [1, 1]} : vector<32x384xf32> to vector<32x64xf32>
    %13 = vector.extract_strided_slice %5 {offsets = [0, 0], sizes = [1, 96], strides = [1, 1]} : vector<13x96xf32> to vector<1x96xf32>
    %14 = vector.extract_strided_slice %5 {offsets = [1, 0], sizes = [1, 32], strides = [1, 1]} : vector<13x96xf32> to vector<1x32xf32>
    %15 = vector.extract_strided_slice %5 {offsets = [2, 0], sizes = [1, 32], strides = [1, 1]} : vector<13x96xf32> to vector<1x32xf32>
    %16 = vector.extract_strided_slice %5 {offsets = [3, 0], sizes = [1, 64], strides = [1, 1]} : vector<13x96xf32> to vector<1x64xf32>
    %17 = vector.extract_strided_slice %5 {offsets = [4, 0], sizes = [1, 32], strides = [1, 1]} : vector<13x96xf32> to vector<1x32xf32>
    %18 = vector.extract_strided_slice %5 {offsets = [5, 0], sizes = [1, 64], strides = [1, 1]} : vector<13x96xf32> to vector<1x64xf32>
    %19 = vector.extract_strided_slice %5 {offsets = [6, 0], sizes = [1, 32], strides = [1, 1]} : vector<13x96xf32> to vector<1x32xf32>
    %20 = vector.extract_strided_slice %5 {offsets = [7, 0], sizes = [1, 32], strides = [1, 1]} : vector<13x96xf32> to vector<1x32xf32>
    %21 = vector.extract_strided_slice %5 {offsets = [8, 0], sizes = [1, 32], strides = [1, 1]} : vector<13x96xf32> to vector<1x32xf32>
    %22 = vector.extract_strided_slice %5 {offsets = [9, 0], sizes = [1, 32], strides = [1, 1]} : vector<13x96xf32> to vector<1x32xf32>
    %23 = vector.extract_strided_slice %5 {offsets = [10, 0], sizes = [1, 32], strides = [1, 1]} : vector<13x96xf32> to vector<1x32xf32>
    %24 = vector.extract_strided_slice %5 {offsets = [11, 0], sizes = [1, 32], strides = [1, 1]} : vector<13x96xf32> to vector<1x32xf32>
    %25 = vector.extract_strided_slice %5 {offsets = [12, 0], sizes = [1, 32], strides = [1, 1]} : vector<13x96xf32> to vector<1x32xf32>
    %cst = arith.constant dense<0.000000e+00> : vector<64x64xf32>
    %26 = tpu.matmul %3, %9, %cst {dimension_numbers = #tpu.dot_dimension_numbers<[1], [0], [0], [1], [0, 0, 1, 1], [], []>} : vector<64x32xf32>, vector<32x64xf32>, vector<64x64xf32> -> vector<64x64xf32>
    %27 = vector.broadcast %16 : vector<1x64xf32> to vector<64x64xf32>
    %28 = arith.addf %26, %27 : vector<64x64xf32>
    %29 = vector.extract_strided_slice %28 {offsets = [0, 0], sizes = [64, 32], strides = [1, 1]} : vector<64x64xf32> to vector<64x32xf32>
    %30 = vector.extract_strided_slice %28 {offsets = [0, 32], sizes = [64, 32], strides = [1, 1]} : vector<64x64xf32> to vector<64x32xf32>
    %cst_9 = arith.constant dense<0.000000e+00> : vector<8x96xf32>
    %31 = tpu.matmul %1, %6, %cst_9 {dimension_numbers = #tpu.dot_dimension_numbers<[1], [0], [0], [1], [0, 0, 1, 1], [], []>} : vector<8x32xf32>, vector<32x96xf32>, vector<8x96xf32> -> vector<8x96xf32>
    %32 = vector.broadcast %13 : vector<1x96xf32> to vector<8x96xf32>
    %33 = arith.addf %31, %32 : vector<8x96xf32>
    %34 = vector.extract_strided_slice %33 {offsets = [0, 0], sizes = [8, 32], strides = [1, 1]} : vector<8x96xf32> to vector<8x32xf32>
    %35 = vector.extract_strided_slice %33 {offsets = [0, 32], sizes = [8, 32], strides = [1, 1]} : vector<8x96xf32> to vector<8x32xf32>
    %36 = vector.extract_strided_slice %33 {offsets = [0, 64], sizes = [8, 32], strides = [1, 1]} : vector<8x96xf32> to vector<8x32xf32>
    %37 = vector.extract_strided_slice %34 {offsets = [0, 0], sizes = [8, 8], strides = [1, 1]} : vector<8x32xf32> to vector<8x8xf32>
    %38 = vector.extract_strided_slice %35 {offsets = [0, 0], sizes = [8, 8], strides = [1, 1]} : vector<8x32xf32> to vector<8x8xf32>
    %cst_10 = arith.constant dense<0.000000e+00> : vector<8x8xf32>
    %39 = tpu.matmul %37, %38, %cst_10 {dimension_numbers = #tpu.dot_dimension_numbers<[1], [1], [0], [0], [0, 0, 1, 0], [], []>} : vector<8x8xf32>, vector<8x8xf32>, vector<8x8xf32> -> vector<8x8xf32>
    %cst_11 = arith.constant dense<0xFF800000> : vector<8xf32>
    %40 = vector.multi_reduction <maximumf>, %39, %cst_11 [1] : vector<8x8xf32> to vector<8xf32>
    %41 = vector.shape_cast %40 : vector<8xf32> to vector<8x1xf32>
    %42 = vector.broadcast %41 : vector<8x1xf32> to vector<8x8xf32>
    %43 = arith.subf %39, %42 : vector<8x8xf32>
    %44 = math.exp %43 : vector<8x8xf32>
    %cst_12 = arith.constant dense<0.000000e+00> : vector<8xf32>
    %45 = vector.multi_reduction <add>, %44, %cst_12 [1] : vector<8x8xf32> to vector<8xf32>
    %46 = vector.shape_cast %45 : vector<8xf32> to vector<8x1xf32>
    %47 = tpu.reciprocal %46 {approx = true} : vector<8x1xf32> -> vector<8x1xf32>
    %48 = vector.broadcast %47 : vector<8x1xf32> to vector<8x8xf32>
    %49 = arith.mulf %44, %48 : vector<8x8xf32>
    %50 = vector.extract_strided_slice %36 {offsets = [0, 0], sizes = [8, 8], strides = [1, 1]} : vector<8x32xf32> to vector<8x8xf32>
    %cst_13 = arith.constant dense<0.000000e+00> : vector<8x8xf32>
    %51 = tpu.matmul %49, %50, %cst_13 {dimension_numbers = #tpu.dot_dimension_numbers<[1], [0], [0], [1], [0, 0, 1, 1], [], []>} : vector<8x8xf32>, vector<8x8xf32>, vector<8x8xf32> -> vector<8x8xf32>
    %52 = vector.extract_strided_slice %7 {offsets = [0, 0], sizes = [8, 32], strides = [1, 1]} : vector<32x32xf32> to vector<8x32xf32>
    %cst_14 = arith.constant dense<0.000000e+00> : vector<8x32xf32>
    %53 = tpu.matmul %51, %52, %cst_14 {dimension_numbers = #tpu.dot_dimension_numbers<[1], [0], [0], [1], [0, 0, 1, 1], [], []>} : vector<8x8xf32>, vector<8x32xf32>, vector<8x32xf32> -> vector<8x32xf32>
    %54 = vector.extract_strided_slice %34 {offsets = [0, 8], sizes = [8, 8], strides = [1, 1]} : vector<8x32xf32> to vector<8x8xf32>
    %55 = vector.extract_strided_slice %35 {offsets = [0, 8], sizes = [8, 8], strides = [1, 1]} : vector<8x32xf32> to vector<8x8xf32>
    %cst_15 = arith.constant dense<0.000000e+00> : vector<8x8xf32>
    %56 = tpu.matmul %54, %55, %cst_15 {dimension_numbers = #tpu.dot_dimension_numbers<[1], [1], [0], [0], [0, 0, 1, 0], [], []>} : vector<8x8xf32>, vector<8x8xf32>, vector<8x8xf32> -> vector<8x8xf32>
    %cst_16 = arith.constant dense<0xFF800000> : vector<8xf32>
    %57 = vector.multi_reduction <maximumf>, %56, %cst_16 [1] : vector<8x8xf32> to vector<8xf32>
    %58 = vector.shape_cast %57 : vector<8xf32> to vector<8x1xf32>
    %59 = vector.broadcast %58 : vector<8x1xf32> to vector<8x8xf32>
    %60 = arith.subf %56, %59 : vector<8x8xf32>
    %61 = math.exp %60 : vector<8x8xf32>
    %cst_17 = arith.constant dense<0.000000e+00> : vector<8xf32>
    %62 = vector.multi_reduction <add>, %61, %cst_17 [1] : vector<8x8xf32> to vector<8xf32>
    %63 = vector.shape_cast %62 : vector<8xf32> to vector<8x1xf32>
    %64 = tpu.reciprocal %63 {approx = true} : vector<8x1xf32> -> vector<8x1xf32>
    %65 = vector.broadcast %64 : vector<8x1xf32> to vector<8x8xf32>
    %66 = arith.mulf %61, %65 : vector<8x8xf32>
    %67 = vector.extract_strided_slice %36 {offsets = [0, 8], sizes = [8, 8], strides = [1, 1]} : vector<8x32xf32> to vector<8x8xf32>
    %cst_18 = arith.constant dense<0.000000e+00> : vector<8x8xf32>
    %68 = tpu.matmul %66, %67, %cst_18 {dimension_numbers = #tpu.dot_dimension_numbers<[1], [0], [0], [1], [0, 0, 1, 1], [], []>} : vector<8x8xf32>, vector<8x8xf32>, vector<8x8xf32> -> vector<8x8xf32>
    %69 = vector.extract_strided_slice %7 {offsets = [8, 0], sizes = [8, 32], strides = [1, 1]} : vector<32x32xf32> to vector<8x32xf32>
    %cst_19 = arith.constant dense<0.000000e+00> : vector<8x32xf32>
    %70 = tpu.matmul %68, %69, %cst_19 {dimension_numbers = #tpu.dot_dimension_numbers<[1], [0], [0], [1], [0, 0, 1, 1], [], []>} : vector<8x8xf32>, vector<8x32xf32>, vector<8x32xf32> -> vector<8x32xf32>
    %71 = arith.addf %53, %70 : vector<8x32xf32>
    %72 = vector.extract_strided_slice %34 {offsets = [0, 16], sizes = [8, 8], strides = [1, 1]} : vector<8x32xf32> to vector<8x8xf32>
    %73 = vector.extract_strided_slice %35 {offsets = [0, 16], sizes = [8, 8], strides = [1, 1]} : vector<8x32xf32> to vector<8x8xf32>
    %cst_20 = arith.constant dense<0.000000e+00> : vector<8x8xf32>
    %74 = tpu.matmul %72, %73, %cst_20 {dimension_numbers = #tpu.dot_dimension_numbers<[1], [1], [0], [0], [0, 0, 1, 0], [], []>} : vector<8x8xf32>, vector<8x8xf32>, vector<8x8xf32> -> vector<8x8xf32>
    %cst_21 = arith.constant dense<0xFF800000> : vector<8xf32>
    %75 = vector.multi_reduction <maximumf>, %74, %cst_21 [1] : vector<8x8xf32> to vector<8xf32>
    %76 = vector.shape_cast %75 : vector<8xf32> to vector<8x1xf32>
    %77 = vector.broadcast %76 : vector<8x1xf32> to vector<8x8xf32>
    %78 = arith.subf %74, %77 : vector<8x8xf32>
    %79 = math.exp %78 : vector<8x8xf32>
    %cst_22 = arith.constant dense<0.000000e+00> : vector<8xf32>
    %80 = vector.multi_reduction <add>, %79, %cst_22 [1] : vector<8x8xf32> to vector<8xf32>
    %81 = vector.shape_cast %80 : vector<8xf32> to vector<8x1xf32>
    %82 = tpu.reciprocal %81 {approx = true} : vector<8x1xf32> -> vector<8x1xf32>
    %83 = vector.broadcast %82 : vector<8x1xf32> to vector<8x8xf32>
    %84 = arith.mulf %79, %83 : vector<8x8xf32>
    %85 = vector.extract_strided_slice %36 {offsets = [0, 16], sizes = [8, 8], strides = [1, 1]} : vector<8x32xf32> to vector<8x8xf32>
    %cst_23 = arith.constant dense<0.000000e+00> : vector<8x8xf32>
    %86 = tpu.matmul %84, %85, %cst_23 {dimension_numbers = #tpu.dot_dimension_numbers<[1], [0], [0], [1], [0, 0, 1, 1], [], []>} : vector<8x8xf32>, vector<8x8xf32>, vector<8x8xf32> -> vector<8x8xf32>
    %87 = vector.extract_strided_slice %7 {offsets = [16, 0], sizes = [8, 32], strides = [1, 1]} : vector<32x32xf32> to vector<8x32xf32>
    %cst_24 = arith.constant dense<0.000000e+00> : vector<8x32xf32>
    %88 = tpu.matmul %86, %87, %cst_24 {dimension_numbers = #tpu.dot_dimension_numbers<[1], [0], [0], [1], [0, 0, 1, 1], [], []>} : vector<8x8xf32>, vector<8x32xf32>, vector<8x32xf32> -> vector<8x32xf32>
    %89 = arith.addf %71, %88 : vector<8x32xf32>
    %90 = vector.extract_strided_slice %34 {offsets = [0, 24], sizes = [8, 8], strides = [1, 1]} : vector<8x32xf32> to vector<8x8xf32>
    %91 = vector.extract_strided_slice %35 {offsets = [0, 24], sizes = [8, 8], strides = [1, 1]} : vector<8x32xf32> to vector<8x8xf32>
    %cst_25 = arith.constant dense<0.000000e+00> : vector<8x8xf32>
    %92 = tpu.matmul %90, %91, %cst_25 {dimension_numbers = #tpu.dot_dimension_numbers<[1], [1], [0], [0], [0, 0, 1, 0], [], []>} : vector<8x8xf32>, vector<8x8xf32>, vector<8x8xf32> -> vector<8x8xf32>
    %cst_26 = arith.constant dense<0xFF800000> : vector<8xf32>
    %93 = vector.multi_reduction <maximumf>, %92, %cst_26 [1] : vector<8x8xf32> to vector<8xf32>
    %94 = vector.shape_cast %93 : vector<8xf32> to vector<8x1xf32>
    %95 = vector.broadcast %94 : vector<8x1xf32> to vector<8x8xf32>
    %96 = arith.subf %92, %95 : vector<8x8xf32>
    %97 = math.exp %96 : vector<8x8xf32>
    %cst_27 = arith.constant dense<0.000000e+00> : vector<8xf32>
    %98 = vector.multi_reduction <add>, %97, %cst_27 [1] : vector<8x8xf32> to vector<8xf32>
    %99 = vector.shape_cast %98 : vector<8xf32> to vector<8x1xf32>
    %100 = tpu.reciprocal %99 {approx = true} : vector<8x1xf32> -> vector<8x1xf32>
    %101 = vector.broadcast %100 : vector<8x1xf32> to vector<8x8xf32>
    %102 = arith.mulf %97, %101 : vector<8x8xf32>
    %103 = vector.extract_strided_slice %36 {offsets = [0, 24], sizes = [8, 8], strides = [1, 1]} : vector<8x32xf32> to vector<8x8xf32>
    %cst_28 = arith.constant dense<0.000000e+00> : vector<8x8xf32>
    %104 = tpu.matmul %102, %103, %cst_28 {dimension_numbers = #tpu.dot_dimension_numbers<[1], [0], [0], [1], [0, 0, 1, 1], [], []>} : vector<8x8xf32>, vector<8x8xf32>, vector<8x8xf32> -> vector<8x8xf32>
    %105 = vector.extract_strided_slice %7 {offsets = [24, 0], sizes = [8, 32], strides = [1, 1]} : vector<32x32xf32> to vector<8x32xf32>
    %cst_29 = arith.constant dense<0.000000e+00> : vector<8x32xf32>
    %106 = tpu.matmul %104, %105, %cst_29 {dimension_numbers = #tpu.dot_dimension_numbers<[1], [0], [0], [1], [0, 0, 1, 1], [], []>} : vector<8x8xf32>, vector<8x32xf32>, vector<8x32xf32> -> vector<8x32xf32>
    %107 = arith.addf %89, %106 : vector<8x32xf32>
    %108 = vector.broadcast %14 : vector<1x32xf32> to vector<8x32xf32>
    %109 = arith.addf %107, %108 : vector<8x32xf32>
    %110 = arith.addf %1, %109 : vector<8x32xf32>
    %cst_30 = arith.constant dense<0.000000e+00> : vector<8xf32>
    %111 = vector.multi_reduction <add>, %110, %cst_30 [1] : vector<8x32xf32> to vector<8xf32>
    %112 = vector.shape_cast %111 : vector<8xf32> to vector<8x1xf32>
    %cst_31 = arith.constant 3.200000e+01 : f32
    %113 = vector.broadcast %cst_31 : f32 to vector<8x1xf32>
    %114 = arith.divf %112, %113 : vector<8x1xf32>
    %115 = vector.broadcast %114 : vector<8x1xf32> to vector<8x32xf32>
    %116 = arith.subf %110, %115 : vector<8x32xf32>
    %117 = arith.mulf %116, %116 : vector<8x32xf32>
    %cst_32 = arith.constant dense<0.000000e+00> : vector<8xf32>
    %118 = vector.multi_reduction <add>, %117, %cst_32 [1] : vector<8x32xf32> to vector<8xf32>
    %119 = vector.shape_cast %118 : vector<8xf32> to vector<8x1xf32>
    %cst_33 = arith.constant 3.200000e+01 : f32
    %120 = vector.broadcast %cst_33 : f32 to vector<8x1xf32>
    %121 = arith.divf %119, %120 : vector<8x1xf32>
    %122 = vector.broadcast %114 : vector<8x1xf32> to vector<8x32xf32>
    %123 = arith.subf %110, %122 : vector<8x32xf32>
    %cst_34 = arith.constant 9.99999974E-6 : f32
    %124 = vector.broadcast %cst_34 : f32 to vector<8x1xf32>
    %125 = arith.addf %121, %124 : vector<8x1xf32>
    %126 = math.rsqrt %125 : vector<8x1xf32>
    %127 = vector.broadcast %126 : vector<8x1xf32> to vector<8x32xf32>
    %128 = arith.mulf %123, %127 : vector<8x32xf32>
    %129 = vector.broadcast %20 : vector<1x32xf32> to vector<8x32xf32>
    %130 = arith.mulf %128, %129 : vector<8x32xf32>
    %131 = vector.broadcast %21 : vector<1x32xf32> to vector<8x32xf32>
    %132 = arith.addf %130, %131 : vector<8x32xf32>
    %cst_35 = arith.constant dense<0.000000e+00> : vector<8x32xf32>
    %133 = tpu.matmul %132, %8, %cst_35 {dimension_numbers = #tpu.dot_dimension_numbers<[1], [0], [0], [1], [0, 0, 1, 1], [], []>} : vector<8x32xf32>, vector<32x32xf32>, vector<8x32xf32> -> vector<8x32xf32>
    %134 = vector.broadcast %15 : vector<1x32xf32> to vector<8x32xf32>
    %135 = arith.addf %133, %134 : vector<8x32xf32>
    %136 = vector.extract_strided_slice %135 {offsets = [0, 0], sizes = [8, 8], strides = [1, 1]} : vector<8x32xf32> to vector<8x8xf32>
    %137 = vector.extract_strided_slice %29 {offsets = [0, 0], sizes = [64, 8], strides = [1, 1]} : vector<64x32xf32> to vector<64x8xf32>
    %cst_36 = arith.constant dense<0.000000e+00> : vector<8x64xf32>
    %138 = tpu.matmul %136, %137, %cst_36 {dimension_numbers = #tpu.dot_dimension_numbers<[1], [1], [0], [0], [0, 0, 1, 0], [], []>} : vector<8x8xf32>, vector<64x8xf32>, vector<8x64xf32> -> vector<8x64xf32>
    %cst_37 = arith.constant dense<0xFF800000> : vector<8xf32>
    %139 = vector.multi_reduction <maximumf>, %138, %cst_37 [1] : vector<8x64xf32> to vector<8xf32>
    %140 = vector.shape_cast %139 : vector<8xf32> to vector<8x1xf32>
    %141 = vector.broadcast %140 : vector<8x1xf32> to vector<8x64xf32>
    %142 = arith.subf %138, %141 : vector<8x64xf32>
    %143 = math.exp %142 : vector<8x64xf32>
    %cst_38 = arith.constant dense<0.000000e+00> : vector<8xf32>
    %144 = vector.multi_reduction <add>, %143, %cst_38 [1] : vector<8x64xf32> to vector<8xf32>
    %145 = vector.shape_cast %144 : vector<8xf32> to vector<8x1xf32>
    %146 = tpu.reciprocal %145 {approx = true} : vector<8x1xf32> -> vector<8x1xf32>
    %147 = vector.broadcast %146 : vector<8x1xf32> to vector<8x64xf32>
    %148 = arith.mulf %143, %147 : vector<8x64xf32>
    %149 = vector.extract_strided_slice %30 {offsets = [0, 0], sizes = [64, 8], strides = [1, 1]} : vector<64x32xf32> to vector<64x8xf32>
    %cst_39 = arith.constant dense<0.000000e+00> : vector<8x8xf32>
    %150 = tpu.matmul %148, %149, %cst_39 {dimension_numbers = #tpu.dot_dimension_numbers<[1], [0], [0], [1], [0, 0, 1, 1], [], []>} : vector<8x64xf32>, vector<64x8xf32>, vector<8x8xf32> -> vector<8x8xf32>
    %151 = vector.extract_strided_slice %10 {offsets = [0, 0], sizes = [8, 32], strides = [1, 1]} : vector<32x32xf32> to vector<8x32xf32>
    %cst_40 = arith.constant dense<0.000000e+00> : vector<8x32xf32>
    %152 = tpu.matmul %150, %151, %cst_40 {dimension_numbers = #tpu.dot_dimension_numbers<[1], [0], [0], [1], [0, 0, 1, 1], [], []>} : vector<8x8xf32>, vector<8x32xf32>, vector<8x32xf32> -> vector<8x32xf32>
    %153 = vector.extract_strided_slice %135 {offsets = [0, 8], sizes = [8, 8], strides = [1, 1]} : vector<8x32xf32> to vector<8x8xf32>
    %154 = vector.extract_strided_slice %29 {offsets = [0, 8], sizes = [64, 8], strides = [1, 1]} : vector<64x32xf32> to vector<64x8xf32>
    %cst_41 = arith.constant dense<0.000000e+00> : vector<8x64xf32>
    %155 = tpu.matmul %153, %154, %cst_41 {dimension_numbers = #tpu.dot_dimension_numbers<[1], [1], [0], [0], [0, 0, 1, 0], [], []>} : vector<8x8xf32>, vector<64x8xf32>, vector<8x64xf32> -> vector<8x64xf32>
    %cst_42 = arith.constant dense<0xFF800000> : vector<8xf32>
    %156 = vector.multi_reduction <maximumf>, %155, %cst_42 [1] : vector<8x64xf32> to vector<8xf32>
    %157 = vector.shape_cast %156 : vector<8xf32> to vector<8x1xf32>
    %158 = vector.broadcast %157 : vector<8x1xf32> to vector<8x64xf32>
    %159 = arith.subf %155, %158 : vector<8x64xf32>
    %160 = math.exp %159 : vector<8x64xf32>
    %cst_43 = arith.constant dense<0.000000e+00> : vector<8xf32>
    %161 = vector.multi_reduction <add>, %160, %cst_43 [1] : vector<8x64xf32> to vector<8xf32>
    %162 = vector.shape_cast %161 : vector<8xf32> to vector<8x1xf32>
    %163 = tpu.reciprocal %162 {approx = true} : vector<8x1xf32> -> vector<8x1xf32>
    %164 = vector.broadcast %163 : vector<8x1xf32> to vector<8x64xf32>
    %165 = arith.mulf %160, %164 : vector<8x64xf32>
    %166 = vector.extract_strided_slice %30 {offsets = [0, 8], sizes = [64, 8], strides = [1, 1]} : vector<64x32xf32> to vector<64x8xf32>
    %cst_44 = arith.constant dense<0.000000e+00> : vector<8x8xf32>
    %167 = tpu.matmul %165, %166, %cst_44 {dimension_numbers = #tpu.dot_dimension_numbers<[1], [0], [0], [1], [0, 0, 1, 1], [], []>} : vector<8x64xf32>, vector<64x8xf32>, vector<8x8xf32> -> vector<8x8xf32>
    %168 = vector.extract_strided_slice %10 {offsets = [8, 0], sizes = [8, 32], strides = [1, 1]} : vector<32x32xf32> to vector<8x32xf32>
    %cst_45 = arith.constant dense<0.000000e+00> : vector<8x32xf32>
    %169 = tpu.matmul %167, %168, %cst_45 {dimension_numbers = #tpu.dot_dimension_numbers<[1], [0], [0], [1], [0, 0, 1, 1], [], []>} : vector<8x8xf32>, vector<8x32xf32>, vector<8x32xf32> -> vector<8x32xf32>
    %170 = arith.addf %152, %169 : vector<8x32xf32>
    %171 = vector.extract_strided_slice %135 {offsets = [0, 16], sizes = [8, 8], strides = [1, 1]} : vector<8x32xf32> to vector<8x8xf32>
    %172 = vector.extract_strided_slice %29 {offsets = [0, 16], sizes = [64, 8], strides = [1, 1]} : vector<64x32xf32> to vector<64x8xf32>
    %cst_46 = arith.constant dense<0.000000e+00> : vector<8x64xf32>
    %173 = tpu.matmul %171, %172, %cst_46 {dimension_numbers = #tpu.dot_dimension_numbers<[1], [1], [0], [0], [0, 0, 1, 0], [], []>} : vector<8x8xf32>, vector<64x8xf32>, vector<8x64xf32> -> vector<8x64xf32>
    %cst_47 = arith.constant dense<0xFF800000> : vector<8xf32>
    %174 = vector.multi_reduction <maximumf>, %173, %cst_47 [1] : vector<8x64xf32> to vector<8xf32>
    %175 = vector.shape_cast %174 : vector<8xf32> to vector<8x1xf32>
    %176 = vector.broadcast %175 : vector<8x1xf32> to vector<8x64xf32>
    %177 = arith.subf %173, %176 : vector<8x64xf32>
    %178 = math.exp %177 : vector<8x64xf32>
    %cst_48 = arith.constant dense<0.000000e+00> : vector<8xf32>
    %179 = vector.multi_reduction <add>, %178, %cst_48 [1] : vector<8x64xf32> to vector<8xf32>
    %180 = vector.shape_cast %179 : vector<8xf32> to vector<8x1xf32>
    %181 = tpu.reciprocal %180 {approx = true} : vector<8x1xf32> -> vector<8x1xf32>
    %182 = vector.broadcast %181 : vector<8x1xf32> to vector<8x64xf32>
    %183 = arith.mulf %178, %182 : vector<8x64xf32>
    %184 = vector.extract_strided_slice %30 {offsets = [0, 16], sizes = [64, 8], strides = [1, 1]} : vector<64x32xf32> to vector<64x8xf32>
    %cst_49 = arith.constant dense<0.000000e+00> : vector<8x8xf32>
    %185 = tpu.matmul %183, %184, %cst_49 {dimension_numbers = #tpu.dot_dimension_numbers<[1], [0], [0], [1], [0, 0, 1, 1], [], []>} : vector<8x64xf32>, vector<64x8xf32>, vector<8x8xf32> -> vector<8x8xf32>
    %186 = vector.extract_strided_slice %10 {offsets = [16, 0], sizes = [8, 32], strides = [1, 1]} : vector<32x32xf32> to vector<8x32xf32>
    %cst_50 = arith.constant dense<0.000000e+00> : vector<8x32xf32>
    %187 = tpu.matmul %185, %186, %cst_50 {dimension_numbers = #tpu.dot_dimension_numbers<[1], [0], [0], [1], [0, 0, 1, 1], [], []>} : vector<8x8xf32>, vector<8x32xf32>, vector<8x32xf32> -> vector<8x32xf32>
    %188 = arith.addf %170, %187 : vector<8x32xf32>
    %189 = vector.extract_strided_slice %135 {offsets = [0, 24], sizes = [8, 8], strides = [1, 1]} : vector<8x32xf32> to vector<8x8xf32>
    %190 = vector.extract_strided_slice %29 {offsets = [0, 24], sizes = [64, 8], strides = [1, 1]} : vector<64x32xf32> to vector<64x8xf32>
    %cst_51 = arith.constant dense<0.000000e+00> : vector<8x64xf32>
    %191 = tpu.matmul %189, %190, %cst_51 {dimension_numbers = #tpu.dot_dimension_numbers<[1], [1], [0], [0], [0, 0, 1, 0], [], []>} : vector<8x8xf32>, vector<64x8xf32>, vector<8x64xf32> -> vector<8x64xf32>
    %cst_52 = arith.constant dense<0xFF800000> : vector<8xf32>
    %192 = vector.multi_reduction <maximumf>, %191, %cst_52 [1] : vector<8x64xf32> to vector<8xf32>
    %193 = vector.shape_cast %192 : vector<8xf32> to vector<8x1xf32>
    %194 = vector.broadcast %193 : vector<8x1xf32> to vector<8x64xf32>
    %195 = arith.subf %191, %194 : vector<8x64xf32>
    %196 = math.exp %195 : vector<8x64xf32>
    %cst_53 = arith.constant dense<0.000000e+00> : vector<8xf32>
    %197 = vector.multi_reduction <add>, %196, %cst_53 [1] : vector<8x64xf32> to vector<8xf32>
    %198 = vector.shape_cast %197 : vector<8xf32> to vector<8x1xf32>
    %199 = tpu.reciprocal %198 {approx = true} : vector<8x1xf32> -> vector<8x1xf32>
    %200 = vector.broadcast %199 : vector<8x1xf32> to vector<8x64xf32>
    %201 = arith.mulf %196, %200 : vector<8x64xf32>
    %202 = vector.extract_strided_slice %30 {offsets = [0, 24], sizes = [64, 8], strides = [1, 1]} : vector<64x32xf32> to vector<64x8xf32>
    %cst_54 = arith.constant dense<0.000000e+00> : vector<8x8xf32>
    %203 = tpu.matmul %201, %202, %cst_54 {dimension_numbers = #tpu.dot_dimension_numbers<[1], [0], [0], [1], [0, 0, 1, 1], [], []>} : vector<8x64xf32>, vector<64x8xf32>, vector<8x8xf32> -> vector<8x8xf32>
    %204 = vector.extract_strided_slice %10 {offsets = [24, 0], sizes = [8, 32], strides = [1, 1]} : vector<32x32xf32> to vector<8x32xf32>
    %cst_55 = arith.constant dense<0.000000e+00> : vector<8x32xf32>
    %205 = tpu.matmul %203, %204, %cst_55 {dimension_numbers = #tpu.dot_dimension_numbers<[1], [0], [0], [1], [0, 0, 1, 1], [], []>} : vector<8x8xf32>, vector<8x32xf32>, vector<8x32xf32> -> vector<8x32xf32>
    %206 = arith.addf %188, %205 : vector<8x32xf32>
    %207 = vector.broadcast %17 : vector<1x32xf32> to vector<8x32xf32>
    %208 = arith.addf %206, %207 : vector<8x32xf32>
    %209 = arith.addf %132, %208 : vector<8x32xf32>
    %cst_56 = arith.constant dense<0.000000e+00> : vector<8xf32>
    %210 = vector.multi_reduction <add>, %209, %cst_56 [1] : vector<8x32xf32> to vector<8xf32>
    %211 = vector.shape_cast %210 : vector<8xf32> to vector<8x1xf32>
    %cst_57 = arith.constant 3.200000e+01 : f32
    %212 = vector.broadcast %cst_57 : f32 to vector<8x1xf32>
    %213 = arith.divf %211, %212 : vector<8x1xf32>
    %214 = vector.broadcast %213 : vector<8x1xf32> to vector<8x32xf32>
    %215 = arith.subf %209, %214 : vector<8x32xf32>
    %216 = arith.mulf %215, %215 : vector<8x32xf32>
    %cst_58 = arith.constant dense<0.000000e+00> : vector<8xf32>
    %217 = vector.multi_reduction <add>, %216, %cst_58 [1] : vector<8x32xf32> to vector<8xf32>
    %218 = vector.shape_cast %217 : vector<8xf32> to vector<8x1xf32>
    %cst_59 = arith.constant 3.200000e+01 : f32
    %219 = vector.broadcast %cst_59 : f32 to vector<8x1xf32>
    %220 = arith.divf %218, %219 : vector<8x1xf32>
    %221 = vector.broadcast %213 : vector<8x1xf32> to vector<8x32xf32>
    %222 = arith.subf %209, %221 : vector<8x32xf32>
    %cst_60 = arith.constant 9.99999974E-6 : f32
    %223 = vector.broadcast %cst_60 : f32 to vector<8x1xf32>
    %224 = arith.addf %220, %223 : vector<8x1xf32>
    %225 = math.rsqrt %224 : vector<8x1xf32>
    %226 = vector.broadcast %225 : vector<8x1xf32> to vector<8x32xf32>
    %227 = arith.mulf %222, %226 : vector<8x32xf32>
    %228 = vector.broadcast %22 : vector<1x32xf32> to vector<8x32xf32>
    %229 = arith.mulf %227, %228 : vector<8x32xf32>
    %230 = vector.broadcast %23 : vector<1x32xf32> to vector<8x32xf32>
    %231 = arith.addf %229, %230 : vector<8x32xf32>
    %cst_61 = arith.constant dense<0.000000e+00> : vector<8x64xf32>
    %232 = tpu.matmul %231, %11, %cst_61 {dimension_numbers = #tpu.dot_dimension_numbers<[1], [0], [0], [1], [0, 0, 1, 1], [], []>} : vector<8x32xf32>, vector<32x64xf32>, vector<8x64xf32> -> vector<8x64xf32>
    %233 = vector.broadcast %18 : vector<1x64xf32> to vector<8x64xf32>
    %234 = arith.addf %232, %233 : vector<8x64xf32>
    %cst_62 = arith.constant 0.000000e+00 : f32
    %235 = vector.broadcast %cst_62 : f32 to vector<8x64xf32>
    %236 = arith.maximumf %234, %235 : vector<8x64xf32>
    %cst_63 = arith.constant dense<0.000000e+00> : vector<8x32xf32>
    %237 = tpu.matmul %236, %12, %cst_63 {dimension_numbers = #tpu.dot_dimension_numbers<[1], [1], [0], [0], [0, 0, 1, 0], [], []>} : vector<8x64xf32>, vector<32x64xf32>, vector<8x32xf32> -> vector<8x32xf32>
    %238 = vector.broadcast %19 : vector<1x32xf32> to vector<8x32xf32>
    %239 = arith.addf %237, %238 : vector<8x32xf32>
    %240 = arith.addf %231, %239 : vector<8x32xf32>
    %cst_64 = arith.constant dense<0.000000e+00> : vector<8xf32>
    %241 = vector.multi_reduction <add>, %240, %cst_64 [1] : vector<8x32xf32> to vector<8xf32>
    %242 = vector.shape_cast %241 : vector<8xf32> to vector<8x1xf32>
    %cst_65 = arith.constant 3.200000e+01 : f32
    %243 = vector.broadcast %cst_65 : f32 to vector<8x1xf32>
    %244 = arith.divf %242, %243 : vector<8x1xf32>
    %245 = vector.broadcast %244 : vector<8x1xf32> to vector<8x32xf32>
    %246 = arith.subf %240, %245 : vector<8x32xf32>
    %247 = arith.mulf %246, %246 : vector<8x32xf32>
    %cst_66 = arith.constant dense<0.000000e+00> : vector<8xf32>
    %248 = vector.multi_reduction <add>, %247, %cst_66 [1] : vector<8x32xf32> to vector<8xf32>
    %249 = vector.shape_cast %248 : vector<8xf32> to vector<8x1xf32>
    %cst_67 = arith.constant 3.200000e+01 : f32
    %250 = vector.broadcast %cst_67 : f32 to vector<8x1xf32>
    %251 = arith.divf %249, %250 : vector<8x1xf32>
    %252 = vector.broadcast %244 : vector<8x1xf32> to vector<8x32xf32>
    %253 = arith.subf %240, %252 : vector<8x32xf32>
    %cst_68 = arith.constant 9.99999974E-6 : f32
    %254 = vector.broadcast %cst_68 : f32 to vector<8x1xf32>
    %255 = arith.addf %251, %254 : vector<8x1xf32>
    %256 = math.rsqrt %255 : vector<8x1xf32>
    %257 = vector.broadcast %256 : vector<8x1xf32> to vector<8x32xf32>
    %258 = arith.mulf %253, %257 : vector<8x32xf32>
    %259 = vector.broadcast %24 : vector<1x32xf32> to vector<8x32xf32>
    %260 = arith.mulf %258, %259 : vector<8x32xf32>
    %261 = vector.broadcast %25 : vector<1x32xf32> to vector<8x32xf32>
    %262 = arith.addf %260, %261 : vector<8x32xf32>
    %c0_69 = arith.constant 0 : index
    %c0_70 = arith.constant 0 : index
    %c0_71 = arith.constant 0 : index
    %c0_72 = arith.constant 0 : index
    %263 = vector.load %arg5[%c0_69, %c0_70, %c0_71, %c0_72] : memref<1x3x8x32xf32, #tpu.memory_space<vmem>>, vector<1x1x8x32xf32>
    %264 = vector.shape_cast %263 : vector<1x1x8x32xf32> to vector<8x32xf32>
    %265 = vector.shape_cast %262 : vector<8x32xf32> to vector<1x1x8x32xf32>
    tpu.vector_store %arg5[%c0_69, %c0_70, %c0_71, %c0_72], %265 {strides = array<i32>} : memref<1x3x8x32xf32, #tpu.memory_space<vmem>>, vector<1x1x8x32xf32>,
    %cst_73 = arith.constant dense<0.000000e+00> : vector<8x96xf32>
    %266 = tpu.matmul %262, %6, %cst_73 {dimension_numbers = #tpu.dot_dimension_numbers<[1], [0], [0], [1], [0, 0, 1, 1], [], []>} : vector<8x32xf32>, vector<32x96xf32>, vector<8x96xf32> -> vector<8x96xf32>
    %267 = vector.broadcast %13 : vector<1x96xf32> to vector<8x96xf32>
    %268 = arith.addf %266, %267 : vector<8x96xf32>
    %269 = vector.extract_strided_slice %268 {offsets = [0, 0], sizes = [8, 32], strides = [1, 1]} : vector<8x96xf32> to vector<8x32xf32>
    %270 = vector.extract_strided_slice %268 {offsets = [0, 32], sizes = [8, 32], strides = [1, 1]} : vector<8x96xf32> to vector<8x32xf32>
    %271 = vector.extract_strided_slice %268 {offsets = [0, 64], sizes = [8, 32], strides = [1, 1]} : vector<8x96xf32> to vector<8x32xf32>
    %272 = vector.extract_strided_slice %269 {offsets = [0, 0], sizes = [8, 8], strides = [1, 1]} : vector<8x32xf32> to vector<8x8xf32>
    %273 = vector.extract_strided_slice %270 {offsets = [0, 0], sizes = [8, 8], strides = [1, 1]} : vector<8x32xf32> to vector<8x8xf32>
    %cst_74 = arith.constant dense<0.000000e+00> : vector<8x8xf32>
    %274 = tpu.matmul %272, %273, %cst_74 {dimension_numbers = #tpu.dot_dimension_numbers<[1], [1], [0], [0], [0, 0, 1, 0], [], []>} : vector<8x8xf32>, vector<8x8xf32>, vector<8x8xf32> -> vector<8x8xf32>
    %cst_75 = arith.constant dense<0xFF800000> : vector<8xf32>
    %275 = vector.multi_reduction <maximumf>, %274, %cst_75 [1] : vector<8x8xf32> to vector<8xf32>
    %276 = vector.shape_cast %275 : vector<8xf32> to vector<8x1xf32>
    %277 = vector.broadcast %276 : vector<8x1xf32> to vector<8x8xf32>
    %278 = arith.subf %274, %277 : vector<8x8xf32>
    %279 = math.exp %278 : vector<8x8xf32>
    %cst_76 = arith.constant dense<0.000000e+00> : vector<8xf32>
    %280 = vector.multi_reduction <add>, %279, %cst_76 [1] : vector<8x8xf32> to vector<8xf32>
    %281 = vector.shape_cast %280 : vector<8xf32> to vector<8x1xf32>
    %282 = tpu.reciprocal %281 {approx = true} : vector<8x1xf32> -> vector<8x1xf32>
    %283 = vector.broadcast %282 : vector<8x1xf32> to vector<8x8xf32>
    %284 = arith.mulf %279, %283 : vector<8x8xf32>
    %285 = vector.extract_strided_slice %271 {offsets = [0, 0], sizes = [8, 8], strides = [1, 1]} : vector<8x32xf32> to vector<8x8xf32>
    %cst_77 = arith.constant dense<0.000000e+00> : vector<8x8xf32>
    %286 = tpu.matmul %284, %285, %cst_77 {dimension_numbers = #tpu.dot_dimension_numbers<[1], [0], [0], [1], [0, 0, 1, 1], [], []>} : vector<8x8xf32>, vector<8x8xf32>, vector<8x8xf32> -> vector<8x8xf32>
    %287 = vector.extract_strided_slice %7 {offsets = [0, 0], sizes = [8, 32], strides = [1, 1]} : vector<32x32xf32> to vector<8x32xf32>
    %cst_78 = arith.constant dense<0.000000e+00> : vector<8x32xf32>
    %288 = tpu.matmul %286, %287, %cst_78 {dimension_numbers = #tpu.dot_dimension_numbers<[1], [0], [0], [1], [0, 0, 1, 1], [], []>} : vector<8x8xf32>, vector<8x32xf32>, vector<8x32xf32> -> vector<8x32xf32>
    %289 = vector.extract_strided_slice %269 {offsets = [0, 8], sizes = [8, 8], strides = [1, 1]} : vector<8x32xf32> to vector<8x8xf32>
    %290 = vector.extract_strided_slice %270 {offsets = [0, 8], sizes = [8, 8], strides = [1, 1]} : vector<8x32xf32> to vector<8x8xf32>
    %cst_79 = arith.constant dense<0.000000e+00> : vector<8x8xf32>
    %291 = tpu.matmul %289, %290, %cst_79 {dimension_numbers = #tpu.dot_dimension_numbers<[1], [1], [0], [0], [0, 0, 1, 0], [], []>} : vector<8x8xf32>, vector<8x8xf32>, vector<8x8xf32> -> vector<8x8xf32>
    %cst_80 = arith.constant dense<0xFF800000> : vector<8xf32>
    %292 = vector.multi_reduction <maximumf>, %291, %cst_80 [1] : vector<8x8xf32> to vector<8xf32>
    %293 = vector.shape_cast %292 : vector<8xf32> to vector<8x1xf32>
    %294 = vector.broadcast %293 : vector<8x1xf32> to vector<8x8xf32>
    %295 = arith.subf %291, %294 : vector<8x8xf32>
    %296 = math.exp %295 : vector<8x8xf32>
    %cst_81 = arith.constant dense<0.000000e+00> : vector<8xf32>
    %297 = vector.multi_reduction <add>, %296, %cst_81 [1] : vector<8x8xf32> to vector<8xf32>
    %298 = vector.shape_cast %297 : vector<8xf32> to vector<8x1xf32>
    %299 = tpu.reciprocal %298 {approx = true} : vector<8x1xf32> -> vector<8x1xf32>
    %300 = vector.broadcast %299 : vector<8x1xf32> to vector<8x8xf32>
    %301 = arith.mulf %296, %300 : vector<8x8xf32>
    %302 = vector.extract_strided_slice %271 {offsets = [0, 8], sizes = [8, 8], strides = [1, 1]} : vector<8x32xf32> to vector<8x8xf32>
    %cst_82 = arith.constant dense<0.000000e+00> : vector<8x8xf32>
    %303 = tpu.matmul %301, %302, %cst_82 {dimension_numbers = #tpu.dot_dimension_numbers<[1], [0], [0], [1], [0, 0, 1, 1], [], []>} : vector<8x8xf32>, vector<8x8xf32>, vector<8x8xf32> -> vector<8x8xf32>
    %304 = vector.extract_strided_slice %7 {offsets = [8, 0], sizes = [8, 32], strides = [1, 1]} : vector<32x32xf32> to vector<8x32xf32>
    %cst_83 = arith.constant dense<0.000000e+00> : vector<8x32xf32>
    %305 = tpu.matmul %303, %304, %cst_83 {dimension_numbers = #tpu.dot_dimension_numbers<[1], [0], [0], [1], [0, 0, 1, 1], [], []>} : vector<8x8xf32>, vector<8x32xf32>, vector<8x32xf32> -> vector<8x32xf32>
    %306 = arith.addf %288, %305 : vector<8x32xf32>
    %307 = vector.extract_strided_slice %269 {offsets = [0, 16], sizes = [8, 8], strides = [1, 1]} : vector<8x32xf32> to vector<8x8xf32>
    %308 = vector.extract_strided_slice %270 {offsets = [0, 16], sizes = [8, 8], strides = [1, 1]} : vector<8x32xf32> to vector<8x8xf32>
    %cst_84 = arith.constant dense<0.000000e+00> : vector<8x8xf32>
    %309 = tpu.matmul %307, %308, %cst_84 {dimension_numbers = #tpu.dot_dimension_numbers<[1], [1], [0], [0], [0, 0, 1, 0], [], []>} : vector<8x8xf32>, vector<8x8xf32>, vector<8x8xf32> -> vector<8x8xf32>
    %cst_85 = arith.constant dense<0xFF800000> : vector<8xf32>
    %310 = vector.multi_reduction <maximumf>, %309, %cst_85 [1] : vector<8x8xf32> to vector<8xf32>
    %311 = vector.shape_cast %310 : vector<8xf32> to vector<8x1xf32>
    %312 = vector.broadcast %311 : vector<8x1xf32> to vector<8x8xf32>
    %313 = arith.subf %309, %312 : vector<8x8xf32>
    %314 = math.exp %313 : vector<8x8xf32>
    %cst_86 = arith.constant dense<0.000000e+00> : vector<8xf32>
    %315 = vector.multi_reduction <add>, %314, %cst_86 [1] : vector<8x8xf32> to vector<8xf32>
    %316 = vector.shape_cast %315 : vector<8xf32> to vector<8x1xf32>
    %317 = tpu.reciprocal %316 {approx = true} : vector<8x1xf32> -> vector<8x1xf32>
    %318 = vector.broadcast %317 : vector<8x1xf32> to vector<8x8xf32>
    %319 = arith.mulf %314, %318 : vector<8x8xf32>
    %320 = vector.extract_strided_slice %271 {offsets = [0, 16], sizes = [8, 8], strides = [1, 1]} : vector<8x32xf32> to vector<8x8xf32>
    %cst_87 = arith.constant dense<0.000000e+00> : vector<8x8xf32>
    %321 = tpu.matmul %319, %320, %cst_87 {dimension_numbers = #tpu.dot_dimension_numbers<[1], [0], [0], [1], [0, 0, 1, 1], [], []>} : vector<8x8xf32>, vector<8x8xf32>, vector<8x8xf32> -> vector<8x8xf32>
    %322 = vector.extract_strided_slice %7 {offsets = [16, 0], sizes = [8, 32], strides = [1, 1]} : vector<32x32xf32> to vector<8x32xf32>
    %cst_88 = arith.constant dense<0.000000e+00> : vector<8x32xf32>
    %323 = tpu.matmul %321, %322, %cst_88 {dimension_numbers = #tpu.dot_dimension_numbers<[1], [0], [0], [1], [0, 0, 1, 1], [], []>} : vector<8x8xf32>, vector<8x32xf32>, vector<8x32xf32> -> vector<8x32xf32>
    %324 = arith.addf %306, %323 : vector<8x32xf32>
    %325 = vector.extract_strided_slice %269 {offsets = [0, 24], sizes = [8, 8], strides = [1, 1]} : vector<8x32xf32> to vector<8x8xf32>
    %326 = vector.extract_strided_slice %270 {offsets = [0, 24], sizes = [8, 8], strides = [1, 1]} : vector<8x32xf32> to vector<8x8xf32>
    %cst_89 = arith.constant dense<0.000000e+00> : vector<8x8xf32>
    %327 = tpu.matmul %325, %326, %cst_89 {dimension_numbers = #tpu.dot_dimension_numbers<[1], [1], [0], [0], [0, 0, 1, 0], [], []>} : vector<8x8xf32>, vector<8x8xf32>, vector<8x8xf32> -> vector<8x8xf32>
    %cst_90 = arith.constant dense<0xFF800000> : vector<8xf32>
    %328 = vector.multi_reduction <maximumf>, %327, %cst_90 [1] : vector<8x8xf32> to vector<8xf32>
    %329 = vector.shape_cast %328 : vector<8xf32> to vector<8x1xf32>
    %330 = vector.broadcast %329 : vector<8x1xf32> to vector<8x8xf32>
    %331 = arith.subf %327, %330 : vector<8x8xf32>
    %332 = math.exp %331 : vector<8x8xf32>
    %cst_91 = arith.constant dense<0.000000e+00> : vector<8xf32>
    %333 = vector.multi_reduction <add>, %332, %cst_91 [1] : vector<8x8xf32> to vector<8xf32>
    %334 = vector.shape_cast %333 : vector<8xf32> to vector<8x1xf32>
    %335 = tpu.reciprocal %334 {approx = true} : vector<8x1xf32> -> vector<8x1xf32>
    %336 = vector.broadcast %335 : vector<8x1xf32> to vector<8x8xf32>
    %337 = arith.mulf %332, %336 : vector<8x8xf32>
    %338 = vector.extract_strided_slice %271 {offsets = [0, 24], sizes = [8, 8], strides = [1, 1]} : vector<8x32xf32> to vector<8x8xf32>
    %cst_92 = arith.constant dense<0.000000e+00> : vector<8x8xf32>
    %339 = tpu.matmul %337, %338, %cst_92 {dimension_numbers = #tpu.dot_dimension_numbers<[1], [0], [0], [1], [0, 0, 1, 1], [], []>} : vector<8x8xf32>, vector<8x8xf32>, vector<8x8xf32> -> vector<8x8xf32>
    %340 = vector.extract_strided_slice %7 {offsets = [24, 0], sizes = [8, 32], strides = [1, 1]} : vector<32x32xf32> to vector<8x32xf32>
    %cst_93 = arith.constant dense<0.000000e+00> : vector<8x32xf32>
    %341 = tpu.matmul %339, %340, %cst_93 {dimension_numbers = #tpu.dot_dimension_numbers<[1], [0], [0], [1], [0, 0, 1, 1], [], []>} : vector<8x8xf32>, vector<8x32xf32>, vector<8x32xf32> -> vector<8x32xf32>
    %342 = arith.addf %324, %341 : vector<8x32xf32>
    %343 = vector.broadcast %14 : vector<1x32xf32> to vector<8x32xf32>
    %344 = arith.addf %342, %343 : vector<8x32xf32>
    %345 = arith.addf %262, %344 : vector<8x32xf32>
    %cst_94 = arith.constant dense<0.000000e+00> : vector<8xf32>
    %346 = vector.multi_reduction <add>, %345, %cst_94 [1] : vector<8x32xf32> to vector<8xf32>
    %347 = vector.shape_cast %346 : vector<8xf32> to vector<8x1xf32>
    %cst_95 = arith.constant 3.200000e+01 : f32
    %348 = vector.broadcast %cst_95 : f32 to vector<8x1xf32>
    %349 = arith.divf %347, %348 : vector<8x1xf32>
    %350 = vector.broadcast %349 : vector<8x1xf32> to vector<8x32xf32>
    %351 = arith.subf %345, %350 : vector<8x32xf32>
    %352 = arith.mulf %351, %351 : vector<8x32xf32>
    %cst_96 = arith.constant dense<0.000000e+00> : vector<8xf32>
    %353 = vector.multi_reduction <add>, %352, %cst_96 [1] : vector<8x32xf32> to vector<8xf32>
    %354 = vector.shape_cast %353 : vector<8xf32> to vector<8x1xf32>
    %cst_97 = arith.constant 3.200000e+01 : f32
    %355 = vector.broadcast %cst_97 : f32 to vector<8x1xf32>
    %356 = arith.divf %354, %355 : vector<8x1xf32>
    %357 = vector.broadcast %349 : vector<8x1xf32> to vector<8x32xf32>
    %358 = arith.subf %345, %357 : vector<8x32xf32>
    %cst_98 = arith.constant 9.99999974E-6 : f32
    %359 = vector.broadcast %cst_98 : f32 to vector<8x1xf32>
    %360 = arith.addf %356, %359 : vector<8x1xf32>
    %361 = math.rsqrt %360 : vector<8x1xf32>
    %362 = vector.broadcast %361 : vector<8x1xf32> to vector<8x32xf32>
    %363 = arith.mulf %358, %362 : vector<8x32xf32>
    %364 = vector.broadcast %20 : vector<1x32xf32> to vector<8x32xf32>
    %365 = arith.mulf %363, %364 : vector<8x32xf32>
    %366 = vector.broadcast %21 : vector<1x32xf32> to vector<8x32xf32>
    %367 = arith.addf %365, %366 : vector<8x32xf32>
    %cst_99 = arith.constant dense<0.000000e+00> : vector<8x32xf32>
    %368 = tpu.matmul %367, %8, %cst_99 {dimension_numbers = #tpu.dot_dimension_numbers<[1], [0], [0], [1], [0, 0, 1, 1], [], []>} : vector<8x32xf32>, vector<32x32xf32>, vector<8x32xf32> -> vector<8x32xf32>
    %369 = vector.broadcast %15 : vector<1x32xf32> to vector<8x32xf32>
    %370 = arith.addf %368, %369 : vector<8x32xf32>
    %371 = vector.extract_strided_slice %370 {offsets = [0, 0], sizes = [8, 8], strides = [1, 1]} : vector<8x32xf32> to vector<8x8xf32>
    %372 = vector.extract_strided_slice %29 {offsets = [0, 0], sizes = [64, 8], strides = [1, 1]} : vector<64x32xf32> to vector<64x8xf32>
    %cst_100 = arith.constant dense<0.000000e+00> : vector<8x64xf32>
    %373 = tpu.matmul %371, %372, %cst_100 {dimension_numbers = #tpu.dot_dimension_numbers<[1], [1], [0], [0], [0, 0, 1, 0], [], []>} : vector<8x8xf32>, vector<64x8xf32>, vector<8x64xf32> -> vector<8x64xf32>
    %cst_101 = arith.constant dense<0xFF800000> : vector<8xf32>
    %374 = vector.multi_reduction <maximumf>, %373, %cst_101 [1] : vector<8x64xf32> to vector<8xf32>
    %375 = vector.shape_cast %374 : vector<8xf32> to vector<8x1xf32>
    %376 = vector.broadcast %375 : vector<8x1xf32> to vector<8x64xf32>
    %377 = arith.subf %373, %376 : vector<8x64xf32>
    %378 = math.exp %377 : vector<8x64xf32>
    %cst_102 = arith.constant dense<0.000000e+00> : vector<8xf32>
    %379 = vector.multi_reduction <add>, %378, %cst_102 [1] : vector<8x64xf32> to vector<8xf32>
    %380 = vector.shape_cast %379 : vector<8xf32> to vector<8x1xf32>
    %381 = tpu.reciprocal %380 {approx = true} : vector<8x1xf32> -> vector<8x1xf32>
    %382 = vector.broadcast %381 : vector<8x1xf32> to vector<8x64xf32>
    %383 = arith.mulf %378, %382 : vector<8x64xf32>
    %384 = vector.extract_strided_slice %30 {offsets = [0, 0], sizes = [64, 8], strides = [1, 1]} : vector<64x32xf32> to vector<64x8xf32>
    %cst_103 = arith.constant dense<0.000000e+00> : vector<8x8xf32>
    %385 = tpu.matmul %383, %384, %cst_103 {dimension_numbers = #tpu.dot_dimension_numbers<[1], [0], [0], [1], [0, 0, 1, 1], [], []>} : vector<8x64xf32>, vector<64x8xf32>, vector<8x8xf32> -> vector<8x8xf32>
    %386 = vector.extract_strided_slice %10 {offsets = [0, 0], sizes = [8, 32], strides = [1, 1]} : vector<32x32xf32> to vector<8x32xf32>
    %cst_104 = arith.constant dense<0.000000e+00> : vector<8x32xf32>
    %387 = tpu.matmul %385, %386, %cst_104 {dimension_numbers = #tpu.dot_dimension_numbers<[1], [0], [0], [1], [0, 0, 1, 1], [], []>} : vector<8x8xf32>, vector<8x32xf32>, vector<8x32xf32> -> vector<8x32xf32>
    %388 = vector.extract_strided_slice %370 {offsets = [0, 8], sizes = [8, 8], strides = [1, 1]} : vector<8x32xf32> to vector<8x8xf32>
    %389 = vector.extract_strided_slice %29 {offsets = [0, 8], sizes = [64, 8], strides = [1, 1]} : vector<64x32xf32> to vector<64x8xf32>
    %cst_105 = arith.constant dense<0.000000e+00> : vector<8x64xf32>
    %390 = tpu.matmul %388, %389, %cst_105 {dimension_numbers = #tpu.dot_dimension_numbers<[1], [1], [0], [0], [0, 0, 1, 0], [], []>} : vector<8x8xf32>, vector<64x8xf32>, vector<8x64xf32> -> vector<8x64xf32>
    %cst_106 = arith.constant dense<0xFF800000> : vector<8xf32>
    %391 = vector.multi_reduction <maximumf>, %390, %cst_106 [1] : vector<8x64xf32> to vector<8xf32>
    %392 = vector.shape_cast %391 : vector<8xf32> to vector<8x1xf32>
    %393 = vector.broadcast %392 : vector<8x1xf32> to vector<8x64xf32>
    %394 = arith.subf %390, %393 : vector<8x64xf32>
    %395 = math.exp %394 : vector<8x64xf32>
    %cst_107 = arith.constant dense<0.000000e+00> : vector<8xf32>
    %396 = vector.multi_reduction <add>, %395, %cst_107 [1] : vector<8x64xf32> to vector<8xf32>
    %397 = vector.shape_cast %396 : vector<8xf32> to vector<8x1xf32>
    %398 = tpu.reciprocal %397 {approx = true} : vector<8x1xf32> -> vector<8x1xf32>
    %399 = vector.broadcast %398 : vector<8x1xf32> to vector<8x64xf32>
    %400 = arith.mulf %395, %399 : vector<8x64xf32>
    %401 = vector.extract_strided_slice %30 {offsets = [0, 8], sizes = [64, 8], strides = [1, 1]} : vector<64x32xf32> to vector<64x8xf32>
    %cst_108 = arith.constant dense<0.000000e+00> : vector<8x8xf32>
    %402 = tpu.matmul %400, %401, %cst_108 {dimension_numbers = #tpu.dot_dimension_numbers<[1], [0], [0], [1], [0, 0, 1, 1], [], []>} : vector<8x64xf32>, vector<64x8xf32>, vector<8x8xf32> -> vector<8x8xf32>
    %403 = vector.extract_strided_slice %10 {offsets = [8, 0], sizes = [8, 32], strides = [1, 1]} : vector<32x32xf32> to vector<8x32xf32>
    %cst_109 = arith.constant dense<0.000000e+00> : vector<8x32xf32>
    %404 = tpu.matmul %402, %403, %cst_109 {dimension_numbers = #tpu.dot_dimension_numbers<[1], [0], [0], [1], [0, 0, 1, 1], [], []>} : vector<8x8xf32>, vector<8x32xf32>, vector<8x32xf32> -> vector<8x32xf32>
    %405 = arith.addf %387, %404 : vector<8x32xf32>
    %406 = vector.extract_strided_slice %370 {offsets = [0, 16], sizes = [8, 8], strides = [1, 1]} : vector<8x32xf32> to vector<8x8xf32>
    %407 = vector.extract_strided_slice %29 {offsets = [0, 16], sizes = [64, 8], strides = [1, 1]} : vector<64x32xf32> to vector<64x8xf32>
    %cst_110 = arith.constant dense<0.000000e+00> : vector<8x64xf32>
    %408 = tpu.matmul %406, %407, %cst_110 {dimension_numbers = #tpu.dot_dimension_numbers<[1], [1], [0], [0], [0, 0, 1, 0], [], []>} : vector<8x8xf32>, vector<64x8xf32>, vector<8x64xf32> -> vector<8x64xf32>
    %cst_111 = arith.constant dense<0xFF800000> : vector<8xf32>
    %409 = vector.multi_reduction <maximumf>, %408, %cst_111 [1] : vector<8x64xf32> to vector<8xf32>
    %410 = vector.shape_cast %409 : vector<8xf32> to vector<8x1xf32>
    %411 = vector.broadcast %410 : vector<8x1xf32> to vector<8x64xf32>
    %412 = arith.subf %408, %411 : vector<8x64xf32>
    %413 = math.exp %412 : vector<8x64xf32>
    %cst_112 = arith.constant dense<0.000000e+00> : vector<8xf32>
    %414 = vector.multi_reduction <add>, %413, %cst_112 [1] : vector<8x64xf32> to vector<8xf32>
    %415 = vector.shape_cast %414 : vector<8xf32> to vector<8x1xf32>
    %416 = tpu.reciprocal %415 {approx = true} : vector<8x1xf32> -> vector<8x1xf32>
    %417 = vector.broadcast %416 : vector<8x1xf32> to vector<8x64xf32>
    %418 = arith.mulf %413, %417 : vector<8x64xf32>
    %419 = vector.extract_strided_slice %30 {offsets = [0, 16], sizes = [64, 8], strides = [1, 1]} : vector<64x32xf32> to vector<64x8xf32>
    %cst_113 = arith.constant dense<0.000000e+00> : vector<8x8xf32>
    %420 = tpu.matmul %418, %419, %cst_113 {dimension_numbers = #tpu.dot_dimension_numbers<[1], [0], [0], [1], [0, 0, 1, 1], [], []>} : vector<8x64xf32>, vector<64x8xf32>, vector<8x8xf32> -> vector<8x8xf32>
    %421 = vector.extract_strided_slice %10 {offsets = [16, 0], sizes = [8, 32], strides = [1, 1]} : vector<32x32xf32> to vector<8x32xf32>
    %cst_114 = arith.constant dense<0.000000e+00> : vector<8x32xf32>
    %422 = tpu.matmul %420, %421, %cst_114 {dimension_numbers = #tpu.dot_dimension_numbers<[1], [0], [0], [1], [0, 0, 1, 1], [], []>} : vector<8x8xf32>, vector<8x32xf32>, vector<8x32xf32> -> vector<8x32xf32>
    %423 = arith.addf %405, %422 : vector<8x32xf32>
    %424 = vector.extract_strided_slice %370 {offsets = [0, 24], sizes = [8, 8], strides = [1, 1]} : vector<8x32xf32> to vector<8x8xf32>
    %425 = vector.extract_strided_slice %29 {offsets = [0, 24], sizes = [64, 8], strides = [1, 1]} : vector<64x32xf32> to vector<64x8xf32>
    %cst_115 = arith.constant dense<0.000000e+00> : vector<8x64xf32>
    %426 = tpu.matmul %424, %425, %cst_115 {dimension_numbers = #tpu.dot_dimension_numbers<[1], [1], [0], [0], [0, 0, 1, 0], [], []>} : vector<8x8xf32>, vector<64x8xf32>, vector<8x64xf32> -> vector<8x64xf32>
    %cst_116 = arith.constant dense<0xFF800000> : vector<8xf32>
    %427 = vector.multi_reduction <maximumf>, %426, %cst_116 [1] : vector<8x64xf32> to vector<8xf32>
    %428 = vector.shape_cast %427 : vector<8xf32> to vector<8x1xf32>
    %429 = vector.broadcast %428 : vector<8x1xf32> to vector<8x64xf32>
    %430 = arith.subf %426, %429 : vector<8x64xf32>
    %431 = math.exp %430 : vector<8x64xf32>
    %cst_117 = arith.constant dense<0.000000e+00> : vector<8xf32>
    %432 = vector.multi_reduction <add>, %431, %cst_117 [1] : vector<8x64xf32> to vector<8xf32>
    %433 = vector.shape_cast %432 : vector<8xf32> to vector<8x1xf32>
    %434 = tpu.reciprocal %433 {approx = true} : vector<8x1xf32> -> vector<8x1xf32>
    %435 = vector.broadcast %434 : vector<8x1xf32> to vector<8x64xf32>
    %436 = arith.mulf %431, %435 : vector<8x64xf32>
    %437 = vector.extract_strided_slice %30 {offsets = [0, 24], sizes = [64, 8], strides = [1, 1]} : vector<64x32xf32> to vector<64x8xf32>
    %cst_118 = arith.constant dense<0.000000e+00> : vector<8x8xf32>
    %438 = tpu.matmul %436, %437, %cst_118 {dimension_numbers = #tpu.dot_dimension_numbers<[1], [0], [0], [1], [0, 0, 1, 1], [], []>} : vector<8x64xf32>, vector<64x8xf32>, vector<8x8xf32> -> vector<8x8xf32>
    %439 = vector.extract_strided_slice %10 {offsets = [24, 0], sizes = [8, 32], strides = [1, 1]} : vector<32x32xf32> to vector<8x32xf32>
    %cst_119 = arith.constant dense<0.000000e+00> : vector<8x32xf32>
    %440 = tpu.matmul %438, %439, %cst_119 {dimension_numbers = #tpu.dot_dimension_numbers<[1], [0], [0], [1], [0, 0, 1, 1], [], []>} : vector<8x8xf32>, vector<8x32xf32>, vector<8x32xf32> -> vector<8x32xf32>
    %441 = arith.addf %423, %440 : vector<8x32xf32>
    %442 = vector.broadcast %17 : vector<1x32xf32> to vector<8x32xf32>
    %443 = arith.addf %441, %442 : vector<8x32xf32>
    %444 = arith.addf %367, %443 : vector<8x32xf32>
    %cst_120 = arith.constant dense<0.000000e+00> : vector<8xf32>
    %445 = vector.multi_reduction <add>, %444, %cst_120 [1] : vector<8x32xf32> to vector<8xf32>
    %446 = vector.shape_cast %445 : vector<8xf32> to vector<8x1xf32>
    %cst_121 = arith.constant 3.200000e+01 : f32
    %447 = vector.broadcast %cst_121 : f32 to vector<8x1xf32>
    %448 = arith.divf %446, %447 : vector<8x1xf32>
    %449 = vector.broadcast %448 : vector<8x1xf32> to vector<8x32xf32>
    %450 = arith.subf %444, %449 : vector<8x32xf32>
    %451 = arith.mulf %450, %450 : vector<8x32xf32>
    %cst_122 = arith.constant dense<0.000000e+00> : vector<8xf32>
    %452 = vector.multi_reduction <add>, %451, %cst_122 [1] : vector<8x32xf32> to vector<8xf32>
    %453 = vector.shape_cast %452 : vector<8xf32> to vector<8x1xf32>
    %cst_123 = arith.constant 3.200000e+01 : f32
    %454 = vector.broadcast %cst_123 : f32 to vector<8x1xf32>
    %455 = arith.divf %453, %454 : vector<8x1xf32>
    %456 = vector.broadcast %448 : vector<8x1xf32> to vector<8x32xf32>
    %457 = arith.subf %444, %456 : vector<8x32xf32>
    %cst_124 = arith.constant 9.99999974E-6 : f32
    %458 = vector.broadcast %cst_124 : f32 to vector<8x1xf32>
    %459 = arith.addf %455, %458 : vector<8x1xf32>
    %460 = math.rsqrt %459 : vector<8x1xf32>
    %461 = vector.broadcast %460 : vector<8x1xf32> to vector<8x32xf32>
    %462 = arith.mulf %457, %461 : vector<8x32xf32>
    %463 = vector.broadcast %22 : vector<1x32xf32> to vector<8x32xf32>
    %464 = arith.mulf %462, %463 : vector<8x32xf32>
    %465 = vector.broadcast %23 : vector<1x32xf32> to vector<8x32xf32>
    %466 = arith.addf %464, %465 : vector<8x32xf32>
    %cst_125 = arith.constant dense<0.000000e+00> : vector<8x64xf32>
    %467 = tpu.matmul %466, %11, %cst_125 {dimension_numbers = #tpu.dot_dimension_numbers<[1], [0], [0], [1], [0, 0, 1, 1], [], []>} : vector<8x32xf32>, vector<32x64xf32>, vector<8x64xf32> -> vector<8x64xf32>
    %468 = vector.broadcast %18 : vector<1x64xf32> to vector<8x64xf32>
    %469 = arith.addf %467, %468 : vector<8x64xf32>
    %cst_126 = arith.constant 0.000000e+00 : f32
    %470 = vector.broadcast %cst_126 : f32 to vector<8x64xf32>
    %471 = arith.maximumf %469, %470 : vector<8x64xf32>
    %cst_127 = arith.constant dense<0.000000e+00> : vector<8x32xf32>
    %472 = tpu.matmul %471, %12, %cst_127 {dimension_numbers = #tpu.dot_dimension_numbers<[1], [1], [0], [0], [0, 0, 1, 0], [], []>} : vector<8x64xf32>, vector<32x64xf32>, vector<8x32xf32> -> vector<8x32xf32>
    %473 = vector.broadcast %19 : vector<1x32xf32> to vector<8x32xf32>
    %474 = arith.addf %472, %473 : vector<8x32xf32>
    %475 = arith.addf %466, %474 : vector<8x32xf32>
    %cst_128 = arith.constant dense<0.000000e+00> : vector<8xf32>
    %476 = vector.multi_reduction <add>, %475, %cst_128 [1] : vector<8x32xf32> to vector<8xf32>
    %477 = vector.shape_cast %476 : vector<8xf32> to vector<8x1xf32>
    %cst_129 = arith.constant 3.200000e+01 : f32
    %478 = vector.broadcast %cst_129 : f32 to vector<8x1xf32>
    %479 = arith.divf %477, %478 : vector<8x1xf32>
    %480 = vector.broadcast %479 : vector<8x1xf32> to vector<8x32xf32>
    %481 = arith.subf %475, %480 : vector<8x32xf32>
    %482 = arith.mulf %481, %481 : vector<8x32xf32>
    %cst_130 = arith.constant dense<0.000000e+00> : vector<8xf32>
    %483 = vector.multi_reduction <add>, %482, %cst_130 [1] : vector<8x32xf32> to vector<8xf32>
    %484 = vector.shape_cast %483 : vector<8xf32> to vector<8x1xf32>
    %cst_131 = arith.constant 3.200000e+01 : f32
    %485 = vector.broadcast %cst_131 : f32 to vector<8x1xf32>
    %486 = arith.divf %484, %485 : vector<8x1xf32>
    %487 = vector.broadcast %479 : vector<8x1xf32> to vector<8x32xf32>
    %488 = arith.subf %475, %487 : vector<8x32xf32>
    %cst_132 = arith.constant 9.99999974E-6 : f32
    %489 = vector.broadcast %cst_132 : f32 to vector<8x1xf32>
    %490 = arith.addf %486, %489 : vector<8x1xf32>
    %491 = math.rsqrt %490 : vector<8x1xf32>
    %492 = vector.broadcast %491 : vector<8x1xf32> to vector<8x32xf32>
    %493 = arith.mulf %488, %492 : vector<8x32xf32>
    %494 = vector.broadcast %24 : vector<1x32xf32> to vector<8x32xf32>
    %495 = arith.mulf %493, %494 : vector<8x32xf32>
    %496 = vector.broadcast %25 : vector<1x32xf32> to vector<8x32xf32>
    %497 = arith.addf %495, %496 : vector<8x32xf32>
    %c0_133 = arith.constant 0 : index
    %c1 = arith.constant 1 : index
    %c0_134 = arith.constant 0 : index
    %c0_135 = arith.constant 0 : index
    %498 = vector.load %arg5[%c0_133, %c1, %c0_134, %c0_135] : memref<1x3x8x32xf32, #tpu.memory_space<vmem>>, vector<1x1x8x32xf32>
    %499 = vector.shape_cast %498 : vector<1x1x8x32xf32> to vector<8x32xf32>
    %500 = vector.shape_cast %497 : vector<8x32xf32> to vector<1x1x8x32xf32>
    tpu.vector_store %arg5[%c0_133, %c1, %c0_134, %c0_135], %500 {strides = array<i32>} : memref<1x3x8x32xf32, #tpu.memory_space<vmem>>, vector<1x1x8x32xf32>,
    %cst_136 = arith.constant dense<0.000000e+00> : vector<8x96xf32>
    %501 = tpu.matmul %497, %6, %cst_136 {dimension_numbers = #tpu.dot_dimension_numbers<[1], [0], [0], [1], [0, 0, 1, 1], [], []>} : vector<8x32xf32>, vector<32x96xf32>, vector<8x96xf32> -> vector<8x96xf32>
    %502 = vector.broadcast %13 : vector<1x96xf32> to vector<8x96xf32>
    %503 = arith.addf %501, %502 : vector<8x96xf32>
    %504 = vector.extract_strided_slice %503 {offsets = [0, 0], sizes = [8, 32], strides = [1, 1]} : vector<8x96xf32> to vector<8x32xf32>
    %505 = vector.extract_strided_slice %503 {offsets = [0, 32], sizes = [8, 32], strides = [1, 1]} : vector<8x96xf32> to vector<8x32xf32>
    %506 = vector.extract_strided_slice %503 {offsets = [0, 64], sizes = [8, 32], strides = [1, 1]} : vector<8x96xf32> to vector<8x32xf32>
    %507 = vector.extract_strided_slice %504 {offsets = [0, 0], sizes = [8, 8], strides = [1, 1]} : vector<8x32xf32> to vector<8x8xf32>
    %508 = vector.extract_strided_slice %505 {offsets = [0, 0], sizes = [8, 8], strides = [1, 1]} : vector<8x32xf32> to vector<8x8xf32>
    %cst_137 = arith.constant dense<0.000000e+00> : vector<8x8xf32>
    %509 = tpu.matmul %507, %508, %cst_137 {dimension_numbers = #tpu.dot_dimension_numbers<[1], [1], [0], [0], [0, 0, 1, 0], [], []>} : vector<8x8xf32>, vector<8x8xf32>, vector<8x8xf32> -> vector<8x8xf32>
    %cst_138 = arith.constant dense<0xFF800000> : vector<8xf32>
    %510 = vector.multi_reduction <maximumf>, %509, %cst_138 [1] : vector<8x8xf32> to vector<8xf32>
    %511 = vector.shape_cast %510 : vector<8xf32> to vector<8x1xf32>
    %512 = vector.broadcast %511 : vector<8x1xf32> to vector<8x8xf32>
    %513 = arith.subf %509, %512 : vector<8x8xf32>
    %514 = math.exp %513 : vector<8x8xf32>
    %cst_139 = arith.constant dense<0.000000e+00> : vector<8xf32>
    %515 = vector.multi_reduction <add>, %514, %cst_139 [1] : vector<8x8xf32> to vector<8xf32>
    %516 = vector.shape_cast %515 : vector<8xf32> to vector<8x1xf32>
    %517 = tpu.reciprocal %516 {approx = true} : vector<8x1xf32> -> vector<8x1xf32>
    %518 = vector.broadcast %517 : vector<8x1xf32> to vector<8x8xf32>
    %519 = arith.mulf %514, %518 : vector<8x8xf32>
    %520 = vector.extract_strided_slice %506 {offsets = [0, 0], sizes = [8, 8], strides = [1, 1]} : vector<8x32xf32> to vector<8x8xf32>
    %cst_140 = arith.constant dense<0.000000e+00> : vector<8x8xf32>
    %521 = tpu.matmul %519, %520, %cst_140 {dimension_numbers = #tpu.dot_dimension_numbers<[1], [0], [0], [1], [0, 0, 1, 1], [], []>} : vector<8x8xf32>, vector<8x8xf32>, vector<8x8xf32> -> vector<8x8xf32>
    %522 = vector.extract_strided_slice %7 {offsets = [0, 0], sizes = [8, 32], strides = [1, 1]} : vector<32x32xf32> to vector<8x32xf32>
    %cst_141 = arith.constant dense<0.000000e+00> : vector<8x32xf32>
    %523 = tpu.matmul %521, %522, %cst_141 {dimension_numbers = #tpu.dot_dimension_numbers<[1], [0], [0], [1], [0, 0, 1, 1], [], []>} : vector<8x8xf32>, vector<8x32xf32>, vector<8x32xf32> -> vector<8x32xf32>
    %524 = vector.extract_strided_slice %504 {offsets = [0, 8], sizes = [8, 8], strides = [1, 1]} : vector<8x32xf32> to vector<8x8xf32>
    %525 = vector.extract_strided_slice %505 {offsets = [0, 8], sizes = [8, 8], strides = [1, 1]} : vector<8x32xf32> to vector<8x8xf32>
    %cst_142 = arith.constant dense<0.000000e+00> : vector<8x8xf32>
    %526 = tpu.matmul %524, %525, %cst_142 {dimension_numbers = #tpu.dot_dimension_numbers<[1], [1], [0], [0], [0, 0, 1, 0], [], []>} : vector<8x8xf32>, vector<8x8xf32>, vector<8x8xf32> -> vector<8x8xf32>
    %cst_143 = arith.constant dense<0xFF800000> : vector<8xf32>
    %527 = vector.multi_reduction <maximumf>, %526, %cst_143 [1] : vector<8x8xf32> to vector<8xf32>
    %528 = vector.shape_cast %527 : vector<8xf32> to vector<8x1xf32>
    %529 = vector.broadcast %528 : vector<8x1xf32> to vector<8x8xf32>
    %530 = arith.subf %526, %529 : vector<8x8xf32>
    %531 = math.exp %530 : vector<8x8xf32>
    %cst_144 = arith.constant dense<0.000000e+00> : vector<8xf32>
    %532 = vector.multi_reduction <add>, %531, %cst_144 [1] : vector<8x8xf32> to vector<8xf32>
    %533 = vector.shape_cast %532 : vector<8xf32> to vector<8x1xf32>
    %534 = tpu.reciprocal %533 {approx = true} : vector<8x1xf32> -> vector<8x1xf32>
    %535 = vector.broadcast %534 : vector<8x1xf32> to vector<8x8xf32>
    %536 = arith.mulf %531, %535 : vector<8x8xf32>
    %537 = vector.extract_strided_slice %506 {offsets = [0, 8], sizes = [8, 8], strides = [1, 1]} : vector<8x32xf32> to vector<8x8xf32>
    %cst_145 = arith.constant dense<0.000000e+00> : vector<8x8xf32>
    %538 = tpu.matmul %536, %537, %cst_145 {dimension_numbers = #tpu.dot_dimension_numbers<[1], [0], [0], [1], [0, 0, 1, 1], [], []>} : vector<8x8xf32>, vector<8x8xf32>, vector<8x8xf32> -> vector<8x8xf32>
    %539 = vector.extract_strided_slice %7 {offsets = [8, 0], sizes = [8, 32], strides = [1, 1]} : vector<32x32xf32> to vector<8x32xf32>
    %cst_146 = arith.constant dense<0.000000e+00> : vector<8x32xf32>
    %540 = tpu.matmul %538, %539, %cst_146 {dimension_numbers = #tpu.dot_dimension_numbers<[1], [0], [0], [1], [0, 0, 1, 1], [], []>} : vector<8x8xf32>, vector<8x32xf32>, vector<8x32xf32> -> vector<8x32xf32>
    %541 = arith.addf %523, %540 : vector<8x32xf32>
    %542 = vector.extract_strided_slice %504 {offsets = [0, 16], sizes = [8, 8], strides = [1, 1]} : vector<8x32xf32> to vector<8x8xf32>
    %543 = vector.extract_strided_slice %505 {offsets = [0, 16], sizes = [8, 8], strides = [1, 1]} : vector<8x32xf32> to vector<8x8xf32>
    %cst_147 = arith.constant dense<0.000000e+00> : vector<8x8xf32>
    %544 = tpu.matmul %542, %543, %cst_147 {dimension_numbers = #tpu.dot_dimension_numbers<[1], [1], [0], [0], [0, 0, 1, 0], [], []>} : vector<8x8xf32>, vector<8x8xf32>, vector<8x8xf32> -> vector<8x8xf32>
    %cst_148 = arith.constant dense<0xFF800000> : vector<8xf32>
    %545 = vector.multi_reduction <maximumf>, %544, %cst_148 [1] : vector<8x8xf32> to vector<8xf32>
    %546 = vector.shape_cast %545 : vector<8xf32> to vector<8x1xf32>
    %547 = vector.broadcast %546 : vector<8x1xf32> to vector<8x8xf32>
    %548 = arith.subf %544, %547 : vector<8x8xf32>
    %549 = math.exp %548 : vector<8x8xf32>
    %cst_149 = arith.constant dense<0.000000e+00> : vector<8xf32>
    %550 = vector.multi_reduction <add>, %549, %cst_149 [1] : vector<8x8xf32> to vector<8xf32>
    %551 = vector.shape_cast %550 : vector<8xf32> to vector<8x1xf32>
    %552 = tpu.reciprocal %551 {approx = true} : vector<8x1xf32> -> vector<8x1xf32>
    %553 = vector.broadcast %552 : vector<8x1xf32> to vector<8x8xf32>
    %554 = arith.mulf %549, %553 : vector<8x8xf32>
    %555 = vector.extract_strided_slice %506 {offsets = [0, 16], sizes = [8, 8], strides = [1, 1]} : vector<8x32xf32> to vector<8x8xf32>
    %cst_150 = arith.constant dense<0.000000e+00> : vector<8x8xf32>
    %556 = tpu.matmul %554, %555, %cst_150 {dimension_numbers = #tpu.dot_dimension_numbers<[1], [0], [0], [1], [0, 0, 1, 1], [], []>} : vector<8x8xf32>, vector<8x8xf32>, vector<8x8xf32> -> vector<8x8xf32>
    %557 = vector.extract_strided_slice %7 {offsets = [16, 0], sizes = [8, 32], strides = [1, 1]} : vector<32x32xf32> to vector<8x32xf32>
    %cst_151 = arith.constant dense<0.000000e+00> : vector<8x32xf32>
    %558 = tpu.matmul %556, %557, %cst_151 {dimension_numbers = #tpu.dot_dimension_numbers<[1], [0], [0], [1], [0, 0, 1, 1], [], []>} : vector<8x8xf32>, vector<8x32xf32>, vector<8x32xf32> -> vector<8x32xf32>
    %559 = arith.addf %541, %558 : vector<8x32xf32>
    %560 = vector.extract_strided_slice %504 {offsets = [0, 24], sizes = [8, 8], strides = [1, 1]} : vector<8x32xf32> to vector<8x8xf32>
    %561 = vector.extract_strided_slice %505 {offsets = [0, 24], sizes = [8, 8], strides = [1, 1]} : vector<8x32xf32> to vector<8x8xf32>
    %cst_152 = arith.constant dense<0.000000e+00> : vector<8x8xf32>
    %562 = tpu.matmul %560, %561, %cst_152 {dimension_numbers = #tpu.dot_dimension_numbers<[1], [1], [0], [0], [0, 0, 1, 0], [], []>} : vector<8x8xf32>, vector<8x8xf32>, vector<8x8xf32> -> vector<8x8xf32>
    %cst_153 = arith.constant dense<0xFF800000> : vector<8xf32>
    %563 = vector.multi_reduction <maximumf>, %562, %cst_153 [1] : vector<8x8xf32> to vector<8xf32>
    %564 = vector.shape_cast %563 : vector<8xf32> to vector<8x1xf32>
    %565 = vector.broadcast %564 : vector<8x1xf32> to vector<8x8xf32>
    %566 = arith.subf %562, %565 : vector<8x8xf32>
    %567 = math.exp %566 : vector<8x8xf32>
    %cst_154 = arith.constant dense<0.000000e+00> : vector<8xf32>
    %568 = vector.multi_reduction <add>, %567, %cst_154 [1] : vector<8x8xf32> to vector<8xf32>
    %569 = vector.shape_cast %568 : vector<8xf32> to vector<8x1xf32>
    %570 = tpu.reciprocal %569 {approx = true} : vector<8x1xf32> -> vector<8x1xf32>
    %571 = vector.broadcast %570 : vector<8x1xf32> to vector<8x8xf32>
    %572 = arith.mulf %567, %571 : vector<8x8xf32>
    %573 = vector.extract_strided_slice %506 {offsets = [0, 24], sizes = [8, 8], strides = [1, 1]} : vector<8x32xf32> to vector<8x8xf32>
    %cst_155 = arith.constant dense<0.000000e+00> : vector<8x8xf32>
    %574 = tpu.matmul %572, %573, %cst_155 {dimension_numbers = #tpu.dot_dimension_numbers<[1], [0], [0], [1], [0, 0, 1, 1], [], []>} : vector<8x8xf32>, vector<8x8xf32>, vector<8x8xf32> -> vector<8x8xf32>
    %575 = vector.extract_strided_slice %7 {offsets = [24, 0], sizes = [8, 32], strides = [1, 1]} : vector<32x32xf32> to vector<8x32xf32>
    %cst_156 = arith.constant dense<0.000000e+00> : vector<8x32xf32>
    %576 = tpu.matmul %574, %575, %cst_156 {dimension_numbers = #tpu.dot_dimension_numbers<[1], [0], [0], [1], [0, 0, 1, 1], [], []>} : vector<8x8xf32>, vector<8x32xf32>, vector<8x32xf32> -> vector<8x32xf32>
    %577 = arith.addf %559, %576 : vector<8x32xf32>
    %578 = vector.broadcast %14 : vector<1x32xf32> to vector<8x32xf32>
    %579 = arith.addf %577, %578 : vector<8x32xf32>
    %580 = arith.addf %497, %579 : vector<8x32xf32>
    %cst_157 = arith.constant dense<0.000000e+00> : vector<8xf32>
    %581 = vector.multi_reduction <add>, %580, %cst_157 [1] : vector<8x32xf32> to vector<8xf32>
    %582 = vector.shape_cast %581 : vector<8xf32> to vector<8x1xf32>
    %cst_158 = arith.constant 3.200000e+01 : f32
    %583 = vector.broadcast %cst_158 : f32 to vector<8x1xf32>
    %584 = arith.divf %582, %583 : vector<8x1xf32>
    %585 = vector.broadcast %584 : vector<8x1xf32> to vector<8x32xf32>
    %586 = arith.subf %580, %585 : vector<8x32xf32>
    %587 = arith.mulf %586, %586 : vector<8x32xf32>
    %cst_159 = arith.constant dense<0.000000e+00> : vector<8xf32>
    %588 = vector.multi_reduction <add>, %587, %cst_159 [1] : vector<8x32xf32> to vector<8xf32>
    %589 = vector.shape_cast %588 : vector<8xf32> to vector<8x1xf32>
    %cst_160 = arith.constant 3.200000e+01 : f32
    %590 = vector.broadcast %cst_160 : f32 to vector<8x1xf32>
    %591 = arith.divf %589, %590 : vector<8x1xf32>
    %592 = vector.broadcast %584 : vector<8x1xf32> to vector<8x32xf32>
    %593 = arith.subf %580, %592 : vector<8x32xf32>
    %cst_161 = arith.constant 9.99999974E-6 : f32
    %594 = vector.broadcast %cst_161 : f32 to vector<8x1xf32>
    %595 = arith.addf %591, %594 : vector<8x1xf32>
    %596 = math.rsqrt %595 : vector<8x1xf32>
    %597 = vector.broadcast %596 : vector<8x1xf32> to vector<8x32xf32>
    %598 = arith.mulf %593, %597 : vector<8x32xf32>
    %599 = vector.broadcast %20 : vector<1x32xf32> to vector<8x32xf32>
    %600 = arith.mulf %598, %599 : vector<8x32xf32>
    %601 = vector.broadcast %21 : vector<1x32xf32> to vector<8x32xf32>
    %602 = arith.addf %600, %601 : vector<8x32xf32>
    %cst_162 = arith.constant dense<0.000000e+00> : vector<8x32xf32>
    %603 = tpu.matmul %602, %8, %cst_162 {dimension_numbers = #tpu.dot_dimension_numbers<[1], [0], [0], [1], [0, 0, 1, 1], [], []>} : vector<8x32xf32>, vector<32x32xf32>, vector<8x32xf32> -> vector<8x32xf32>
    %604 = vector.broadcast %15 : vector<1x32xf32> to vector<8x32xf32>
    %605 = arith.addf %603, %604 : vector<8x32xf32>
    %606 = vector.extract_strided_slice %605 {offsets = [0, 0], sizes = [8, 8], strides = [1, 1]} : vector<8x32xf32> to vector<8x8xf32>
    %607 = vector.extract_strided_slice %29 {offsets = [0, 0], sizes = [64, 8], strides = [1, 1]} : vector<64x32xf32> to vector<64x8xf32>
    %cst_163 = arith.constant dense<0.000000e+00> : vector<8x64xf32>
    %608 = tpu.matmul %606, %607, %cst_163 {dimension_numbers = #tpu.dot_dimension_numbers<[1], [1], [0], [0], [0, 0, 1, 0], [], []>} : vector<8x8xf32>, vector<64x8xf32>, vector<8x64xf32> -> vector<8x64xf32>
    %cst_164 = arith.constant dense<0xFF800000> : vector<8xf32>
    %609 = vector.multi_reduction <maximumf>, %608, %cst_164 [1] : vector<8x64xf32> to vector<8xf32>
    %610 = vector.shape_cast %609 : vector<8xf32> to vector<8x1xf32>
    %611 = vector.broadcast %610 : vector<8x1xf32> to vector<8x64xf32>
    %612 = arith.subf %608, %611 : vector<8x64xf32>
    %613 = math.exp %612 : vector<8x64xf32>
    %cst_165 = arith.constant dense<0.000000e+00> : vector<8xf32>
    %614 = vector.multi_reduction <add>, %613, %cst_165 [1] : vector<8x64xf32> to vector<8xf32>
    %615 = vector.shape_cast %614 : vector<8xf32> to vector<8x1xf32>
    %616 = tpu.reciprocal %615 {approx = true} : vector<8x1xf32> -> vector<8x1xf32>
    %617 = vector.broadcast %616 : vector<8x1xf32> to vector<8x64xf32>
    %618 = arith.mulf %613, %617 : vector<8x64xf32>
    %619 = vector.extract_strided_slice %30 {offsets = [0, 0], sizes = [64, 8], strides = [1, 1]} : vector<64x32xf32> to vector<64x8xf32>
    %cst_166 = arith.constant dense<0.000000e+00> : vector<8x8xf32>
    %620 = tpu.matmul %618, %619, %cst_166 {dimension_numbers = #tpu.dot_dimension_numbers<[1], [0], [0], [1], [0, 0, 1, 1], [], []>} : vector<8x64xf32>, vector<64x8xf32>, vector<8x8xf32> -> vector<8x8xf32>
    %621 = vector.extract_strided_slice %10 {offsets = [0, 0], sizes = [8, 32], strides = [1, 1]} : vector<32x32xf32> to vector<8x32xf32>
    %cst_167 = arith.constant dense<0.000000e+00> : vector<8x32xf32>
    %622 = tpu.matmul %620, %621, %cst_167 {dimension_numbers = #tpu.dot_dimension_numbers<[1], [0], [0], [1], [0, 0, 1, 1], [], []>} : vector<8x8xf32>, vector<8x32xf32>, vector<8x32xf32> -> vector<8x32xf32>
    %623 = vector.extract_strided_slice %605 {offsets = [0, 8], sizes = [8, 8], strides = [1, 1]} : vector<8x32xf32> to vector<8x8xf32>
    %624 = vector.extract_strided_slice %29 {offsets = [0, 8], sizes = [64, 8], strides = [1, 1]} : vector<64x32xf32> to vector<64x8xf32>
    %cst_168 = arith.constant dense<0.000000e+00> : vector<8x64xf32>
    %625 = tpu.matmul %623, %624, %cst_168 {dimension_numbers = #tpu.dot_dimension_numbers<[1], [1], [0], [0], [0, 0, 1, 0], [], []>} : vector<8x8xf32>, vector<64x8xf32>, vector<8x64xf32> -> vector<8x64xf32>
    %cst_169 = arith.constant dense<0xFF800000> : vector<8xf32>
    %626 = vector.multi_reduction <maximumf>, %625, %cst_169 [1] : vector<8x64xf32> to vector<8xf32>
    %627 = vector.shape_cast %626 : vector<8xf32> to vector<8x1xf32>
    %628 = vector.broadcast %627 : vector<8x1xf32> to vector<8x64xf32>
    %629 = arith.subf %625, %628 : vector<8x64xf32>
    %630 = math.exp %629 : vector<8x64xf32>
    %cst_170 = arith.constant dense<0.000000e+00> : vector<8xf32>
    %631 = vector.multi_reduction <add>, %630, %cst_170 [1] : vector<8x64xf32> to vector<8xf32>
    %632 = vector.shape_cast %631 : vector<8xf32> to vector<8x1xf32>
    %633 = tpu.reciprocal %632 {approx = true} : vector<8x1xf32> -> vector<8x1xf32>
    %634 = vector.broadcast %633 : vector<8x1xf32> to vector<8x64xf32>
    %635 = arith.mulf %630, %634 : vector<8x64xf32>
    %636 = vector.extract_strided_slice %30 {offsets = [0, 8], sizes = [64, 8], strides = [1, 1]} : vector<64x32xf32> to vector<64x8xf32>
    %cst_171 = arith.constant dense<0.000000e+00> : vector<8x8xf32>
    %637 = tpu.matmul %635, %636, %cst_171 {dimension_numbers = #tpu.dot_dimension_numbers<[1], [0], [0], [1], [0, 0, 1, 1], [], []>} : vector<8x64xf32>, vector<64x8xf32>, vector<8x8xf32> -> vector<8x8xf32>
    %638 = vector.extract_strided_slice %10 {offsets = [8, 0], sizes = [8, 32], strides = [1, 1]} : vector<32x32xf32> to vector<8x32xf32>
    %cst_172 = arith.constant dense<0.000000e+00> : vector<8x32xf32>
    %639 = tpu.matmul %637, %638, %cst_172 {dimension_numbers = #tpu.dot_dimension_numbers<[1], [0], [0], [1], [0, 0, 1, 1], [], []>} : vector<8x8xf32>, vector<8x32xf32>, vector<8x32xf32> -> vector<8x32xf32>
    %640 = arith.addf %622, %639 : vector<8x32xf32>
    %641 = vector.extract_strided_slice %605 {offsets = [0, 16], sizes = [8, 8], strides = [1, 1]} : vector<8x32xf32> to vector<8x8xf32>
    %642 = vector.extract_strided_slice %29 {offsets = [0, 16], sizes = [64, 8], strides = [1, 1]} : vector<64x32xf32> to vector<64x8xf32>
    %cst_173 = arith.constant dense<0.000000e+00> : vector<8x64xf32>
    %643 = tpu.matmul %641, %642, %cst_173 {dimension_numbers = #tpu.dot_dimension_numbers<[1], [1], [0], [0], [0, 0, 1, 0], [], []>} : vector<8x8xf32>, vector<64x8xf32>, vector<8x64xf32> -> vector<8x64xf32>
    %cst_174 = arith.constant dense<0xFF800000> : vector<8xf32>
    %644 = vector.multi_reduction <maximumf>, %643, %cst_174 [1] : vector<8x64xf32> to vector<8xf32>
    %645 = vector.shape_cast %644 : vector<8xf32> to vector<8x1xf32>
    %646 = vector.broadcast %645 : vector<8x1xf32> to vector<8x64xf32>
    %647 = arith.subf %643, %646 : vector<8x64xf32>
    %648 = math.exp %647 : vector<8x64xf32>
    %cst_175 = arith.constant dense<0.000000e+00> : vector<8xf32>
    %649 = vector.multi_reduction <add>, %648, %cst_175 [1] : vector<8x64xf32> to vector<8xf32>
    %650 = vector.shape_cast %649 : vector<8xf32> to vector<8x1xf32>
    %651 = tpu.reciprocal %650 {approx = true} : vector<8x1xf32> -> vector<8x1xf32>
    %652 = vector.broadcast %651 : vector<8x1xf32> to vector<8x64xf32>
    %653 = arith.mulf %648, %652 : vector<8x64xf32>
    %654 = vector.extract_strided_slice %30 {offsets = [0, 16], sizes = [64, 8], strides = [1, 1]} : vector<64x32xf32> to vector<64x8xf32>
    %cst_176 = arith.constant dense<0.000000e+00> : vector<8x8xf32>
    %655 = tpu.matmul %653, %654, %cst_176 {dimension_numbers = #tpu.dot_dimension_numbers<[1], [0], [0], [1], [0, 0, 1, 1], [], []>} : vector<8x64xf32>, vector<64x8xf32>, vector<8x8xf32> -> vector<8x8xf32>
    %656 = vector.extract_strided_slice %10 {offsets = [16, 0], sizes = [8, 32], strides = [1, 1]} : vector<32x32xf32> to vector<8x32xf32>
    %cst_177 = arith.constant dense<0.000000e+00> : vector<8x32xf32>
    %657 = tpu.matmul %655, %656, %cst_177 {dimension_numbers = #tpu.dot_dimension_numbers<[1], [0], [0], [1], [0, 0, 1, 1], [], []>} : vector<8x8xf32>, vector<8x32xf32>, vector<8x32xf32> -> vector<8x32xf32>
    %658 = arith.addf %640, %657 : vector<8x32xf32>
    %659 = vector.extract_strided_slice %605 {offsets = [0, 24], sizes = [8, 8], strides = [1, 1]} : vector<8x32xf32> to vector<8x8xf32>
    %660 = vector.extract_strided_slice %29 {offsets = [0, 24], sizes = [64, 8], strides = [1, 1]} : vector<64x32xf32> to vector<64x8xf32>
    %cst_178 = arith.constant dense<0.000000e+00> : vector<8x64xf32>
    %661 = tpu.matmul %659, %660, %cst_178 {dimension_numbers = #tpu.dot_dimension_numbers<[1], [1], [0], [0], [0, 0, 1, 0], [], []>} : vector<8x8xf32>, vector<64x8xf32>, vector<8x64xf32> -> vector<8x64xf32>
    %cst_179 = arith.constant dense<0xFF800000> : vector<8xf32>
    %662 = vector.multi_reduction <maximumf>, %661, %cst_179 [1] : vector<8x64xf32> to vector<8xf32>
    %663 = vector.shape_cast %662 : vector<8xf32> to vector<8x1xf32>
    %664 = vector.broadcast %663 : vector<8x1xf32> to vector<8x64xf32>
    %665 = arith.subf %661, %664 : vector<8x64xf32>
    %666 = math.exp %665 : vector<8x64xf32>
    %cst_180 = arith.constant dense<0.000000e+00> : vector<8xf32>
    %667 = vector.multi_reduction <add>, %666, %cst_180 [1] : vector<8x64xf32> to vector<8xf32>
    %668 = vector.shape_cast %667 : vector<8xf32> to vector<8x1xf32>
    %669 = tpu.reciprocal %668 {approx = true} : vector<8x1xf32> -> vector<8x1xf32>
    %670 = vector.broadcast %669 : vector<8x1xf32> to vector<8x64xf32>
    %671 = arith.mulf %666, %670 : vector<8x64xf32>
    %672 = vector.extract_strided_slice %30 {offsets = [0, 24], sizes = [64, 8], strides = [1, 1]} : vector<64x32xf32> to vector<64x8xf32>
    %cst_181 = arith.constant dense<0.000000e+00> : vector<8x8xf32>
    %673 = tpu.matmul %671, %672, %cst_181 {dimension_numbers = #tpu.dot_dimension_numbers<[1], [0], [0], [1], [0, 0, 1, 1], [], []>} : vector<8x64xf32>, vector<64x8xf32>, vector<8x8xf32> -> vector<8x8xf32>
    %674 = vector.extract_strided_slice %10 {offsets = [24, 0], sizes = [8, 32], strides = [1, 1]} : vector<32x32xf32> to vector<8x32xf32>
    %cst_182 = arith.constant dense<0.000000e+00> : vector<8x32xf32>
    %675 = tpu.matmul %673, %674, %cst_182 {dimension_numbers = #tpu.dot_dimension_numbers<[1], [0], [0], [1], [0, 0, 1, 1], [], []>} : vector<8x8xf32>, vector<8x32xf32>, vector<8x32xf32> -> vector<8x32xf32>
    %676 = arith.addf %658, %675 : vector<8x32xf32>
    %677 = vector.broadcast %17 : vector<1x32xf32> to vector<8x32xf32>
    %678 = arith.addf %676, %677 : vector<8x32xf32>
    %679 = arith.addf %602, %678 : vector<8x32xf32>
    %cst_183 = arith.constant dense<0.000000e+00> : vector<8xf32>
    %680 = vector.multi_reduction <add>, %679, %cst_183 [1] : vector<8x32xf32> to vector<8xf32>
    %681 = vector.shape_cast %680 : vector<8xf32> to vector<8x1xf32>
    %cst_184 = arith.constant 3.200000e+01 : f32
    %682 = vector.broadcast %cst_184 : f32 to vector<8x1xf32>
    %683 = arith.divf %681, %682 : vector<8x1xf32>
    %684 = vector.broadcast %683 : vector<8x1xf32> to vector<8x32xf32>
    %685 = arith.subf %679, %684 : vector<8x32xf32>
    %686 = arith.mulf %685, %685 : vector<8x32xf32>
    %cst_185 = arith.constant dense<0.000000e+00> : vector<8xf32>
    %687 = vector.multi_reduction <add>, %686, %cst_185 [1] : vector<8x32xf32> to vector<8xf32>
    %688 = vector.shape_cast %687 : vector<8xf32> to vector<8x1xf32>
    %cst_186 = arith.constant 3.200000e+01 : f32
    %689 = vector.broadcast %cst_186 : f32 to vector<8x1xf32>
    %690 = arith.divf %688, %689 : vector<8x1xf32>
    %691 = vector.broadcast %683 : vector<8x1xf32> to vector<8x32xf32>
    %692 = arith.subf %679, %691 : vector<8x32xf32>
    %cst_187 = arith.constant 9.99999974E-6 : f32
    %693 = vector.broadcast %cst_187 : f32 to vector<8x1xf32>
    %694 = arith.addf %690, %693 : vector<8x1xf32>
    %695 = math.rsqrt %694 : vector<8x1xf32>
    %696 = vector.broadcast %695 : vector<8x1xf32> to vector<8x32xf32>
    %697 = arith.mulf %692, %696 : vector<8x32xf32>
    %698 = vector.broadcast %22 : vector<1x32xf32> to vector<8x32xf32>
    %699 = arith.mulf %697, %698 : vector<8x32xf32>
    %700 = vector.broadcast %23 : vector<1x32xf32> to vector<8x32xf32>
    %701 = arith.addf %699, %700 : vector<8x32xf32>
    %cst_188 = arith.constant dense<0.000000e+00> : vector<8x64xf32>
    %702 = tpu.matmul %701, %11, %cst_188 {dimension_numbers = #tpu.dot_dimension_numbers<[1], [0], [0], [1], [0, 0, 1, 1], [], []>} : vector<8x32xf32>, vector<32x64xf32>, vector<8x64xf32> -> vector<8x64xf32>
    %703 = vector.broadcast %18 : vector<1x64xf32> to vector<8x64xf32>
    %704 = arith.addf %702, %703 : vector<8x64xf32>
    %cst_189 = arith.constant 0.000000e+00 : f32
    %705 = vector.broadcast %cst_189 : f32 to vector<8x64xf32>
    %706 = arith.maximumf %704, %705 : vector<8x64xf32>
    %cst_190 = arith.constant dense<0.000000e+00> : vector<8x32xf32>
    %707 = tpu.matmul %706, %12, %cst_190 {dimension_numbers = #tpu.dot_dimension_numbers<[1], [1], [0], [0], [0, 0, 1, 0], [], []>} : vector<8x64xf32>, vector<32x64xf32>, vector<8x32xf32> -> vector<8x32xf32>
    %708 = vector.broadcast %19 : vector<1x32xf32> to vector<8x32xf32>
    %709 = arith.addf %707, %708 : vector<8x32xf32>
    %710 = arith.addf %701, %709 : vector<8x32xf32>
    %cst_191 = arith.constant dense<0.000000e+00> : vector<8xf32>
    %711 = vector.multi_reduction <add>, %710, %cst_191 [1] : vector<8x32xf32> to vector<8xf32>
    %712 = vector.shape_cast %711 : vector<8xf32> to vector<8x1xf32>
    %cst_192 = arith.constant 3.200000e+01 : f32
    %713 = vector.broadcast %cst_192 : f32 to vector<8x1xf32>
    %714 = arith.divf %712, %713 : vector<8x1xf32>
    %715 = vector.broadcast %714 : vector<8x1xf32> to vector<8x32xf32>
    %716 = arith.subf %710, %715 : vector<8x32xf32>
    %717 = arith.mulf %716, %716 : vector<8x32xf32>
    %cst_193 = arith.constant dense<0.000000e+00> : vector<8xf32>
    %718 = vector.multi_reduction <add>, %717, %cst_193 [1] : vector<8x32xf32> to vector<8xf32>
    %719 = vector.shape_cast %718 : vector<8xf32> to vector<8x1xf32>
    %cst_194 = arith.constant 3.200000e+01 : f32
    %720 = vector.broadcast %cst_194 : f32 to vector<8x1xf32>
    %721 = arith.divf %719, %720 : vector<8x1xf32>
    %722 = vector.broadcast %714 : vector<8x1xf32> to vector<8x32xf32>
    %723 = arith.subf %710, %722 : vector<8x32xf32>
    %cst_195 = arith.constant 9.99999974E-6 : f32
    %724 = vector.broadcast %cst_195 : f32 to vector<8x1xf32>
    %725 = arith.addf %721, %724 : vector<8x1xf32>
    %726 = math.rsqrt %725 : vector<8x1xf32>
    %727 = vector.broadcast %726 : vector<8x1xf32> to vector<8x32xf32>
    %728 = arith.mulf %723, %727 : vector<8x32xf32>
    %729 = vector.broadcast %24 : vector<1x32xf32> to vector<8x32xf32>
    %730 = arith.mulf %728, %729 : vector<8x32xf32>
    %731 = vector.broadcast %25 : vector<1x32xf32> to vector<8x32xf32>
    %732 = arith.addf %730, %731 : vector<8x32xf32>
    %c0_196 = arith.constant 0 : index
    %c2 = arith.constant 2 : index
    %c0_197 = arith.constant 0 : index
    %c0_198 = arith.constant 0 : index
    %733 = vector.load %arg5[%c0_196, %c2, %c0_197, %c0_198] : memref<1x3x8x32xf32, #tpu.memory_space<vmem>>, vector<1x1x8x32xf32>
    %734 = vector.shape_cast %733 : vector<1x1x8x32xf32> to vector<8x32xf32>
    %735 = vector.shape_cast %732 : vector<8x32xf32> to vector<1x1x8x32xf32>
    tpu.vector_store %arg5[%c0_196, %c2, %c0_197, %c0_198], %735 {strides = array<i32>} : memref<1x3x8x32xf32, #tpu.memory_space<vmem>>, vector<1x1x8x32xf32>,
    return
  }
  func.func @transform_0(%arg0: i32) -> (i32, i32, i32) {
    %c0_i32 = arith.constant 0 : i32
    %c0_i32_0 = arith.constant 0 : i32
    %c0_i32_1 = arith.constant 0 : i32
    return %arg0, %c0_i32, %c0_i32_0 : i32, i32, i32
  }
  func.func @transform_1(%arg0: i32) -> (i32, i32, i32) {
    %c0_i32 = arith.constant 0 : i32
    %c0_i32_0 = arith.constant 0 : i32
    %c0_i32_1 = arith.constant 0 : i32
    return %arg0, %c0_i32, %c0_i32_0 : i32, i32, i32
  }
  func.func @transform_2(%arg0: i32) -> (i32, i32) {
    %c0_i32 = arith.constant 0 : i32
    %c0_i32_0 = arith.constant 0 : i32
    %c0_i32_1 = arith.constant 0 : i32
    return %c0_i32, %c0_i32_0 : i32, i32
  }
  func.func @transform_3(%arg0: i32) -> (i32, i32) {
    %c0_i32 = arith.constant 0 : i32
    %c0_i32_0 = arith.constant 0 : i32
    %c0_i32_1 = arith.constant 0 : i32
    return %c0_i32, %c0_i32_0 : i32, i32
  }
  func.func @transform_4(%arg0: i32) -> (i32, i32, i32, i32) {
    %c0_i32 = arith.constant 0 : i32
    %c0_i32_0 = arith.constant 0 : i32
    %c0_i32_1 = arith.constant 0 : i32
    %c0_i32_2 = arith.constant 0 : i32
    return %arg0, %c0_i32, %c0_i32_0, %c0_i32_1 : i32, i32, i32, i32
  }
}

</mosaic_0001>

<llo_original>
// kernel: tpu_custom_call.1
$region0: #{tpu_custom_call.1}
  #allocation0 [shape = 'u32[]', space=smem, size = 0x4, offset = 0x4, fixed_abs, tag = 'smem constant byte address 0x4 - core index']
  #allocation1 [shape = 'u32[72,128]{1,0:T(1,128)}', space=vmem, size = 0x9000, scoped, tag = 'internal scratch']
  %s0 = inlined_call_operand.vmem [shape: f32[2,8,32], index: 0, kind: input, shape index: {}]
  %s1 = inlined_call_operand.vmem [shape: f32[2,64,32], index: 1, kind: input, shape index: {}]
  %s2 = inlined_call_operand.vmem [shape: f32[32,384], index: 2, kind: input, shape index: {}]
  %s3 = inlined_call_operand.vmem [shape: f32[13,96], index: 3, kind: input, shape index: {}]
  %s4 = inlined_call_operand.hbm [shape: f32[2,3,8,32], index: 4, kind: output, shape index: {}]
  %s5 = sld [smem:[#allocation0]]
  $region49: #{tpu_custom_call.1} parent=0
    _
  %s7 = ssub.s32 1, %s5
  %s8 = scalar_select 0, %s7, %s5
  $region1: #{tpu_custom_call.1} parent=0
    #allocation2 [shape = 'u8[24576]{0}', space=vmem, size = 0x6000, scoped, tag = 'output window, operand 0']
    #allocation3 [shape = 's32[2]{0}', space=sflag, size = 0x8, scoped, tag = 'scoped memory for tpu_custom_call.1']
    %9 = vsyncpa [#allocation3], 0
    %s10 = scalar_lea.sflag [#allocation3], 1
    %11 = vsyncpa %s10, 0
    loop: start=0, step=1, limit=4
    $region2: #{tpu_custom_call.1} parent=1 // loop_pre_header
      _
    $region3: #{tpu_custom_call.1} parent=1 // loop_header
      %s13 = sphi 0, %s17
      %p14 = scmp.ge.s32.totalorder %s13, 4
      %s23 = sphi 0, %s25
      %s26 = sphi 0, %s23
      %s27 = sphi 0, %s26
      %s43 = sphi 0, %s27
      %s49 = sphi 0, %s51
      %s52 = sphi 0, %s49
      %s53 = sphi 0, %s52
      %s69 = sphi 0, %s53
      %s73 = sphi 0, %s73
      %s75 = sphi 0, %s73
      %s76 = sphi 0, %s75
      %s90 = sphi 0, %s76
      %s94 = sphi 0, %s94
      %s96 = sphi 0, %s94
      %s97 = sphi 0, %s96
      %s111 = sphi 0, %s97
      %s117 = sphi 0, %s119
      %s120 = sphi 0, %s117
      %s121 = sphi 0, %s120
      %s137 = sphi 0, %s121
    $region4: #{tpu_custom_call.1} parent=1 // loop_header_branch
      %16 = sbr.rel (%p14) target = $region8
    $region5: #{tpu_custom_call.1} parent=1 // loop_body
      %s18 = ssub.s32 %s13, 1
      %s19 = ssub.s32 %s13, 2
      %s20 = sadd.s32 %s13, 1
      %s21 = ssub.s32 %s13, %s20
      %p22 = scmp.eq.s32.totalorder %s21, 0
      %s24 = sadd.s32 %s23, 1
      %s25 = scalar_select %p22, %s23, %s24
      %p28 = pneg %p22
      %p29 = scmp.eq.s32.totalorder %s13, 1
      %p30 = por %p28, %p29
      %p31 = scmp.ne.s32.totalorder %s23, %s26
      %p32 = scmp.eq.s32.totalorder %s13, 0
      %p33 = por %p31, %p32
      %p34 = scmp.ne.s32.totalorder %s23, %s26
      %p35 = scmp.eq.s32.totalorder %s18, 1
      %p36 = por %p34, %p35
      %p37 = scmp.ne.s32.totalorder %s26, %s27
      %p38 = scmp.eq.s32.totalorder %s18, 0
      %p39 = por %p37, %p38
      %p40 = scmp.ne.s32.totalorder %s26, %s27
      %p41 = scmp.eq.s32.totalorder %s19, 1
      %p42 = por %p40, %p41
      %p44 = scmp.ne.s32.totalorder %s27, %s43
      %p45 = scmp.eq.s32.totalorder %s19, 0
      %p46 = por %p44, %p45
      %s47 = ssub.s32 %s13, %s20
      %p48 = scmp.eq.s32.totalorder %s47, 0
      %s50 = sadd.s32 %s49, 1
      %s51 = scalar_select %p48, %s49, %s50
      %p54 = pneg %p48
      %p55 = scmp.eq.s32.totalorder %s13, 1
      %p56 = por %p54, %p55
      %p57 = scmp.ne.s32.totalorder %s49, %s52
      %p58 = scmp.eq.s32.totalorder %s13, 0
      %p59 = por %p57, %p58
      %p60 = scmp.ne.s32.totalorder %s49, %s52
      %p61 = scmp.eq.s32.totalorder %s18, 1
      %p62 = por %p60, %p61
      %p63 = scmp.ne.s32.totalorder %s52, %s53
      %p64 = scmp.eq.s32.totalorder %s18, 0
      %p65 = por %p63, %p64
      %p66 = scmp.ne.s32.totalorder %s52, %s53
      %p67 = scmp.eq.s32.totalorder %s19, 1
      %p68 = por %p66, %p67
      %p70 = scmp.ne.s32.totalorder %s53, %s69
      %p71 = scmp.eq.s32.totalorder %s19, 0
      %p72 = por %p70, %p71
      %s74 = sadd.s32 %s73, 1
      %p77 = scmp.eq.s32.totalorder %s13, 1
      %p78 = scmp.ne.s32.totalorder %s73, %s75
      %p79 = scmp.eq.s32.totalorder %s13, 0
      %p80 = por %p78, %p79
      %p81 = scmp.ne.s32.totalorder %s73, %s75
      %p82 = scmp.eq.s32.totalorder %s18, 1
      %p83 = por %p81, %p82
      %p84 = scmp.ne.s32.totalorder %s75, %s76
      %p85 = scmp.eq.s32.totalorder %s18, 0
      %p86 = por %p84, %p85
      %p87 = scmp.ne.s32.totalorder %s75, %s76
      %p88 = scmp.eq.s32.totalorder %s19, 1
      %p89 = por %p87, %p88
      %p91 = scmp.ne.s32.totalorder %s76, %s90
      %p92 = scmp.eq.s32.totalorder %s19, 0
      %p93 = por %p91, %p92
      %s95 = sadd.s32 %s94, 1
      %p98 = scmp.eq.s32.totalorder %s13, 1
      %p99 = scmp.ne.s32.totalorder %s94, %s96
      %p100 = scmp.eq.s32.totalorder %s13, 0
      %p101 = por %p99, %p100
      %p102 = scmp.ne.s32.totalorder %s94, %s96
      %p103 = scmp.eq.s32.totalorder %s18, 1
      %p104 = por %p102, %p103
      %p105 = scmp.ne.s32.totalorder %s96, %s97
      %p106 = scmp.eq.s32.totalorder %s18, 0
      %p107 = por %p105, %p106
      %p108 = scmp.ne.s32.totalorder %s96, %s97
      %p109 = scmp.eq.s32.totalorder %s19, 1
      %p110 = por %p108, %p109
      %p112 = scmp.ne.s32.totalorder %s97, %s111
      %p113 = scmp.eq.s32.totalorder %s19, 0
      %p114 = por %p112, %p113
      %s115 = ssub.s32 %s13, %s20
      %p116 = scmp.eq.s32.totalorder %s115, 0
      %s118 = sadd.s32 %s117, 1
      %s119 = scalar_select %p116, %s117, %s118
      %p122 = pneg %p116
      %p123 = scmp.eq.s32.totalorder %s13, 1
      %p124 = por %p122, %p123
      %p125 = scmp.ne.s32.totalorder %s117, %s120
      %p126 = scmp.eq.s32.totalorder %s13, 0
      %p127 = por %p125, %p126
      %p128 = scmp.ne.s32.totalorder %s117, %s120
      %p129 = scmp.eq.s32.totalorder %s18, 1
      %p130 = por %p128, %p129
      %p131 = scmp.ne.s32.totalorder %s120, %s121
      %p132 = scmp.eq.s32.totalorder %s18, 0
      %p133 = por %p131, %p132
      %p134 = scmp.ne.s32.totalorder %s120, %s121
      %p135 = scmp.eq.s32.totalorder %s19, 1
      %p136 = por %p134, %p135
      %p138 = scmp.ne.s32.totalorder %s121, %s137
      %p139 = scmp.eq.s32.totalorder %s19, 0
      %p140 = por %p138, %p139
      %p141 = scmp.le.s32.totalorder 1, %s13
      %p142 = scmp.lt.s32.totalorder %s13, 3
      %p143 = pnand %p141, %p142
      %p144 = pneg %p143
      // Predicated region
      $region9: #{tpu_custom_call.1} parent=5 // pred_check
        _
      $region10: #{tpu_custom_call.1} parent=5 // pred_check_branch
        %146 = sbr.rel (%p143) target = $region12
      $region11: #{tpu_custom_call.1} parent=5 // pred_region
        %s147 = ssub.s32 %s13, 1
        // Predicated region
        $region13: #{tpu_custom_call.1} parent=11 // pred_check
          %p148 = pneg %p86
        $region14: #{tpu_custom_call.1} parent=11 // pred_check_branch
          %150 = sbr.rel (%p148) target = $region16
        $region15: #{tpu_custom_call.1} parent=11 // pred_region
          _
        $region16: #{tpu_custom_call.1} parent=11 // pred_fallthru
          _
        // Predicated region
        $region17: #{tpu_custom_call.1} parent=11 // pred_check
          %p151 = pneg %p107
        $region18: #{tpu_custom_call.1} parent=11 // pred_check_branch
          %153 = sbr.rel (%p151) target = $region20
        $region19: #{tpu_custom_call.1} parent=11 // pred_region
          _
        $region20: #{tpu_custom_call.1} parent=11 // pred_fallthru
          _
      $region12: #{tpu_custom_call.1} parent=5 // pred_fallthru
        _
      %p154 = scmp.lt.s32.totalorder %s13, 2
      // Predicated region
      $region21: #{tpu_custom_call.1} parent=5 // pred_check
        %p155 = pneg %p154
      $region22: #{tpu_custom_call.1} parent=5 // pred_check_branch
        %157 = sbr.rel (%p155) target = $region24
      $region23: #{tpu_custom_call.1} parent=5 // pred_region
        // Predicated region
        $region25: #{tpu_custom_call.1} parent=23 // pred_check
          %p158 = pneg %p33
        $region26: #{tpu_custom_call.1} parent=23 // pred_check_branch
          %160 = sbr.rel (%p158) target = $region28
        $region27: #{tpu_custom_call.1} parent=23 // pred_region
          %p161 = scmp.lt.s32.totalorder %s13, 1
          %s162 = scalar_select %p161, %s13, 1
          %s163 = smul.addr %s162, 8
          %s164 = scalar_lea.vmem %s0, %s163
        $region28: #{tpu_custom_call.1} parent=23 // pred_fallthru
          _
        // Predicated region
        $region29: #{tpu_custom_call.1} parent=23 // pred_check
          %p165 = pneg %p59
        $region30: #{tpu_custom_call.1} parent=23 // pred_check_branch
          %167 = sbr.rel (%p165) target = $region32
        $region31: #{tpu_custom_call.1} parent=23 // pred_region
          %p168 = scmp.lt.s32.totalorder %s13, 1
          %s169 = scalar_select %p168, %s13, 1
          %s170 = smul.addr %s169, 8
          %s171 = smul.addr %s170, 8
          %s172 = scalar_lea.vmem %s1, %s171
        $region32: #{tpu_custom_call.1} parent=23 // pred_fallthru
          _
      $region24: #{tpu_custom_call.1} parent=5 // pred_fallthru
        _
      %p173 = scmp.le.s32.totalorder 1, %s13
      %p174 = scmp.lt.s32.totalorder %s13, 3
      %p175 = pnand %p173, %p174
      %p176 = pneg %p175
      // Predicated region
      $region33: #{tpu_custom_call.1} parent=5 // pred_check
        _
      $region34: #{tpu_custom_call.1} parent=5 // pred_check_branch
        %178 = sbr.rel (%p175) target = $region36
      $region35: #{tpu_custom_call.1} parent=5 // pred_region
        %s179 = ssub.s32 %s13, 1
        %p180 = scmp.lt.s32.totalorder %s18, 1
        %s181 = scalar_select %p180, %s18, 1
        %s182 = smul.addr %s181, 8
        %s183 = scalar_lea.vmem %s0, %s182
        %p184 = pneg %p39
        %p185 = pneg %p36
        %p186 = scmp.lt.s32.totalorder %s18, 1
        %s187 = scalar_select %p186, %s18, 1
        %s188 = smul.addr %s187, 8
        %s189 = smul.addr %s188, 8
        %s190 = scalar_lea.vmem %s1, %s189
        %p191 = pneg %p65
        %p192 = pneg %p62
        %p193 = pneg %p86
        %p194 = pneg %p83
        %p195 = pneg %p107
        %p196 = pneg %p104
        %p197 = pneg %p133
        %p198 = pneg %p130
        %s199 = sand.u32 %s120, 1
        %s200 = scalar_lea.sflag [#allocation3], %s199
        %s201 = sand.u32 %s120, 1
        %s202 = smul.addr %s201, 24
        %s203 = scalar_lea.vmem [#allocation2], %s202
        %p204 = scmp.lt.s32.totalorder %s18, 1
        %s205 = scalar_select %p204, %s18, 1
        %s206 = smul.addr %s205, 8
        %s207 = scalar_lea.vmem %s0, %s206
        %p208 = scmp.lt.s32.totalorder %s18, 1
        %s209 = scalar_select %p208, %s18, 1
        %s210 = smul.addr %s209, 8
        %s211 = smul.addr %s210, 8
        %s212 = scalar_lea.vmem %s1, %s211
        %v213 = vld [vmem:[%s207] sm:$0xff]
        %v214 = vld [vmem:[%s212] sm:$0xff]
        %v215 = vld [vmem:[%s212 + $0x8] sm:$0xff]
        %v216 = vld [vmem:[%s212 + $0x10] sm:$0xff]
        %v217 = vld [vmem:[%s212 + $0x18] sm:$0xff]
        %v218 = vld [vmem:[%s212 + $0x20] sm:$0xff]
        %v219 = vld [vmem:[%s212 + $0x28] sm:$0xff]
        %v220 = vld [vmem:[%s212 + $0x30] sm:$0xff]
        %v221 = vld [vmem:[%s212 + $0x38] sm:$0xff]
        %v222 = vld [vmem:[%s2] sm:$0xff]
        %v223 = vld [vmem:[%s2 + $0x8] sm:$0xff]
        %v224 = vld [vmem:[%s2 + $0x10] sm:$0xff]
        %v225 = vld [vmem:[%s2 + $0x18] sm:$0xff]
        %v226 = vld [vmem:[%s2 + $0x20] sm:$0xff]
        %v227 = vld [vmem:[%s2 + $0x28] sm:$0xff]
        %v228 = vld [vmem:[%s2 + $0x30] sm:$0xff]
        %v229 = vld [vmem:[%s2 + $0x38] sm:$0xff]
        %v230 = vld [vmem:[%s2 + $0x40] sm:$0xff]
        %v231 = vld [vmem:[%s2 + $0x48] sm:$0xff]
        %v232 = vld [vmem:[%s2 + $0x50] sm:$0xff]
        %v233 = vld [vmem:[%s2 + $0x58] sm:$0xff]
        %v234 = vld [vmem:[%s3] sm:$0xff]
        %v235 = vld [vmem:[%s3 + $0x8] sm:$0x1f]
        %v236 = vperm.slane %v234, 3
        %241 = vrot.lane.b32.xlu0 %v223, 96
        %v242 = vpop.permute.xlu0 %241
        %243 = vrot.lane.b32.xlu0 %v226, 96
        %v244 = vpop.permute.xlu0 %243
        %245 = vrot.lane.b32.xlu0 %v229, 96
        %v246 = vpop.permute.xlu0 %245
        %247 = vrot.lane.b32.xlu0 %v232, 96
        %v248 = vpop.permute.xlu0 %247
        %vm253 = vcmask 261120
        %v255 = vsel %vm253, %v214, 0
        %v258 = vsel %vm253, %v215, 0
        %v261 = vsel %vm253, %v216, 0
        %v264 = vsel %vm253, %v217, 0
        %v267 = vsel %vm253, %v218, 0
        %v270 = vsel %vm253, %v219, 0
        %v273 = vsel %vm253, %v220, 0
        %v276 = vsel %vm253, %v221, 0
        %278 = vmatpush.msra.mxu0 0.0
        %279 = vmatpush.msra.mxu0 0.0
        %280 = vmatpush.msra.mxu0 0.0
        %281 = vmatpush.msra.mxu0 0.0
        %282 = vmatpush.msra.mxu0 0.0
        %283 = vmatpush.msra.mxu0 0.0
        %284 = vmatpush.msra.mxu0 0.0
        %285 = vmatpush.msra.mxu0 0.0
        %286 = vmatpush.msra.mxu0 0.0
        %287 = vmatpush.msra.mxu0 0.0
        %288 = vmatpush.msra.mxu0 0.0
        %289 = vmatpush.msra.mxu0 0.0
        %290 = vmatpush.msra.mxu0 %v248
        %291 = vmatpush.msra.mxu0 %v246
        %292 = vmatpush.msra.mxu0 %v244
        %293 = vmatpush.msra.mxu0 %v242
        %294 = vmatmul.f32.gmra.mxu0 %v255
        %v295 = vpop.f32.mrf.mxu0
        %v296 = vadd.f32 %v236, %v295
        %297 = vmatmul.f32.gmra.mxu0 %v258
        %v298 = vpop.f32.mrf.mxu0
        %v299 = vadd.f32 %v236, %v298
        %300 = vmatmul.f32.gmra.mxu0 %v261
        %v301 = vpop.f32.mrf.mxu0
        %v302 = vadd.f32 %v236, %v301
        %303 = vmatmul.f32.gmra.mxu0 %v264
        %v304 = vpop.f32.mrf.mxu0
        %v305 = vadd.f32 %v236, %v304
        %306 = vmatmul.f32.gmra.mxu0 %v267
        %v307 = vpop.f32.mrf.mxu0
        %v308 = vadd.f32 %v236, %v307
        %309 = vmatmul.f32.gmra.mxu0 %v270
        %v310 = vpop.f32.mrf.mxu0
        %v311 = vadd.f32 %v236, %v310
        %312 = vmatmul.f32.gmra.mxu0 %v273
        %v313 = vpop.f32.mrf.mxu0
        %v314 = vadd.f32 %v236, %v313
        %315 = vmatmul.f32.gmra.mxu0 %v276
        %v316 = vpop.f32.mrf.mxu0
        %v317 = vadd.f32 %v236, %v316
        %318 = vdwg.mxu0
        %v319 = vperm.slane %v234, 0
        %v321 = vsel %vm253, %v213, 0
        %323 = vmatpush.msra.mxu0 0.0
        %324 = vmatpush.msra.mxu0 0.0
        %325 = vmatpush.msra.mxu0 0.0
        %326 = vmatpush.msra.mxu0 0.0
        %327 = vmatpush.msra.mxu0 0.0
        %328 = vmatpush.msra.mxu0 0.0
        %329 = vmatpush.msra.mxu0 0.0
        %330 = vmatpush.msra.mxu0 0.0
        %331 = vmatpush.msra.mxu0 0.0
        %332 = vmatpush.msra.mxu0 0.0
        %333 = vmatpush.msra.mxu0 0.0
        %334 = vmatpush.msra.mxu0 0.0
        %335 = vmatpush.msra.mxu0 %v231
        %336 = vmatpush.msra.mxu0 %v228
        %337 = vmatpush.msra.mxu0 %v225
        %338 = vmatpush.msra.mxu0 %v222
        %339 = vmatmul.f32.gmra.mxu0 %v321
        %v340 = vpop.f32.mrf.mxu0
        %v341 = vadd.f32 %v319, %v340
        %342 = vdwg.mxu0
        %344 = vrot.lane.b32.xlu0 %v341, 96
        %v345 = vpop.permute.xlu0 %344
        %vm346 = vcmask 64512
        %v347 = vsel %vm346, %v341, 0
        %v349 = vsel %vm346, %v345, 0
        %351 = vmatpush.xpose.msra.mxu0 0.0
        %352 = vmatpush.xpose.msra.mxu0 0.0
        %353 = vmatpush.xpose.msra.mxu0 0.0
        %354 = vmatpush.xpose.msra.mxu0 0.0
        %355 = vmatpush.xpose.msra.mxu0 0.0
        %356 = vmatpush.xpose.msra.mxu0 0.0
        %357 = vmatpush.xpose.msra.mxu0 0.0
        %358 = vmatpush.xpose.msra.mxu0 0.0
        %359 = vmatpush.xpose.msra.mxu0 0.0
        %360 = vmatpush.xpose.msra.mxu0 0.0
        %361 = vmatpush.xpose.msra.mxu0 0.0
        %362 = vmatpush.xpose.msra.mxu0 0.0
        %363 = vmatpush.xpose.msra.mxu0 0.0
        %364 = vmatpush.xpose.msra.mxu0 0.0
        %365 = vmatpush.xpose.msra.mxu0 0.0
        %366 = vmatpush.xpose.msra.mxu0 %v349
        %367 = vmatmul.f32.gmra.mxu0 %v347
        %v368 = vpop.f32.mrf.mxu0
        %v369 = vadd.f32 0.0, %v368
        %370 = vdwg.mxu0
        %v371 = vsel %vm346, %v369, -inf
        %372 = vmax.xlane.f32.xlu0 %v371
        %v373 = vpop.xlane.xlu0 %372
        %v374 = vsub.f32 %v369, %v373
        %v375 = vmul.f32 %v374, 1.442695
        %v376 = vpow.pop %v375
        %v377 = vsel %vm346, %v376, 0.0
        %378 = vadd.xlane.f32.xlu0 %v377
        %v379 = vpop.xlane.xlu0 %378
        %v380 = vrcp.pop %v379
        %v381 = vmul.f32 %v376, %v380
        %382 = vrot.lane.b32.xlu0 %v341, 64
        %v383 = vpop.permute.xlu0 %382
        %v386 = vsel %vm346, %v381, 0
        %388 = vmatpush.msra.mxu0 0.0
        %389 = vmatpush.msra.mxu0 0.0
        %390 = vmatpush.msra.mxu0 0.0
        %391 = vmatpush.msra.mxu0 0.0
        %392 = vmatpush.msra.mxu0 0.0
        %393 = vmatpush.msra.mxu0 0.0
        %394 = vmatpush.msra.mxu0 0.0
        %395 = vmatpush.msra.mxu0 0.0
        %396 = vmatpush.msra.mxu0 0.0
        %397 = vmatpush.msra.mxu0 0.0
        %398 = vmatpush.msra.mxu0 0.0
        %399 = vmatpush.msra.mxu0 0.0
        %400 = vmatpush.msra.mxu0 0.0
        %401 = vmatpush.msra.mxu0 0.0
        %402 = vmatpush.msra.mxu0 0.0
        %403 = vmatpush.msra.mxu0 %v383
        %404 = vmatmul.f32.gmra.mxu0 %v386
        %v405 = vpop.f32.mrf.mxu0
        %v406 = vadd.f32 0.0, %v405
        %407 = vdwg.mxu0
        %408 = vrot.lane.b32.xlu0 %v341, 120
        %v409 = vpop.permute.xlu0 %408
        %410 = vrot.lane.b32.xlu0 %v341, 88
        %v411 = vpop.permute.xlu0 %410
        %v412 = vsel %vm346, %v409, 0
        %v414 = vsel %vm346, %v411, 0
        %416 = vmatpush.xpose.msra.mxu0 0.0
        %417 = vmatpush.xpose.msra.mxu0 0.0
        %418 = vmatpush.xpose.msra.mxu0 0.0
        %419 = vmatpush.xpose.msra.mxu0 0.0
        %420 = vmatpush.xpose.msra.mxu0 0.0
        %421 = vmatpush.xpose.msra.mxu0 0.0
        %422 = vmatpush.xpose.msra.mxu0 0.0
        %423 = vmatpush.xpose.msra.mxu0 0.0
        %424 = vmatpush.xpose.msra.mxu0 0.0
        %425 = vmatpush.xpose.msra.mxu0 0.0
        %426 = vmatpush.xpose.msra.mxu0 0.0
        %427 = vmatpush.xpose.msra.mxu0 0.0
        %428 = vmatpush.xpose.msra.mxu0 0.0
        %429 = vmatpush.xpose.msra.mxu0 0.0
        %430 = vmatpush.xpose.msra.mxu0 0.0
        %431 = vmatpush.xpose.msra.mxu0 %v414
        %432 = vmatmul.f32.gmra.mxu0 %v412
        %v433 = vpop.f32.mrf.mxu0
        %v434 = vadd.f32 0.0, %v433
        %435 = vdwg.mxu0
        %v436 = vsel %vm346, %v434, -inf
        %437 = vmax.xlane.f32.xlu0 %v436
        %v438 = vpop.xlane.xlu0 %437
        %v439 = vsub.f32 %v434, %v438
        %v440 = vmul.f32 %v439, 1.442695
        %v441 = vpow.pop %v440
        %v442 = vsel %vm346, %v441, 0.0
        %443 = vadd.xlane.f32.xlu0 %v442
        %v444 = vpop.xlane.xlu0 %443
        %v445 = vrcp.pop %v444
        %v446 = vmul.f32 %v441, %v445
        %447 = vrot.lane.b32.xlu0 %v341, 56
        %v448 = vpop.permute.xlu0 %447
        %v451 = vsel %vm346, %v446, 0
        %453 = vmatpush.msra.mxu0 0.0
        %454 = vmatpush.msra.mxu0 0.0
        %455 = vmatpush.msra.mxu0 0.0
        %456 = vmatpush.msra.mxu0 0.0
        %457 = vmatpush.msra.mxu0 0.0
        %458 = vmatpush.msra.mxu0 0.0
        %459 = vmatpush.msra.mxu0 0.0
        %460 = vmatpush.msra.mxu0 0.0
        %461 = vmatpush.msra.mxu0 0.0
        %462 = vmatpush.msra.mxu0 0.0
        %463 = vmatpush.msra.mxu0 0.0
        %464 = vmatpush.msra.mxu0 0.0
        %465 = vmatpush.msra.mxu0 0.0
        %466 = vmatpush.msra.mxu0 0.0
        %467 = vmatpush.msra.mxu0 0.0
        %468 = vmatpush.msra.mxu0 %v448
        %469 = vmatmul.f32.gmra.mxu0 %v451
        %v470 = vpop.f32.mrf.mxu0
        %v471 = vadd.f32 0.0, %v470
        %472 = vdwg.mxu0
        %474 = vrot.lane.b32.xlu0 %v225, 32
        %v475 = vpop.permute.xlu0 %474
        %v478 = vsel %vm346, %v471, 0
        %480 = vmatpush.msra.mxu0 0.0
        %481 = vmatpush.msra.mxu0 0.0
        %482 = vmatpush.msra.mxu0 0.0
        %483 = vmatpush.msra.mxu0 0.0
        %484 = vmatpush.msra.mxu0 0.0
        %485 = vmatpush.msra.mxu0 0.0
        %486 = vmatpush.msra.mxu0 0.0
        %487 = vmatpush.msra.mxu0 0.0
        %488 = vmatpush.msra.mxu0 0.0
        %489 = vmatpush.msra.mxu0 0.0
        %490 = vmatpush.msra.mxu0 0.0
        %491 = vmatpush.msra.mxu0 0.0
        %492 = vmatpush.msra.mxu0 0.0
        %493 = vmatpush.msra.mxu0 0.0
        %494 = vmatpush.msra.mxu0 0.0
        %495 = vmatpush.msra.mxu0 %v475
        %496 = vmatmul.f32.gmra.mxu0 %v478
        %v497 = vpop.f32.mrf.mxu0
        %v498 = vadd.f32 0.0, %v497
        %499 = vdwg.mxu0
        %501 = vrot.lane.b32.xlu0 %v222, 32
        %v502 = vpop.permute.xlu0 %501
        %v505 = vsel %vm346, %v406, 0
        %507 = vmatpush.msra.mxu0 0.0
        %508 = vmatpush.msra.mxu0 0.0
        %509 = vmatpush.msra.mxu0 0.0
        %510 = vmatpush.msra.mxu0 0.0
        %511 = vmatpush.msra.mxu0 0.0
        %512 = vmatpush.msra.mxu0 0.0
        %513 = vmatpush.msra.mxu0 0.0
        %514 = vmatpush.msra.mxu0 0.0
        %515 = vmatpush.msra.mxu0 0.0
        %516 = vmatpush.msra.mxu0 0.0
        %517 = vmatpush.msra.mxu0 0.0
        %518 = vmatpush.msra.mxu0 0.0
        %519 = vmatpush.msra.mxu0 0.0
        %520 = vmatpush.msra.mxu0 0.0
        %521 = vmatpush.msra.mxu0 0.0
        %522 = vmatpush.msra.mxu0 %v502
        %523 = vmatmul.f32.gmra.mxu0 %v505
        %v524 = vpop.f32.mrf.mxu0
        %v525 = vadd.f32 %v498, %v524
        %526 = vdwg.mxu0
        %527 = vrot.lane.b32.xlu0 %v341, 112
        %v528 = vpop.permute.xlu0 %527
        %529 = vrot.lane.b32.xlu0 %v341, 80
        %v530 = vpop.permute.xlu0 %529
        %v531 = vsel %vm346, %v528, 0
        %v533 = vsel %vm346, %v530, 0
        %535 = vmatpush.xpose.msra.mxu0 0.0
        %536 = vmatpush.xpose.msra.mxu0 0.0
        %537 = vmatpush.xpose.msra.mxu0 0.0
        %538 = vmatpush.xpose.msra.mxu0 0.0
        %539 = vmatpush.xpose.msra.mxu0 0.0
        %540 = vmatpush.xpose.msra.mxu0 0.0
        %541 = vmatpush.xpose.msra.mxu0 0.0
        %542 = vmatpush.xpose.msra.mxu0 0.0
        %543 = vmatpush.xpose.msra.mxu0 0.0
        %544 = vmatpush.xpose.msra.mxu0 0.0
        %545 = vmatpush.xpose.msra.mxu0 0.0
        %546 = vmatpush.xpose.msra.mxu0 0.0
        %547 = vmatpush.xpose.msra.mxu0 0.0
        %548 = vmatpush.xpose.msra.mxu0 0.0
        %549 = vmatpush.xpose.msra.mxu0 0.0
        %550 = vmatpush.xpose.msra.mxu0 %v533
        %551 = vmatmul.f32.gmra.mxu0 %v531
        %v552 = vpop.f32.mrf.mxu0
        %v553 = vadd.f32 0.0, %v552
        %554 = vdwg.mxu0
        %v555 = vsel %vm346, %v553, -inf
        %556 = vmax.xlane.f32.xlu0 %v555
        %v557 = vpop.xlane.xlu0 %556
        %v558 = vsub.f32 %v553, %v557
        %v559 = vmul.f32 %v558, 1.442695
        %v560 = vpow.pop %v559
        %v561 = vsel %vm346, %v560, 0.0
        %562 = vadd.xlane.f32.xlu0 %v561
        %v563 = vpop.xlane.xlu0 %562
        %v564 = vrcp.pop %v563
        %v565 = vmul.f32 %v560, %v564
        %566 = vrot.lane.b32.xlu0 %v341, 48
        %v567 = vpop.permute.xlu0 %566
        %v570 = vsel %vm346, %v565, 0
        %572 = vmatpush.msra.mxu0 0.0
        %573 = vmatpush.msra.mxu0 0.0
        %574 = vmatpush.msra.mxu0 0.0
        %575 = vmatpush.msra.mxu0 0.0
        %576 = vmatpush.msra.mxu0 0.0
        %577 = vmatpush.msra.mxu0 0.0
        %578 = vmatpush.msra.mxu0 0.0
        %579 = vmatpush.msra.mxu0 0.0
        %580 = vmatpush.msra.mxu0 0.0
        %581 = vmatpush.msra.mxu0 0.0
        %582 = vmatpush.msra.mxu0 0.0
        %583 = vmatpush.msra.mxu0 0.0
        %584 = vmatpush.msra.mxu0 0.0
        %585 = vmatpush.msra.mxu0 0.0
        %586 = vmatpush.msra.mxu0 0.0
        %587 = vmatpush.msra.mxu0 %v567
        %588 = vmatmul.f32.gmra.mxu0 %v570
        %v589 = vpop.f32.mrf.mxu0
        %v590 = vadd.f32 0.0, %v589
        %591 = vdwg.mxu0
        %593 = vrot.lane.b32.xlu0 %v228, 32
        %v594 = vpop.permute.xlu0 %593
        %v597 = vsel %vm346, %v590, 0
        %599 = vmatpush.msra.mxu0 0.0
        %600 = vmatpush.msra.mxu0 0.0
        %601 = vmatpush.msra.mxu0 0.0
        %602 = vmatpush.msra.mxu0 0.0
        %603 = vmatpush.msra.mxu0 0.0
        %604 = vmatpush.msra.mxu0 0.0
        %605 = vmatpush.msra.mxu0 0.0
        %606 = vmatpush.msra.mxu0 0.0
        %607 = vmatpush.msra.mxu0 0.0
        %608 = vmatpush.msra.mxu0 0.0
        %609 = vmatpush.msra.mxu0 0.0
        %610 = vmatpush.msra.mxu0 0.0
        %611 = vmatpush.msra.mxu0 0.0
        %612 = vmatpush.msra.mxu0 0.0
        %613 = vmatpush.msra.mxu0 0.0
        %614 = vmatpush.msra.mxu0 %v594
        %615 = vmatmul.f32.gmra.mxu0 %v597
        %v616 = vpop.f32.mrf.mxu0
        %v617 = vadd.f32 0.0, %v616
        %618 = vdwg.mxu0
        %v619 = vadd.f32 %v525, %v617
        %620 = vrot.lane.b32.xlu0 %v341, 104
        %v621 = vpop.permute.xlu0 %620
        %622 = vrot.lane.b32.xlu0 %v341, 72
        %v623 = vpop.permute.xlu0 %622
        %v624 = vsel %vm346, %v621, 0
        %v626 = vsel %vm346, %v623, 0
        %628 = vmatpush.xpose.msra.mxu0 0.0
        %629 = vmatpush.xpose.msra.mxu0 0.0
        %630 = vmatpush.xpose.msra.mxu0 0.0
        %631 = vmatpush.xpose.msra.mxu0 0.0
        %632 = vmatpush.xpose.msra.mxu0 0.0
        %633 = vmatpush.xpose.msra.mxu0 0.0
        %634 = vmatpush.xpose.msra.mxu0 0.0
        %635 = vmatpush.xpose.msra.mxu0 0.0
        %636 = vmatpush.xpose.msra.mxu0 0.0
        %637 = vmatpush.xpose.msra.mxu0 0.0
        %638 = vmatpush.xpose.msra.mxu0 0.0
        %639 = vmatpush.xpose.msra.mxu0 0.0
        %640 = vmatpush.xpose.msra.mxu0 0.0
        %641 = vmatpush.xpose.msra.mxu0 0.0
        %642 = vmatpush.xpose.msra.mxu0 0.0
        %643 = vmatpush.xpose.msra.mxu0 %v626
        %644 = vmatmul.f32.gmra.mxu0 %v624
        %v645 = vpop.f32.mrf.mxu0
        %v646 = vadd.f32 0.0, %v645
        %647 = vdwg.mxu0
        %v648 = vsel %vm346, %v646, -inf
        %649 = vmax.xlane.f32.xlu0 %v648
        %v650 = vpop.xlane.xlu0 %649
        %v651 = vsub.f32 %v646, %v650
        %v652 = vmul.f32 %v651, 1.442695
        %v653 = vpow.pop %v652
        %v654 = vsel %vm346, %v653, 0.0
        %655 = vadd.xlane.f32.xlu0 %v654
        %v656 = vpop.xlane.xlu0 %655
        %v657 = vrcp.pop %v656
        %v658 = vmul.f32 %v653, %v657
        %659 = vrot.lane.b32.xlu0 %v341, 40
        %v660 = vpop.permute.xlu0 %659
        %v663 = vsel %vm346, %v658, 0
        %665 = vmatpush.msra.mxu0 0.0
        %666 = vmatpush.msra.mxu0 0.0
        %667 = vmatpush.msra.mxu0 0.0
        %668 = vmatpush.msra.mxu0 0.0
        %669 = vmatpush.msra.mxu0 0.0
        %670 = vmatpush.msra.mxu0 0.0
        %671 = vmatpush.msra.mxu0 0.0
        %672 = vmatpush.msra.mxu0 0.0
        %673 = vmatpush.msra.mxu0 0.0
        %674 = vmatpush.msra.mxu0 0.0
        %675 = vmatpush.msra.mxu0 0.0
        %676 = vmatpush.msra.mxu0 0.0
        %677 = vmatpush.msra.mxu0 0.0
        %678 = vmatpush.msra.mxu0 0.0
        %679 = vmatpush.msra.mxu0 0.0
        %680 = vmatpush.msra.mxu0 %v660
        %681 = vmatmul.f32.gmra.mxu0 %v663
        %v682 = vpop.f32.mrf.mxu0
        %v683 = vadd.f32 0.0, %v682
        %684 = vdwg.mxu0
        %686 = vrot.lane.b32.xlu0 %v231, 32
        %v687 = vpop.permute.xlu0 %686
        %v690 = vsel %vm346, %v683, 0
        %692 = vmatpush.msra.mxu0 0.0
        %693 = vmatpush.msra.mxu0 0.0
        %694 = vmatpush.msra.mxu0 0.0
        %695 = vmatpush.msra.mxu0 0.0
        %696 = vmatpush.msra.mxu0 0.0
        %697 = vmatpush.msra.mxu0 0.0
        %698 = vmatpush.msra.mxu0 0.0
        %699 = vmatpush.msra.mxu0 0.0
        %700 = vmatpush.msra.mxu0 0.0
        %701 = vmatpush.msra.mxu0 0.0
        %702 = vmatpush.msra.mxu0 0.0
        %703 = vmatpush.msra.mxu0 0.0
        %704 = vmatpush.msra.mxu0 0.0
        %705 = vmatpush.msra.mxu0 0.0
        %706 = vmatpush.msra.mxu0 0.0
        %707 = vmatpush.msra.mxu0 %v687
        %708 = vmatmul.f32.gmra.mxu0 %v690
        %v709 = vpop.f32.mrf.mxu0
        %v710 = vadd.f32 0.0, %v709
        %711 = vdwg.mxu0
        %v712 = vadd.f32 %v619, %v710
        %v713 = vperm.slane %v234, 1
        %v714 = vadd.f32 %v712, %v713
        %v715 = vadd.f32 %v213, %v714
        %v716 = vsel %vm253, %v715, 0.0
        %717 = vadd.xlane.f32.xlu0 %v716
        %v718 = vpop.xlane.xlu0 %717
        %v719 = vrcp.pop 32.0
        %v720 = vmul.f32 32.0, %v719
        %v721 = vsub.f32 1.0, %v720
        %v722 = vmul.f32 %v719, %v721
        %v723 = vadd.f32 %v719, %v722
        %vm724 = vweird.f32 %v719
        %v725 = vsel %vm724, %v719, %v723
        %v726 = vmul.f32 %v718, %v725
        %v727 = vsub.f32 %v715, %v726
        %v728 = vmul.f32 %v727, %v727
        %v729 = vsel %vm253, %v728, 0.0
        %730 = vadd.xlane.f32.xlu0 %v729
        %v731 = vpop.xlane.xlu0 %730
        %v732 = vmul.f32 %v731, %v725
        %v733 = vadd.f32 %v732, 1e-05
        %v734 = vrsqrt.pop %v733
        %v735 = vmul.f32 %v734, %v733
        %v736 = vmul.f32 %v735, %v734
        %v737 = vmul.f32 0.5, %v736
        %v738 = vsub.f32 1.5, %v737
        %v739 = vmul.f32 %v734, %v738
        %vm740 = vweird.f32 %v733
        %vm741 = vweird.f32 %v734
        %vm742 = vmor %vm740, %vm741
        %v743 = vsel %vm742, %v734, %v739
        %v744 = vmul.f32 %v727, %v743
        %v745 = vperm.slane %v234, 7
        %v746 = vmul.f32 %v744, %v745
        %v747 = vperm.slane %v235, 0
        %v748 = vadd.f32 %v746, %v747
        %v749 = vperm.slane %v234, 2
        %v751 = vsel %vm253, %v748, 0
        %753 = vmatpush.msra.mxu0 0.0
        %754 = vmatpush.msra.mxu0 0.0
        %755 = vmatpush.msra.mxu0 0.0
        %756 = vmatpush.msra.mxu0 0.0
        %757 = vmatpush.msra.mxu0 0.0
        %758 = vmatpush.msra.mxu0 0.0
        %759 = vmatpush.msra.mxu0 0.0
        %760 = vmatpush.msra.mxu0 0.0
        %761 = vmatpush.msra.mxu0 0.0
        %762 = vmatpush.msra.mxu0 0.0
        %763 = vmatpush.msra.mxu0 0.0
        %764 = vmatpush.msra.mxu0 0.0
        %765 = vmatpush.msra.mxu0 %v232
        %766 = vmatpush.msra.mxu0 %v229
        %767 = vmatpush.msra.mxu0 %v226
        %768 = vmatpush.msra.mxu0 %v223
        %769 = vmatmul.f32.gmra.mxu0 %v751
        %v770 = vpop.f32.mrf.mxu0
        %v771 = vadd.f32 %v749, %v770
        %772 = vdwg.mxu0
        %v774 = vsel %vm346, %v771, 0
        %v777 = vsel %vm346, %v296, 0
        %v780 = vsel %vm346, %v299, 0
        %v783 = vsel %vm346, %v302, 0
        %v786 = vsel %vm346, %v305, 0
        %v789 = vsel %vm346, %v308, 0
        %v792 = vsel %vm346, %v311, 0
        %v795 = vsel %vm346, %v314, 0
        %v798 = vsel %vm346, %v317, 0
        %800 = vmatpush.xpose.msra.mxu0 0.0
        %801 = vmatpush.xpose.msra.mxu0 0.0
        %802 = vmatpush.xpose.msra.mxu0 0.0
        %803 = vmatpush.xpose.msra.mxu0 0.0
        %804 = vmatpush.xpose.msra.mxu0 0.0
        %805 = vmatpush.xpose.msra.mxu0 0.0
        %806 = vmatpush.xpose.msra.mxu0 0.0
        %807 = vmatpush.xpose.msra.mxu0 0.0
        %808 = vmatpush.xpose.msra.mxu0 %v798
        %809 = vmatpush.xpose.msra.mxu0 %v795
        %810 = vmatpush.xpose.msra.mxu0 %v792
        %811 = vmatpush.xpose.msra.mxu0 %v789
        %812 = vmatpush.xpose.msra.mxu0 %v786
        %813 = vmatpush.xpose.msra.mxu0 %v783
        %814 = vmatpush.xpose.msra.mxu0 %v780
        %815 = vmatpush.xpose.msra.mxu0 %v777
        %816 = vmatmul.f32.gmra.mxu0 %v774
        %v817 = vpop.f32.mrf.mxu0
        %v818 = vadd.f32 0.0, %v817
        %819 = vdwg.mxu0
        %vm820 = vcmask 523264
        %v821 = vsel %vm820, %v818, -inf
        %822 = vmax.xlane.f32.xlu0 %v821
        %v823 = vpop.xlane.xlu0 %822
        %v824 = vsub.f32 %v818, %v823
        %v825 = vmul.f32 %v824, 1.442695
        %v826 = vpow.pop %v825
        %v827 = vsel %vm820, %v826, 0.0
        %828 = vadd.xlane.f32.xlu0 %v827
        %v829 = vpop.xlane.xlu0 %828
        %v830 = vrcp.pop %v829
        %v831 = vmul.f32 %v826, %v830
        %832 = vrot.lane.b32.xlu0 %v296, 96
        %v833 = vpop.permute.xlu0 %832
        %834 = vrot.lane.b32.xlu0 %v299, 96
        %v835 = vpop.permute.xlu0 %834
        %836 = vrot.lane.b32.xlu0 %v302, 96
        %v837 = vpop.permute.xlu0 %836
        %838 = vrot.lane.b32.xlu0 %v305, 96
        %v839 = vpop.permute.xlu0 %838
        %840 = vrot.lane.b32.xlu0 %v308, 96
        %v841 = vpop.permute.xlu0 %840
        %842 = vrot.lane.b32.xlu0 %v311, 96
        %v843 = vpop.permute.xlu0 %842
        %844 = vrot.lane.b32.xlu0 %v314, 96
        %v845 = vpop.permute.xlu0 %844
        %846 = vrot.lane.b32.xlu0 %v317, 96
        %v847 = vpop.permute.xlu0 %846
        %v857 = vsel %vm820, %v831, 0
        %859 = vmatpush.msra.mxu0 0.0
        %860 = vmatpush.msra.mxu0 0.0
        %861 = vmatpush.msra.mxu0 0.0
        %862 = vmatpush.msra.mxu0 0.0
        %863 = vmatpush.msra.mxu0 0.0
        %864 = vmatpush.msra.mxu0 0.0
        %865 = vmatpush.msra.mxu0 0.0
        %866 = vmatpush.msra.mxu0 0.0
        %867 = vmatpush.msra.mxu0 %v847
        %868 = vmatpush.msra.mxu0 %v845
        %869 = vmatpush.msra.mxu0 %v843
        %870 = vmatpush.msra.mxu0 %v841
        %871 = vmatpush.msra.mxu0 %v839
        %872 = vmatpush.msra.mxu0 %v837
        %873 = vmatpush.msra.mxu0 %v835
        %874 = vmatpush.msra.mxu0 %v833
        %875 = vmatmul.f32.gmra.mxu0 %v857
        %v876 = vpop.f32.mrf.mxu0
        %v877 = vadd.f32 0.0, %v876
        %878 = vdwg.mxu0
        %879 = vrot.lane.b32.xlu0 %v771, 120
        %v880 = vpop.permute.xlu0 %879
        %881 = vrot.lane.b32.xlu0 %v296, 120
        %v882 = vpop.permute.xlu0 %881
        %883 = vrot.lane.b32.xlu0 %v299, 120
        %v884 = vpop.permute.xlu0 %883
        %885 = vrot.lane.b32.xlu0 %v302, 120
        %v886 = vpop.permute.xlu0 %885
        %887 = vrot.lane.b32.xlu0 %v305, 120
        %v888 = vpop.permute.xlu0 %887
        %889 = vrot.lane.b32.xlu0 %v308, 120
        %v890 = vpop.permute.xlu0 %889
        %891 = vrot.lane.b32.xlu0 %v311, 120
        %v892 = vpop.permute.xlu0 %891
        %893 = vrot.lane.b32.xlu0 %v314, 120
        %v894 = vpop.permute.xlu0 %893
        %895 = vrot.lane.b32.xlu0 %v317, 120
        %v896 = vpop.permute.xlu0 %895
        %v897 = vsel %vm346, %v880, 0
        %v899 = vsel %vm346, %v882, 0
        %v901 = vsel %vm346, %v884, 0
        %v903 = vsel %vm346, %v886, 0
        %v905 = vsel %vm346, %v888, 0
        %v907 = vsel %vm346, %v890, 0
        %v909 = vsel %vm346, %v892, 0
        %v911 = vsel %vm346, %v894, 0
        %v913 = vsel %vm346, %v896, 0
        %915 = vmatpush.xpose.msra.mxu0 0.0
        %916 = vmatpush.xpose.msra.mxu0 0.0
        %917 = vmatpush.xpose.msra.mxu0 0.0
        %918 = vmatpush.xpose.msra.mxu0 0.0
        %919 = vmatpush.xpose.msra.mxu0 0.0
        %920 = vmatpush.xpose.msra.mxu0 0.0
        %921 = vmatpush.xpose.msra.mxu0 0.0
        %922 = vmatpush.xpose.msra.mxu0 0.0
        %923 = vmatpush.xpose.msra.mxu0 %v913
        %924 = vmatpush.xpose.msra.mxu0 %v911
        %925 = vmatpush.xpose.msra.mxu0 %v909
        %926 = vmatpush.xpose.msra.mxu0 %v907
        %927 = vmatpush.xpose.msra.mxu0 %v905
        %928 = vmatpush.xpose.msra.mxu0 %v903
        %929 = vmatpush.xpose.msra.mxu0 %v901
        %930 = vmatpush.xpose.msra.mxu0 %v899
        %931 = vmatmul.f32.gmra.mxu0 %v897
        %v932 = vpop.f32.mrf.mxu0
        %v933 = vadd.f32 0.0, %v932
        %934 = vdwg.mxu0
        %v935 = vsel %vm820, %v933, -inf
        %936 = vmax.xlane.f32.xlu0 %v935
        %v937 = vpop.xlane.xlu0 %936
        %v938 = vsub.f32 %v933, %v937
        %v939 = vmul.f32 %v938, 1.442695
        %v940 = vpow.pop %v939
        %v941 = vsel %vm820, %v940, 0.0
        %942 = vadd.xlane.f32.xlu0 %v941
        %v943 = vpop.xlane.xlu0 %942
        %v944 = vrcp.pop %v943
        %v945 = vmul.f32 %v940, %v944
        %946 = vrot.lane.b32.xlu0 %v296, 88
        %v947 = vpop.permute.xlu0 %946
        %948 = vrot.lane.b32.xlu0 %v299, 88
        %v949 = vpop.permute.xlu0 %948
        %950 = vrot.lane.b32.xlu0 %v302, 88
        %v951 = vpop.permute.xlu0 %950
        %952 = vrot.lane.b32.xlu0 %v305, 88
        %v953 = vpop.permute.xlu0 %952
        %954 = vrot.lane.b32.xlu0 %v308, 88
        %v955 = vpop.permute.xlu0 %954
        %956 = vrot.lane.b32.xlu0 %v311, 88
        %v957 = vpop.permute.xlu0 %956
        %958 = vrot.lane.b32.xlu0 %v314, 88
        %v959 = vpop.permute.xlu0 %958
        %960 = vrot.lane.b32.xlu0 %v317, 88
        %v961 = vpop.permute.xlu0 %960
        %v971 = vsel %vm820, %v945, 0
        %973 = vmatpush.msra.mxu0 0.0
        %974 = vmatpush.msra.mxu0 0.0
        %975 = vmatpush.msra.mxu0 0.0
        %976 = vmatpush.msra.mxu0 0.0
        %977 = vmatpush.msra.mxu0 0.0
        %978 = vmatpush.msra.mxu0 0.0
        %979 = vmatpush.msra.mxu0 0.0
        %980 = vmatpush.msra.mxu0 0.0
        %981 = vmatpush.msra.mxu0 %v961
        %982 = vmatpush.msra.mxu0 %v959
        %983 = vmatpush.msra.mxu0 %v957
        %984 = vmatpush.msra.mxu0 %v955
        %985 = vmatpush.msra.mxu0 %v953
        %986 = vmatpush.msra.mxu0 %v951
        %987 = vmatpush.msra.mxu0 %v949
        %988 = vmatpush.msra.mxu0 %v947
        %989 = vmatmul.f32.gmra.mxu0 %v971
        %v990 = vpop.f32.mrf.mxu0
        %v991 = vadd.f32 0.0, %v990
        %992 = vdwg.mxu0
        %993 = vrot.lane.b32.xlu0 %v226, 32
        %v994 = vpop.permute.xlu0 %993
        %v997 = vsel %vm346, %v991, 0
        %999 = vmatpush.msra.mxu0 0.0
        %1000 = vmatpush.msra.mxu0 0.0
        %1001 = vmatpush.msra.mxu0 0.0
        %1002 = vmatpush.msra.mxu0 0.0
        %1003 = vmatpush.msra.mxu0 0.0
        %1004 = vmatpush.msra.mxu0 0.0
        %1005 = vmatpush.msra.mxu0 0.0
        %1006 = vmatpush.msra.mxu0 0.0
        %1007 = vmatpush.msra.mxu0 0.0
        %1008 = vmatpush.msra.mxu0 0.0
        %1009 = vmatpush.msra.mxu0 0.0
        %1010 = vmatpush.msra.mxu0 0.0
        %1011 = vmatpush.msra.mxu0 0.0
        %1012 = vmatpush.msra.mxu0 0.0
        %1013 = vmatpush.msra.mxu0 0.0
        %1014 = vmatpush.msra.mxu0 %v994
        %1015 = vmatmul.f32.gmra.mxu0 %v997
        %v1016 = vpop.f32.mrf.mxu0
        %v1017 = vadd.f32 0.0, %v1016
        %1018 = vdwg.mxu0
        %1019 = vrot.lane.b32.xlu0 %v223, 32
        %v1020 = vpop.permute.xlu0 %1019
        %v1023 = vsel %vm346, %v877, 0
        %1025 = vmatpush.msra.mxu0 0.0
        %1026 = vmatpush.msra.mxu0 0.0
        %1027 = vmatpush.msra.mxu0 0.0
        %1028 = vmatpush.msra.mxu0 0.0
        %1029 = vmatpush.msra.mxu0 0.0
        %1030 = vmatpush.msra.mxu0 0.0
        %1031 = vmatpush.msra.mxu0 0.0
        %1032 = vmatpush.msra.mxu0 0.0
        %1033 = vmatpush.msra.mxu0 0.0
        %1034 = vmatpush.msra.mxu0 0.0
        %1035 = vmatpush.msra.mxu0 0.0
        %1036 = vmatpush.msra.mxu0 0.0
        %1037 = vmatpush.msra.mxu0 0.0
        %1038 = vmatpush.msra.mxu0 0.0
        %1039 = vmatpush.msra.mxu0 0.0
        %1040 = vmatpush.msra.mxu0 %v1020
        %1041 = vmatmul.f32.gmra.mxu0 %v1023
        %v1042 = vpop.f32.mrf.mxu0
        %v1043 = vadd.f32 %v1017, %v1042
        %1044 = vdwg.mxu0
        %1045 = vrot.lane.b32.xlu0 %v771, 112
        %v1046 = vpop.permute.xlu0 %1045
        %1047 = vrot.lane.b32.xlu0 %v296, 112
        %v1048 = vpop.permute.xlu0 %1047
        %1049 = vrot.lane.b32.xlu0 %v299, 112
        %v1050 = vpop.permute.xlu0 %1049
        %1051 = vrot.lane.b32.xlu0 %v302, 112
        %v1052 = vpop.permute.xlu0 %1051
        %1053 = vrot.lane.b32.xlu0 %v305, 112
        %v1054 = vpop.permute.xlu0 %1053
        %1055 = vrot.lane.b32.xlu0 %v308, 112
        %v1056 = vpop.permute.xlu0 %1055
        %1057 = vrot.lane.b32.xlu0 %v311, 112
        %v1058 = vpop.permute.xlu0 %1057
        %1059 = vrot.lane.b32.xlu0 %v314, 112
        %v1060 = vpop.permute.xlu0 %1059
        %1061 = vrot.lane.b32.xlu0 %v317, 112
        %v1062 = vpop.permute.xlu0 %1061
        %v1063 = vsel %vm346, %v1046, 0
        %v1065 = vsel %vm346, %v1048, 0
        %v1067 = vsel %vm346, %v1050, 0
        %v1069 = vsel %vm346, %v1052, 0
        %v1071 = vsel %vm346, %v1054, 0
        %v1073 = vsel %vm346, %v1056, 0
        %v1075 = vsel %vm346, %v1058, 0
        %v1077 = vsel %vm346, %v1060, 0
        %v1079 = vsel %vm346, %v1062, 0
        %1081 = vmatpush.xpose.msra.mxu0 0.0
        %1082 = vmatpush.xpose.msra.mxu0 0.0
        %1083 = vmatpush.xpose.msra.mxu0 0.0
        %1084 = vmatpush.xpose.msra.mxu0 0.0
        %1085 = vmatpush.xpose.msra.mxu0 0.0
        %1086 = vmatpush.xpose.msra.mxu0 0.0
        %1087 = vmatpush.xpose.msra.mxu0 0.0
        %1088 = vmatpush.xpose.msra.mxu0 0.0
        %1089 = vmatpush.xpose.msra.mxu0 %v1079
        %1090 = vmatpush.xpose.msra.mxu0 %v1077
        %1091 = vmatpush.xpose.msra.mxu0 %v1075
        %1092 = vmatpush.xpose.msra.mxu0 %v1073
        %1093 = vmatpush.xpose.msra.mxu0 %v1071
        %1094 = vmatpush.xpose.msra.mxu0 %v1069
        %1095 = vmatpush.xpose.msra.mxu0 %v1067
        %1096 = vmatpush.xpose.msra.mxu0 %v1065
        %1097 = vmatmul.f32.gmra.mxu0 %v1063
        %v1098 = vpop.f32.mrf.mxu0
        %v1099 = vadd.f32 0.0, %v1098
        %1100 = vdwg.mxu0
        %v1101 = vsel %vm820, %v1099, -inf
        %1102 = vmax.xlane.f32.xlu0 %v1101
        %v1103 = vpop.xlane.xlu0 %1102
        %v1104 = vsub.f32 %v1099, %v1103
        %v1105 = vmul.f32 %v1104, 1.442695
        %v1106 = vpow.pop %v1105
        %v1107 = vsel %vm820, %v1106, 0.0
        %1108 = vadd.xlane.f32.xlu0 %v1107
        %v1109 = vpop.xlane.xlu0 %1108
        %v1110 = vrcp.pop %v1109
        %v1111 = vmul.f32 %v1106, %v1110
        %1112 = vrot.lane.b32.xlu0 %v296, 80
        %v1113 = vpop.permute.xlu0 %1112
        %1114 = vrot.lane.b32.xlu0 %v299, 80
        %v1115 = vpop.permute.xlu0 %1114
        %1116 = vrot.lane.b32.xlu0 %v302, 80
        %v1117 = vpop.permute.xlu0 %1116
        %1118 = vrot.lane.b32.xlu0 %v305, 80
        %v1119 = vpop.permute.xlu0 %1118
        %1120 = vrot.lane.b32.xlu0 %v308, 80
        %v1121 = vpop.permute.xlu0 %1120
        %1122 = vrot.lane.b32.xlu0 %v311, 80
        %v1123 = vpop.permute.xlu0 %1122
        %1124 = vrot.lane.b32.xlu0 %v314, 80
        %v1125 = vpop.permute.xlu0 %1124
        %1126 = vrot.lane.b32.xlu0 %v317, 80
        %v1127 = vpop.permute.xlu0 %1126
        %v1137 = vsel %vm820, %v1111, 0
        %1139 = vmatpush.msra.mxu0 0.0
        %1140 = vmatpush.msra.mxu0 0.0
        %1141 = vmatpush.msra.mxu0 0.0
        %1142 = vmatpush.msra.mxu0 0.0
        %1143 = vmatpush.msra.mxu0 0.0
        %1144 = vmatpush.msra.mxu0 0.0
        %1145 = vmatpush.msra.mxu0 0.0
        %1146 = vmatpush.msra.mxu0 0.0
        %1147 = vmatpush.msra.mxu0 %v1127
        %1148 = vmatpush.msra.mxu0 %v1125
        %1149 = vmatpush.msra.mxu0 %v1123
        %1150 = vmatpush.msra.mxu0 %v1121
        %1151 = vmatpush.msra.mxu0 %v1119
        %1152 = vmatpush.msra.mxu0 %v1117
        %1153 = vmatpush.msra.mxu0 %v1115
        %1154 = vmatpush.msra.mxu0 %v1113
        %1155 = vmatmul.f32.gmra.mxu0 %v1137
        %v1156 = vpop.f32.mrf.mxu0
        %v1157 = vadd.f32 0.0, %v1156
        %1158 = vdwg.mxu0
        %1159 = vrot.lane.b32.xlu0 %v229, 32
        %v1160 = vpop.permute.xlu0 %1159
        %v1163 = vsel %vm346, %v1157, 0
        %1165 = vmatpush.msra.mxu0 0.0
        %1166 = vmatpush.msra.mxu0 0.0
        %1167 = vmatpush.msra.mxu0 0.0
        %1168 = vmatpush.msra.mxu0 0.0
        %1169 = vmatpush.msra.mxu0 0.0
        %1170 = vmatpush.msra.mxu0 0.0
        %1171 = vmatpush.msra.mxu0 0.0
        %1172 = vmatpush.msra.mxu0 0.0
        %1173 = vmatpush.msra.mxu0 0.0
        %1174 = vmatpush.msra.mxu0 0.0
        %1175 = vmatpush.msra.mxu0 0.0
        %1176 = vmatpush.msra.mxu0 0.0
        %1177 = vmatpush.msra.mxu0 0.0
        %1178 = vmatpush.msra.mxu0 0.0
        %1179 = vmatpush.msra.mxu0 0.0
        %1180 = vmatpush.msra.mxu0 %v1160
        %1181 = vmatmul.f32.gmra.mxu0 %v1163
        %v1182 = vpop.f32.mrf.mxu0
        %v1183 = vadd.f32 0.0, %v1182
        %1184 = vdwg.mxu0
        %v1185 = vadd.f32 %v1043, %v1183
        %1186 = vrot.lane.b32.xlu0 %v771, 104
        %v1187 = vpop.permute.xlu0 %1186
        %1188 = vrot.lane.b32.xlu0 %v296, 104
        %v1189 = vpop.permute.xlu0 %1188
        %1190 = vrot.lane.b32.xlu0 %v299, 104
        %v1191 = vpop.permute.xlu0 %1190
        %1192 = vrot.lane.b32.xlu0 %v302, 104
        %v1193 = vpop.permute.xlu0 %1192
        %1194 = vrot.lane.b32.xlu0 %v305, 104
        %v1195 = vpop.permute.xlu0 %1194
        %1196 = vrot.lane.b32.xlu0 %v308, 104
        %v1197 = vpop.permute.xlu0 %1196
        %1198 = vrot.lane.b32.xlu0 %v311, 104
        %v1199 = vpop.permute.xlu0 %1198
        %1200 = vrot.lane.b32.xlu0 %v314, 104
        %v1201 = vpop.permute.xlu0 %1200
        %1202 = vrot.lane.b32.xlu0 %v317, 104
        %v1203 = vpop.permute.xlu0 %1202
        %v1204 = vsel %vm346, %v1187, 0
        %v1206 = vsel %vm346, %v1189, 0
        %v1208 = vsel %vm346, %v1191, 0
        %v1210 = vsel %vm346, %v1193, 0
        %v1212 = vsel %vm346, %v1195, 0
        %v1214 = vsel %vm346, %v1197, 0
        %v1216 = vsel %vm346, %v1199, 0
        %v1218 = vsel %vm346, %v1201, 0
        %v1220 = vsel %vm346, %v1203, 0
        %1222 = vmatpush.xpose.msra.mxu0 0.0
        %1223 = vmatpush.xpose.msra.mxu0 0.0
        %1224 = vmatpush.xpose.msra.mxu0 0.0
        %1225 = vmatpush.xpose.msra.mxu0 0.0
        %1226 = vmatpush.xpose.msra.mxu0 0.0
        %1227 = vmatpush.xpose.msra.mxu0 0.0
        %1228 = vmatpush.xpose.msra.mxu0 0.0
        %1229 = vmatpush.xpose.msra.mxu0 0.0
        %1230 = vmatpush.xpose.msra.mxu0 %v1220
        %1231 = vmatpush.xpose.msra.mxu0 %v1218
        %1232 = vmatpush.xpose.msra.mxu0 %v1216
        %1233 = vmatpush.xpose.msra.mxu0 %v1214
        %1234 = vmatpush.xpose.msra.mxu0 %v1212
        %1235 = vmatpush.xpose.msra.mxu0 %v1210
        %1236 = vmatpush.xpose.msra.mxu0 %v1208
        %1237 = vmatpush.xpose.msra.mxu0 %v1206
        %1238 = vmatmul.f32.gmra.mxu0 %v1204
        %v1239 = vpop.f32.mrf.mxu0
        %v1240 = vadd.f32 0.0, %v1239
        %1241 = vdwg.mxu0
        %v1242 = vsel %vm820, %v1240, -inf
        %1243 = vmax.xlane.f32.xlu0 %v1242
        %v1244 = vpop.xlane.xlu0 %1243
        %v1245 = vsub.f32 %v1240, %v1244
        %v1246 = vmul.f32 %v1245, 1.442695
        %v1247 = vpow.pop %v1246
        %v1248 = vsel %vm820, %v1247, 0.0
        %1249 = vadd.xlane.f32.xlu0 %v1248
        %v1250 = vpop.xlane.xlu0 %1249
        %v1251 = vrcp.pop %v1250
        %v1252 = vmul.f32 %v1247, %v1251
        %1253 = vrot.lane.b32.xlu0 %v296, 72
        %v1254 = vpop.permute.xlu0 %1253
        %1255 = vrot.lane.b32.xlu0 %v299, 72
        %v1256 = vpop.permute.xlu0 %1255
        %1257 = vrot.lane.b32.xlu0 %v302, 72
        %v1258 = vpop.permute.xlu0 %1257
        %1259 = vrot.lane.b32.xlu0 %v305, 72
        %v1260 = vpop.permute.xlu0 %1259
        %1261 = vrot.lane.b32.xlu0 %v308, 72
        %v1262 = vpop.permute.xlu0 %1261
        %1263 = vrot.lane.b32.xlu0 %v311, 72
        %v1264 = vpop.permute.xlu0 %1263
        %1265 = vrot.lane.b32.xlu0 %v314, 72
        %v1266 = vpop.permute.xlu0 %1265
        %1267 = vrot.lane.b32.xlu0 %v317, 72
        %v1268 = vpop.permute.xlu0 %1267
        %v1278 = vsel %vm820, %v1252, 0
        %1280 = vmatpush.msra.mxu0 0.0
        %1281 = vmatpush.msra.mxu0 0.0
        %1282 = vmatpush.msra.mxu0 0.0
        %1283 = vmatpush.msra.mxu0 0.0
        %1284 = vmatpush.msra.mxu0 0.0
        %1285 = vmatpush.msra.mxu0 0.0
        %1286 = vmatpush.msra.mxu0 0.0
        %1287 = vmatpush.msra.mxu0 0.0
        %1288 = vmatpush.msra.mxu0 %v1268
        %1289 = vmatpush.msra.mxu0 %v1266
        %1290 = vmatpush.msra.mxu0 %v1264
        %1291 = vmatpush.msra.mxu0 %v1262
        %1292 = vmatpush.msra.mxu0 %v1260
        %1293 = vmatpush.msra.mxu0 %v1258
        %1294 = vmatpush.msra.mxu0 %v1256
        %1295 = vmatpush.msra.mxu0 %v1254
        %1296 = vmatmul.f32.gmra.mxu0 %v1278
        %v1297 = vpop.f32.mrf.mxu0
        %v1298 = vadd.f32 0.0, %v1297
        %1299 = vdwg.mxu0
        %1300 = vrot.lane.b32.xlu0 %v232, 32
        %v1301 = vpop.permute.xlu0 %1300
        %v1304 = vsel %vm346, %v1298, 0
        %1306 = vmatpush.msra.mxu0 0.0
        %1307 = vmatpush.msra.mxu0 0.0
        %1308 = vmatpush.msra.mxu0 0.0
        %1309 = vmatpush.msra.mxu0 0.0
        %1310 = vmatpush.msra.mxu0 0.0
        %1311 = vmatpush.msra.mxu0 0.0
        %1312 = vmatpush.msra.mxu0 0.0
        %1313 = vmatpush.msra.mxu0 0.0
        %1314 = vmatpush.msra.mxu0 0.0
        %1315 = vmatpush.msra.mxu0 0.0
        %1316 = vmatpush.msra.mxu0 0.0
        %1317 = vmatpush.msra.mxu0 0.0
        %1318 = vmatpush.msra.mxu0 0.0
        %1319 = vmatpush.msra.mxu0 0.0
        %1320 = vmatpush.msra.mxu0 0.0
        %1321 = vmatpush.msra.mxu0 %v1301
        %1322 = vmatmul.f32.gmra.mxu0 %v1304
        %v1323 = vpop.f32.mrf.mxu0
        %v1324 = vadd.f32 0.0, %v1323
        %1325 = vdwg.mxu0
        %v1326 = vadd.f32 %v1185, %v1324
        %v1327 = vperm.slane %v234, 4
        %v1328 = vadd.f32 %v1326, %v1327
        %v1329 = vadd.f32 %v748, %v1328
        %v1330 = vsel %vm253, %v1329, 0.0
        %1331 = vadd.xlane.f32.xlu0 %v1330
        %v1332 = vpop.xlane.xlu0 %1331
        %v1333 = vmul.f32 %v1332, %v725
        %v1334 = vsub.f32 %v1329, %v1333
        %v1335 = vmul.f32 %v1334, %v1334
        %v1336 = vsel %vm253, %v1335, 0.0
        %1337 = vadd.xlane.f32.xlu0 %v1336
        %v1338 = vpop.xlane.xlu0 %1337
        %v1339 = vmul.f32 %v1338, %v725
        %v1340 = vadd.f32 %v1339, 1e-05
        %v1341 = vrsqrt.pop %v1340
        %v1342 = vmul.f32 %v1341, %v1340
        %v1343 = vmul.f32 %v1342, %v1341
        %v1344 = vmul.f32 0.5, %v1343
        %v1345 = vsub.f32 1.5, %v1344
        %v1346 = vmul.f32 %v1341, %v1345
        %vm1347 = vweird.f32 %v1340
        %vm1348 = vweird.f32 %v1341
        %vm1349 = vmor %vm1347, %vm1348
        %v1350 = vsel %vm1349, %v1341, %v1346
        %v1351 = vmul.f32 %v1334, %v1350
        %v1352 = vperm.slane %v235, 1
        %v1353 = vmul.f32 %v1351, %v1352
        %v1354 = vperm.slane %v235, 2
        %v1355 = vadd.f32 %v1353, %v1354
        %v1356 = vperm.slane %v234, 5
        %v1358 = vsel %vm253, %v1355, 0
        %1360 = vmatpush.msra.mxu0 0.0
        %1361 = vmatpush.msra.mxu0 0.0
        %1362 = vmatpush.msra.mxu0 0.0
        %1363 = vmatpush.msra.mxu0 0.0
        %1364 = vmatpush.msra.mxu0 0.0
        %1365 = vmatpush.msra.mxu0 0.0
        %1366 = vmatpush.msra.mxu0 0.0
        %1367 = vmatpush.msra.mxu0 0.0
        %1368 = vmatpush.msra.mxu0 0.0
        %1369 = vmatpush.msra.mxu0 0.0
        %1370 = vmatpush.msra.mxu0 0.0
        %1371 = vmatpush.msra.mxu0 0.0
        %1372 = vmatpush.msra.mxu0 %v233
        %1373 = vmatpush.msra.mxu0 %v230
        %1374 = vmatpush.msra.mxu0 %v227
        %1375 = vmatpush.msra.mxu0 %v224
        %1376 = vmatmul.f32.gmra.mxu0 %v1358
        %v1377 = vpop.f32.mrf.mxu0
        %v1378 = vadd.f32 %v1356, %v1377
        %1379 = vdwg.mxu0
        %v1380 = vmax.f32 %v1378, 0.0
        %v1381 = vperm.slane %v234, 6
        %1386 = vrot.lane.b32.xlu0 %v224, 64
        %v1387 = vpop.permute.xlu0 %1386
        %1388 = vrot.lane.b32.xlu0 %v227, 64
        %v1389 = vpop.permute.xlu0 %1388
        %1390 = vrot.lane.b32.xlu0 %v230, 64
        %v1391 = vpop.permute.xlu0 %1390
        %1392 = vrot.lane.b32.xlu0 %v233, 64
        %v1393 = vpop.permute.xlu0 %1392
        %v1395 = vsel %vm820, %v1380, 0
        %v1397 = vsel %vm820, %v1387, 0
        %v1399 = vsel %vm820, %v1389, 0
        %v1401 = vsel %vm820, %v1391, 0
        %v1403 = vsel %vm820, %v1393, 0
        %1405 = vmatpush.xpose.msra.mxu0 0.0
        %1406 = vmatpush.xpose.msra.mxu0 0.0
        %1407 = vmatpush.xpose.msra.mxu0 0.0
        %1408 = vmatpush.xpose.msra.mxu0 0.0
        %1409 = vmatpush.xpose.msra.mxu0 0.0
        %1410 = vmatpush.xpose.msra.mxu0 0.0
        %1411 = vmatpush.xpose.msra.mxu0 0.0
        %1412 = vmatpush.xpose.msra.mxu0 0.0
        %1413 = vmatpush.xpose.msra.mxu0 0.0
        %1414 = vmatpush.xpose.msra.mxu0 0.0
        %1415 = vmatpush.xpose.msra.mxu0 0.0
        %1416 = vmatpush.xpose.msra.mxu0 0.0
        %1417 = vmatpush.xpose.msra.mxu0 %v1403
        %1418 = vmatpush.xpose.msra.mxu0 %v1401
        %1419 = vmatpush.xpose.msra.mxu0 %v1399
        %1420 = vmatpush.xpose.msra.mxu0 %v1397
        %1421 = vmatmul.f32.gmra.mxu0 %v1395
        %v1422 = vpop.f32.mrf.mxu0
        %v1423 = vadd.f32 %v1381, %v1422
        %1424 = vdwg.mxu0
        %v1425 = vadd.f32 %v1355, %v1423
        %v1426 = vsel %vm253, %v1425, 0.0
        %1427 = vadd.xlane.f32.xlu0 %v1426
        %v1428 = vpop.xlane.xlu0 %1427
        %v1429 = vmul.f32 %v1428, %v725
        %v1430 = vsub.f32 %v1425, %v1429
        %v1431 = vmul.f32 %v1430, %v1430
        %v1432 = vsel %vm253, %v1431, 0.0
        %1433 = vadd.xlane.f32.xlu0 %v1432
        %v1434 = vpop.xlane.xlu0 %1433
        %v1435 = vmul.f32 %v1434, %v725
        %v1436 = vadd.f32 %v1435, 1e-05
        %v1437 = vrsqrt.pop %v1436
        %v1438 = vmul.f32 %v1437, %v1436
        %v1439 = vmul.f32 %v1438, %v1437
        %v1440 = vmul.f32 0.5, %v1439
        %v1441 = vsub.f32 1.5, %v1440
        %v1442 = vmul.f32 %v1437, %v1441
        %vm1443 = vweird.f32 %v1436
        %vm1444 = vweird.f32 %v1437
        %vm1445 = vmor %vm1443, %vm1444
        %v1446 = vsel %vm1445, %v1437, %v1442
        %v1447 = vmul.f32 %v1430, %v1446
        %v1448 = vperm.slane %v235, 3
        %v1449 = vmul.f32 %v1447, %v1448
        %v1450 = vperm.slane %v235, 4
        %v1451 = vadd.f32 %v1449, %v1450
        %1452 = vst.msk [vmem:[%s203] sm:$0xff] %vm253, %v1451
        %v1454 = vsel %vm253, %v1451, 0
        %1456 = vmatpush.msra.mxu0 0.0
        %1457 = vmatpush.msra.mxu0 0.0
        %1458 = vmatpush.msra.mxu0 0.0
        %1459 = vmatpush.msra.mxu0 0.0
        %1460 = vmatpush.msra.mxu0 0.0
        %1461 = vmatpush.msra.mxu0 0.0
        %1462 = vmatpush.msra.mxu0 0.0
        %1463 = vmatpush.msra.mxu0 0.0
        %1464 = vmatpush.msra.mxu0 0.0
        %1465 = vmatpush.msra.mxu0 0.0
        %1466 = vmatpush.msra.mxu0 0.0
        %1467 = vmatpush.msra.mxu0 0.0
        %1468 = vmatpush.msra.mxu0 %v231
        %1469 = vmatpush.msra.mxu0 %v228
        %1470 = vmatpush.msra.mxu0 %v225
        %1471 = vmatpush.msra.mxu0 %v222
        %1472 = vmatmul.f32.gmra.mxu0 %v1454
        %v1473 = vpop.f32.mrf.mxu0
        %v1474 = vadd.f32 %v319, %v1473
        %1475 = vdwg.mxu0
        %1477 = vrot.lane.b32.xlu0 %v1474, 96
        %v1478 = vpop.permute.xlu0 %1477
        %v1479 = vsel %vm346, %v1474, 0
        %v1481 = vsel %vm346, %v1478, 0
        %1483 = vmatpush.xpose.msra.mxu0 0.0
        %1484 = vmatpush.xpose.msra.mxu0 0.0
        %1485 = vmatpush.xpose.msra.mxu0 0.0
        %1486 = vmatpush.xpose.msra.mxu0 0.0
        %1487 = vmatpush.xpose.msra.mxu0 0.0
        %1488 = vmatpush.xpose.msra.mxu0 0.0
        %1489 = vmatpush.xpose.msra.mxu0 0.0
        %1490 = vmatpush.xpose.msra.mxu0 0.0
        %1491 = vmatpush.xpose.msra.mxu0 0.0
        %1492 = vmatpush.xpose.msra.mxu0 0.0
        %1493 = vmatpush.xpose.msra.mxu0 0.0
        %1494 = vmatpush.xpose.msra.mxu0 0.0
        %1495 = vmatpush.xpose.msra.mxu0 0.0
        %1496 = vmatpush.xpose.msra.mxu0 0.0
        %1497 = vmatpush.xpose.msra.mxu0 0.0
        %1498 = vmatpush.xpose.msra.mxu0 %v1481
        %1499 = vmatmul.f32.gmra.mxu0 %v1479
        %v1500 = vpop.f32.mrf.mxu0
        %v1501 = vadd.f32 0.0, %v1500
        %1502 = vdwg.mxu0
        %v1503 = vsel %vm346, %v1501, -inf
        %1504 = vmax.xlane.f32.xlu0 %v1503
        %v1505 = vpop.xlane.xlu0 %1504
        %v1506 = vsub.f32 %v1501, %v1505
        %v1507 = vmul.f32 %v1506, 1.442695
        %v1508 = vpow.pop %v1507
        %v1509 = vsel %vm346, %v1508, 0.0
        %1510 = vadd.xlane.f32.xlu0 %v1509
        %v1511 = vpop.xlane.xlu0 %1510
        %v1512 = vrcp.pop %v1511
        %v1513 = vmul.f32 %v1508, %v1512
        %1514 = vrot.lane.b32.xlu0 %v1474, 64
        %v1515 = vpop.permute.xlu0 %1514
        %v1518 = vsel %vm346, %v1513, 0
        %1520 = vmatpush.msra.mxu0 0.0
        %1521 = vmatpush.msra.mxu0 0.0
        %1522 = vmatpush.msra.mxu0 0.0
        %1523 = vmatpush.msra.mxu0 0.0
        %1524 = vmatpush.msra.mxu0 0.0
        %1525 = vmatpush.msra.mxu0 0.0
        %1526 = vmatpush.msra.mxu0 0.0
        %1527 = vmatpush.msra.mxu0 0.0
        %1528 = vmatpush.msra.mxu0 0.0
        %1529 = vmatpush.msra.mxu0 0.0
        %1530 = vmatpush.msra.mxu0 0.0
        %1531 = vmatpush.msra.mxu0 0.0
        %1532 = vmatpush.msra.mxu0 0.0
        %1533 = vmatpush.msra.mxu0 0.0
        %1534 = vmatpush.msra.mxu0 0.0
        %1535 = vmatpush.msra.mxu0 %v1515
        %1536 = vmatmul.f32.gmra.mxu0 %v1518
        %v1537 = vpop.f32.mrf.mxu0
        %v1538 = vadd.f32 0.0, %v1537
        %1539 = vdwg.mxu0
        %1540 = vrot.lane.b32.xlu0 %v1474, 120
        %v1541 = vpop.permute.xlu0 %1540
        %1542 = vrot.lane.b32.xlu0 %v1474, 88
        %v1543 = vpop.permute.xlu0 %1542
        %v1544 = vsel %vm346, %v1541, 0
        %v1546 = vsel %vm346, %v1543, 0
        %1548 = vmatpush.xpose.msra.mxu0 0.0
        %1549 = vmatpush.xpose.msra.mxu0 0.0
        %1550 = vmatpush.xpose.msra.mxu0 0.0
        %1551 = vmatpush.xpose.msra.mxu0 0.0
        %1552 = vmatpush.xpose.msra.mxu0 0.0
        %1553 = vmatpush.xpose.msra.mxu0 0.0
        %1554 = vmatpush.xpose.msra.mxu0 0.0
        %1555 = vmatpush.xpose.msra.mxu0 0.0
        %1556 = vmatpush.xpose.msra.mxu0 0.0
        %1557 = vmatpush.xpose.msra.mxu0 0.0
        %1558 = vmatpush.xpose.msra.mxu0 0.0
        %1559 = vmatpush.xpose.msra.mxu0 0.0
        %1560 = vmatpush.xpose.msra.mxu0 0.0
        %1561 = vmatpush.xpose.msra.mxu0 0.0
        %1562 = vmatpush.xpose.msra.mxu0 0.0
        %1563 = vmatpush.xpose.msra.mxu0 %v1546
        %1564 = vmatmul.f32.gmra.mxu0 %v1544
        %v1565 = vpop.f32.mrf.mxu0
        %v1566 = vadd.f32 0.0, %v1565
        %1567 = vdwg.mxu0
        %v1568 = vsel %vm346, %v1566, -inf
        %1569 = vmax.xlane.f32.xlu0 %v1568
        %v1570 = vpop.xlane.xlu0 %1569
        %v1571 = vsub.f32 %v1566, %v1570
        %v1572 = vmul.f32 %v1571, 1.442695
        %v1573 = vpow.pop %v1572
        %v1574 = vsel %vm346, %v1573, 0.0
        %1575 = vadd.xlane.f32.xlu0 %v1574
        %v1576 = vpop.xlane.xlu0 %1575
        %v1577 = vrcp.pop %v1576
        %v1578 = vmul.f32 %v1573, %v1577
        %1579 = vrot.lane.b32.xlu0 %v1474, 56
        %v1580 = vpop.permute.xlu0 %1579
        %v1583 = vsel %vm346, %v1578, 0
        %1585 = vmatpush.msra.mxu0 0.0
        %1586 = vmatpush.msra.mxu0 0.0
        %1587 = vmatpush.msra.mxu0 0.0
        %1588 = vmatpush.msra.mxu0 0.0
        %1589 = vmatpush.msra.mxu0 0.0
        %1590 = vmatpush.msra.mxu0 0.0
        %1591 = vmatpush.msra.mxu0 0.0
        %1592 = vmatpush.msra.mxu0 0.0
        %1593 = vmatpush.msra.mxu0 0.0
        %1594 = vmatpush.msra.mxu0 0.0
        %1595 = vmatpush.msra.mxu0 0.0
        %1596 = vmatpush.msra.mxu0 0.0
        %1597 = vmatpush.msra.mxu0 0.0
        %1598 = vmatpush.msra.mxu0 0.0
        %1599 = vmatpush.msra.mxu0 0.0
        %1600 = vmatpush.msra.mxu0 %v1580
        %1601 = vmatmul.f32.gmra.mxu0 %v1583
        %v1602 = vpop.f32.mrf.mxu0
        %v1603 = vadd.f32 0.0, %v1602
        %1604 = vdwg.mxu0
        %v1606 = vsel %vm346, %v1603, 0
        %1608 = vmatpush.msra.mxu0 0.0
        %1609 = vmatpush.msra.mxu0 0.0
        %1610 = vmatpush.msra.mxu0 0.0
        %1611 = vmatpush.msra.mxu0 0.0
        %1612 = vmatpush.msra.mxu0 0.0
        %1613 = vmatpush.msra.mxu0 0.0
        %1614 = vmatpush.msra.mxu0 0.0
        %1615 = vmatpush.msra.mxu0 0.0
        %1616 = vmatpush.msra.mxu0 0.0
        %1617 = vmatpush.msra.mxu0 0.0
        %1618 = vmatpush.msra.mxu0 0.0
        %1619 = vmatpush.msra.mxu0 0.0
        %1620 = vmatpush.msra.mxu0 0.0
        %1621 = vmatpush.msra.mxu0 0.0
        %1622 = vmatpush.msra.mxu0 0.0
        %1623 = vmatpush.msra.mxu0 %v475
        %1624 = vmatmul.f32.gmra.mxu0 %v1606
        %v1625 = vpop.f32.mrf.mxu0
        %v1626 = vadd.f32 0.0, %v1625
        %1627 = vdwg.mxu0
        %v1629 = vsel %vm346, %v1538, 0
        %1631 = vmatpush.msra.mxu0 0.0
        %1632 = vmatpush.msra.mxu0 0.0
        %1633 = vmatpush.msra.mxu0 0.0
        %1634 = vmatpush.msra.mxu0 0.0
        %1635 = vmatpush.msra.mxu0 0.0
        %1636 = vmatpush.msra.mxu0 0.0
        %1637 = vmatpush.msra.mxu0 0.0
        %1638 = vmatpush.msra.mxu0 0.0
        %1639 = vmatpush.msra.mxu0 0.0
        %1640 = vmatpush.msra.mxu0 0.0
        %1641 = vmatpush.msra.mxu0 0.0
        %1642 = vmatpush.msra.mxu0 0.0
        %1643 = vmatpush.msra.mxu0 0.0
        %1644 = vmatpush.msra.mxu0 0.0
        %1645 = vmatpush.msra.mxu0 0.0
        %1646 = vmatpush.msra.mxu0 %v502
        %1647 = vmatmul.f32.gmra.mxu0 %v1629
        %v1648 = vpop.f32.mrf.mxu0
        %v1649 = vadd.f32 %v1626, %v1648
        %1650 = vdwg.mxu0
        %1651 = vrot.lane.b32.xlu0 %v1474, 112
        %v1652 = vpop.permute.xlu0 %1651
        %1653 = vrot.lane.b32.xlu0 %v1474, 80
        %v1654 = vpop.permute.xlu0 %1653
        %v1655 = vsel %vm346, %v1652, 0
        %v1657 = vsel %vm346, %v1654, 0
        %1659 = vmatpush.xpose.msra.mxu0 0.0
        %1660 = vmatpush.xpose.msra.mxu0 0.0
        %1661 = vmatpush.xpose.msra.mxu0 0.0
        %1662 = vmatpush.xpose.msra.mxu0 0.0
        %1663 = vmatpush.xpose.msra.mxu0 0.0
        %1664 = vmatpush.xpose.msra.mxu0 0.0
        %1665 = vmatpush.xpose.msra.mxu0 0.0
        %1666 = vmatpush.xpose.msra.mxu0 0.0
        %1667 = vmatpush.xpose.msra.mxu0 0.0
        %1668 = vmatpush.xpose.msra.mxu0 0.0
        %1669 = vmatpush.xpose.msra.mxu0 0.0
        %1670 = vmatpush.xpose.msra.mxu0 0.0
        %1671 = vmatpush.xpose.msra.mxu0 0.0
        %1672 = vmatpush.xpose.msra.mxu0 0.0
        %1673 = vmatpush.xpose.msra.mxu0 0.0
        %1674 = vmatpush.xpose.msra.mxu0 %v1657
        %1675 = vmatmul.f32.gmra.mxu0 %v1655
        %v1676 = vpop.f32.mrf.mxu0
        %v1677 = vadd.f32 0.0, %v1676
        %1678 = vdwg.mxu0
        %v1679 = vsel %vm346, %v1677, -inf
        %1680 = vmax.xlane.f32.xlu0 %v1679
        %v1681 = vpop.xlane.xlu0 %1680
        %v1682 = vsub.f32 %v1677, %v1681
        %v1683 = vmul.f32 %v1682, 1.442695
        %v1684 = vpow.pop %v1683
        %v1685 = vsel %vm346, %v1684, 0.0
        %1686 = vadd.xlane.f32.xlu0 %v1685
        %v1687 = vpop.xlane.xlu0 %1686
        %v1688 = vrcp.pop %v1687
        %v1689 = vmul.f32 %v1684, %v1688
        %1690 = vrot.lane.b32.xlu0 %v1474, 48
        %v1691 = vpop.permute.xlu0 %1690
        %v1694 = vsel %vm346, %v1689, 0
        %1696 = vmatpush.msra.mxu0 0.0
        %1697 = vmatpush.msra.mxu0 0.0
        %1698 = vmatpush.msra.mxu0 0.0
        %1699 = vmatpush.msra.mxu0 0.0
        %1700 = vmatpush.msra.mxu0 0.0
        %1701 = vmatpush.msra.mxu0 0.0
        %1702 = vmatpush.msra.mxu0 0.0
        %1703 = vmatpush.msra.mxu0 0.0
        %1704 = vmatpush.msra.mxu0 0.0
        %1705 = vmatpush.msra.mxu0 0.0
        %1706 = vmatpush.msra.mxu0 0.0
        %1707 = vmatpush.msra.mxu0 0.0
        %1708 = vmatpush.msra.mxu0 0.0
        %1709 = vmatpush.msra.mxu0 0.0
        %1710 = vmatpush.msra.mxu0 0.0
        %1711 = vmatpush.msra.mxu0 %v1691
        %1712 = vmatmul.f32.gmra.mxu0 %v1694
        %v1713 = vpop.f32.mrf.mxu0
        %v1714 = vadd.f32 0.0, %v1713
        %1715 = vdwg.mxu0
        %v1717 = vsel %vm346, %v1714, 0
        %1719 = vmatpush.msra.mxu0 0.0
        %1720 = vmatpush.msra.mxu0 0.0
        %1721 = vmatpush.msra.mxu0 0.0
        %1722 = vmatpush.msra.mxu0 0.0
        %1723 = vmatpush.msra.mxu0 0.0
        %1724 = vmatpush.msra.mxu0 0.0
        %1725 = vmatpush.msra.mxu0 0.0
        %1726 = vmatpush.msra.mxu0 0.0
        %1727 = vmatpush.msra.mxu0 0.0
        %1728 = vmatpush.msra.mxu0 0.0
        %1729 = vmatpush.msra.mxu0 0.0
        %1730 = vmatpush.msra.mxu0 0.0
        %1731 = vmatpush.msra.mxu0 0.0
        %1732 = vmatpush.msra.mxu0 0.0
        %1733 = vmatpush.msra.mxu0 0.0
        %1734 = vmatpush.msra.mxu0 %v594
        %1735 = vmatmul.f32.gmra.mxu0 %v1717
        %v1736 = vpop.f32.mrf.mxu0
        %v1737 = vadd.f32 0.0, %v1736
        %1738 = vdwg.mxu0
        %v1739 = vadd.f32 %v1649, %v1737
        %1740 = vrot.lane.b32.xlu0 %v1474, 104
        %v1741 = vpop.permute.xlu0 %1740
        %1742 = vrot.lane.b32.xlu0 %v1474, 72
        %v1743 = vpop.permute.xlu0 %1742
        %v1744 = vsel %vm346, %v1741, 0
        %v1746 = vsel %vm346, %v1743, 0
        %1748 = vmatpush.xpose.msra.mxu0 0.0
        %1749 = vmatpush.xpose.msra.mxu0 0.0
        %1750 = vmatpush.xpose.msra.mxu0 0.0
        %1751 = vmatpush.xpose.msra.mxu0 0.0
        %1752 = vmatpush.xpose.msra.mxu0 0.0
        %1753 = vmatpush.xpose.msra.mxu0 0.0
        %1754 = vmatpush.xpose.msra.mxu0 0.0
        %1755 = vmatpush.xpose.msra.mxu0 0.0
        %1756 = vmatpush.xpose.msra.mxu0 0.0
        %1757 = vmatpush.xpose.msra.mxu0 0.0
        %1758 = vmatpush.xpose.msra.mxu0 0.0
        %1759 = vmatpush.xpose.msra.mxu0 0.0
        %1760 = vmatpush.xpose.msra.mxu0 0.0
        %1761 = vmatpush.xpose.msra.mxu0 0.0
        %1762 = vmatpush.xpose.msra.mxu0 0.0
        %1763 = vmatpush.xpose.msra.mxu0 %v1746
        %1764 = vmatmul.f32.gmra.mxu0 %v1744
        %v1765 = vpop.f32.mrf.mxu0
        %v1766 = vadd.f32 0.0, %v1765
        %1767 = vdwg.mxu0
        %v1768 = vsel %vm346, %v1766, -inf
        %1769 = vmax.xlane.f32.xlu0 %v1768
        %v1770 = vpop.xlane.xlu0 %1769
        %v1771 = vsub.f32 %v1766, %v1770
        %v1772 = vmul.f32 %v1771, 1.442695
        %v1773 = vpow.pop %v1772
        %v1774 = vsel %vm346, %v1773, 0.0
        %1775 = vadd.xlane.f32.xlu0 %v1774
        %v1776 = vpop.xlane.xlu0 %1775
        %v1777 = vrcp.pop %v1776
        %v1778 = vmul.f32 %v1773, %v1777
        %1779 = vrot.lane.b32.xlu0 %v1474, 40
        %v1780 = vpop.permute.xlu0 %1779
        %v1783 = vsel %vm346, %v1778, 0
        %1785 = vmatpush.msra.mxu0 0.0
        %1786 = vmatpush.msra.mxu0 0.0
        %1787 = vmatpush.msra.mxu0 0.0
        %1788 = vmatpush.msra.mxu0 0.0
        %1789 = vmatpush.msra.mxu0 0.0
        %1790 = vmatpush.msra.mxu0 0.0
        %1791 = vmatpush.msra.mxu0 0.0
        %1792 = vmatpush.msra.mxu0 0.0
        %1793 = vmatpush.msra.mxu0 0.0
        %1794 = vmatpush.msra.mxu0 0.0
        %1795 = vmatpush.msra.mxu0 0.0
        %1796 = vmatpush.msra.mxu0 0.0
        %1797 = vmatpush.msra.mxu0 0.0
        %1798 = vmatpush.msra.mxu0 0.0
        %1799 = vmatpush.msra.mxu0 0.0
        %1800 = vmatpush.msra.mxu0 %v1780
        %1801 = vmatmul.f32.gmra.mxu0 %v1783
        %v1802 = vpop.f32.mrf.mxu0
        %v1803 = vadd.f32 0.0, %v1802
        %1804 = vdwg.mxu0
        %v1806 = vsel %vm346, %v1803, 0
        %1808 = vmatpush.msra.mxu0 0.0
        %1809 = vmatpush.msra.mxu0 0.0
        %1810 = vmatpush.msra.mxu0 0.0
        %1811 = vmatpush.msra.mxu0 0.0
        %1812 = vmatpush.msra.mxu0 0.0
        %1813 = vmatpush.msra.mxu0 0.0
        %1814 = vmatpush.msra.mxu0 0.0
        %1815 = vmatpush.msra.mxu0 0.0
        %1816 = vmatpush.msra.mxu0 0.0
        %1817 = vmatpush.msra.mxu0 0.0
        %1818 = vmatpush.msra.mxu0 0.0
        %1819 = vmatpush.msra.mxu0 0.0
        %1820 = vmatpush.msra.mxu0 0.0
        %1821 = vmatpush.msra.mxu0 0.0
        %1822 = vmatpush.msra.mxu0 0.0
        %1823 = vmatpush.msra.mxu0 %v687
        %1824 = vmatmul.f32.gmra.mxu0 %v1806
        %v1825 = vpop.f32.mrf.mxu0
        %v1826 = vadd.f32 0.0, %v1825
        %1827 = vdwg.mxu0
        %v1828 = vadd.f32 %v1739, %v1826
        %v1829 = vadd.f32 %v1828, %v713
        %v1830 = vadd.f32 %v1451, %v1829
        %v1831 = vsel %vm253, %v1830, 0.0
        %1832 = vadd.xlane.f32.xlu0 %v1831
        %v1833 = vpop.xlane.xlu0 %1832
        %v1834 = vmul.f32 %v1833, %v725
        %v1835 = vsub.f32 %v1830, %v1834
        %v1836 = vmul.f32 %v1835, %v1835
        %v1837 = vsel %vm253, %v1836, 0.0
        %1838 = vadd.xlane.f32.xlu0 %v1837
        %v1839 = vpop.xlane.xlu0 %1838
        %v1840 = vmul.f32 %v1839, %v725
        %v1841 = vadd.f32 %v1840, 1e-05
        %v1842 = vrsqrt.pop %v1841
        %v1843 = vmul.f32 %v1842, %v1841
        %v1844 = vmul.f32 %v1843, %v1842
        %v1845 = vmul.f32 0.5, %v1844
        %v1846 = vsub.f32 1.5, %v1845
        %v1847 = vmul.f32 %v1842, %v1846
        %vm1848 = vweird.f32 %v1841
        %vm1849 = vweird.f32 %v1842
        %vm1850 = vmor %vm1848, %vm1849
        %v1851 = vsel %vm1850, %v1842, %v1847
        %v1852 = vmul.f32 %v1835, %v1851
        %v1853 = vmul.f32 %v1852, %v745
        %v1854 = vadd.f32 %v1853, %v747
        %v1856 = vsel %vm253, %v1854, 0
        %1858 = vmatpush.msra.mxu0 0.0
        %1859 = vmatpush.msra.mxu0 0.0
        %1860 = vmatpush.msra.mxu0 0.0
        %1861 = vmatpush.msra.mxu0 0.0
        %1862 = vmatpush.msra.mxu0 0.0
        %1863 = vmatpush.msra.mxu0 0.0
        %1864 = vmatpush.msra.mxu0 0.0
        %1865 = vmatpush.msra.mxu0 0.0
        %1866 = vmatpush.msra.mxu0 0.0
        %1867 = vmatpush.msra.mxu0 0.0
        %1868 = vmatpush.msra.mxu0 0.0
        %1869 = vmatpush.msra.mxu0 0.0
        %1870 = vmatpush.msra.mxu0 %v232
        %1871 = vmatpush.msra.mxu0 %v229
        %1872 = vmatpush.msra.mxu0 %v226
        %1873 = vmatpush.msra.mxu0 %v223
        %1874 = vmatmul.f32.gmra.mxu0 %v1856
        %v1875 = vpop.f32.mrf.mxu0
        %v1876 = vadd.f32 %v749, %v1875
        %1877 = vdwg.mxu0
        %v1879 = vsel %vm346, %v1876, 0
        %1881 = vmatpush.xpose.msra.mxu0 0.0
        %1882 = vmatpush.xpose.msra.mxu0 0.0
        %1883 = vmatpush.xpose.msra.mxu0 0.0
        %1884 = vmatpush.xpose.msra.mxu0 0.0
        %1885 = vmatpush.xpose.msra.mxu0 0.0
        %1886 = vmatpush.xpose.msra.mxu0 0.0
        %1887 = vmatpush.xpose.msra.mxu0 0.0
        %1888 = vmatpush.xpose.msra.mxu0 0.0
        %1889 = vmatpush.xpose.msra.mxu0 %v798
        %1890 = vmatpush.xpose.msra.mxu0 %v795
        %1891 = vmatpush.xpose.msra.mxu0 %v792
        %1892 = vmatpush.xpose.msra.mxu0 %v789
        %1893 = vmatpush.xpose.msra.mxu0 %v786
        %1894 = vmatpush.xpose.msra.mxu0 %v783
        %1895 = vmatpush.xpose.msra.mxu0 %v780
        %1896 = vmatpush.xpose.msra.mxu0 %v777
        %1897 = vmatmul.f32.gmra.mxu0 %v1879
        %v1898 = vpop.f32.mrf.mxu0
        %v1899 = vadd.f32 0.0, %v1898
        %1900 = vdwg.mxu0
        %v1901 = vsel %vm820, %v1899, -inf
        %1902 = vmax.xlane.f32.xlu0 %v1901
        %v1903 = vpop.xlane.xlu0 %1902
        %v1904 = vsub.f32 %v1899, %v1903
        %v1905 = vmul.f32 %v1904, 1.442695
        %v1906 = vpow.pop %v1905
        %v1907 = vsel %vm820, %v1906, 0.0
        %1908 = vadd.xlane.f32.xlu0 %v1907
        %v1909 = vpop.xlane.xlu0 %1908
        %v1910 = vrcp.pop %v1909
        %v1911 = vmul.f32 %v1906, %v1910
        %v1913 = vsel %vm820, %v1911, 0
        %1915 = vmatpush.msra.mxu0 0.0
        %1916 = vmatpush.msra.mxu0 0.0
        %1917 = vmatpush.msra.mxu0 0.0
        %1918 = vmatpush.msra.mxu0 0.0
        %1919 = vmatpush.msra.mxu0 0.0
        %1920 = vmatpush.msra.mxu0 0.0
        %1921 = vmatpush.msra.mxu0 0.0
        %1922 = vmatpush.msra.mxu0 0.0
        %1923 = vmatpush.msra.mxu0 %v847
        %1924 = vmatpush.msra.mxu0 %v845
        %1925 = vmatpush.msra.mxu0 %v843
        %1926 = vmatpush.msra.mxu0 %v841
        %1927 = vmatpush.msra.mxu0 %v839
        %1928 = vmatpush.msra.mxu0 %v837
        %1929 = vmatpush.msra.mxu0 %v835
        %1930 = vmatpush.msra.mxu0 %v833
        %1931 = vmatmul.f32.gmra.mxu0 %v1913
        %v1932 = vpop.f32.mrf.mxu0
        %v1933 = vadd.f32 0.0, %v1932
        %1934 = vdwg.mxu0
        %1935 = vrot.lane.b32.xlu0 %v1876, 120
        %v1936 = vpop.permute.xlu0 %1935
        %v1937 = vsel %vm346, %v1936, 0
        %1939 = vmatpush.xpose.msra.mxu0 0.0
        %1940 = vmatpush.xpose.msra.mxu0 0.0
        %1941 = vmatpush.xpose.msra.mxu0 0.0
        %1942 = vmatpush.xpose.msra.mxu0 0.0
        %1943 = vmatpush.xpose.msra.mxu0 0.0
        %1944 = vmatpush.xpose.msra.mxu0 0.0
        %1945 = vmatpush.xpose.msra.mxu0 0.0
        %1946 = vmatpush.xpose.msra.mxu0 0.0
        %1947 = vmatpush.xpose.msra.mxu0 %v913
        %1948 = vmatpush.xpose.msra.mxu0 %v911
        %1949 = vmatpush.xpose.msra.mxu0 %v909
        %1950 = vmatpush.xpose.msra.mxu0 %v907
        %1951 = vmatpush.xpose.msra.mxu0 %v905
        %1952 = vmatpush.xpose.msra.mxu0 %v903
        %1953 = vmatpush.xpose.msra.mxu0 %v901
        %1954 = vmatpush.xpose.msra.mxu0 %v899
        %1955 = vmatmul.f32.gmra.mxu0 %v1937
        %v1956 = vpop.f32.mrf.mxu0
        %v1957 = vadd.f32 0.0, %v1956
        %1958 = vdwg.mxu0
        %v1959 = vsel %vm820, %v1957, -inf
        %1960 = vmax.xlane.f32.xlu0 %v1959
        %v1961 = vpop.xlane.xlu0 %1960
        %v1962 = vsub.f32 %v1957, %v1961
        %v1963 = vmul.f32 %v1962, 1.442695
        %v1964 = vpow.pop %v1963
        %v1965 = vsel %vm820, %v1964, 0.0
        %1966 = vadd.xlane.f32.xlu0 %v1965
        %v1967 = vpop.xlane.xlu0 %1966
        %v1968 = vrcp.pop %v1967
        %v1969 = vmul.f32 %v1964, %v1968
        %v1971 = vsel %vm820, %v1969, 0
        %1973 = vmatpush.msra.mxu0 0.0
        %1974 = vmatpush.msra.mxu0 0.0
        %1975 = vmatpush.msra.mxu0 0.0
        %1976 = vmatpush.msra.mxu0 0.0
        %1977 = vmatpush.msra.mxu0 0.0
        %1978 = vmatpush.msra.mxu0 0.0
        %1979 = vmatpush.msra.mxu0 0.0
        %1980 = vmatpush.msra.mxu0 0.0
        %1981 = vmatpush.msra.mxu0 %v961
        %1982 = vmatpush.msra.mxu0 %v959
        %1983 = vmatpush.msra.mxu0 %v957
        %1984 = vmatpush.msra.mxu0 %v955
        %1985 = vmatpush.msra.mxu0 %v953
        %1986 = vmatpush.msra.mxu0 %v951
        %1987 = vmatpush.msra.mxu0 %v949
        %1988 = vmatpush.msra.mxu0 %v947
        %1989 = vmatmul.f32.gmra.mxu0 %v1971
        %v1990 = vpop.f32.mrf.mxu0
        %v1991 = vadd.f32 0.0, %v1990
        %1992 = vdwg.mxu0
        %v1994 = vsel %vm346, %v1991, 0
        %1996 = vmatpush.msra.mxu0 0.0
        %1997 = vmatpush.msra.mxu0 0.0
        %1998 = vmatpush.msra.mxu0 0.0
        %1999 = vmatpush.msra.mxu0 0.0
        %2000 = vmatpush.msra.mxu0 0.0
        %2001 = vmatpush.msra.mxu0 0.0
        %2002 = vmatpush.msra.mxu0 0.0
        %2003 = vmatpush.msra.mxu0 0.0
        %2004 = vmatpush.msra.mxu0 0.0
        %2005 = vmatpush.msra.mxu0 0.0
        %2006 = vmatpush.msra.mxu0 0.0
        %2007 = vmatpush.msra.mxu0 0.0
        %2008 = vmatpush.msra.mxu0 0.0
        %2009 = vmatpush.msra.mxu0 0.0
        %2010 = vmatpush.msra.mxu0 0.0
        %2011 = vmatpush.msra.mxu0 %v994
        %2012 = vmatmul.f32.gmra.mxu0 %v1994
        %v2013 = vpop.f32.mrf.mxu0
        %v2014 = vadd.f32 0.0, %v2013
        %2015 = vdwg.mxu0
        %v2017 = vsel %vm346, %v1933, 0
        %2019 = vmatpush.msra.mxu0 0.0
        %2020 = vmatpush.msra.mxu0 0.0
        %2021 = vmatpush.msra.mxu0 0.0
        %2022 = vmatpush.msra.mxu0 0.0
        %2023 = vmatpush.msra.mxu0 0.0
        %2024 = vmatpush.msra.mxu0 0.0
        %2025 = vmatpush.msra.mxu0 0.0
        %2026 = vmatpush.msra.mxu0 0.0
        %2027 = vmatpush.msra.mxu0 0.0
        %2028 = vmatpush.msra.mxu0 0.0
        %2029 = vmatpush.msra.mxu0 0.0
        %2030 = vmatpush.msra.mxu0 0.0
        %2031 = vmatpush.msra.mxu0 0.0
        %2032 = vmatpush.msra.mxu0 0.0
        %2033 = vmatpush.msra.mxu0 0.0
        %2034 = vmatpush.msra.mxu0 %v1020
        %2035 = vmatmul.f32.gmra.mxu0 %v2017
        %v2036 = vpop.f32.mrf.mxu0
        %v2037 = vadd.f32 %v2014, %v2036
        %2038 = vdwg.mxu0
        %2039 = vrot.lane.b32.xlu0 %v1876, 112
        %v2040 = vpop.permute.xlu0 %2039
        %v2041 = vsel %vm346, %v2040, 0
        %2043 = vmatpush.xpose.msra.mxu0 0.0
        %2044 = vmatpush.xpose.msra.mxu0 0.0
        %2045 = vmatpush.xpose.msra.mxu0 0.0
        %2046 = vmatpush.xpose.msra.mxu0 0.0
        %2047 = vmatpush.xpose.msra.mxu0 0.0
        %2048 = vmatpush.xpose.msra.mxu0 0.0
        %2049 = vmatpush.xpose.msra.mxu0 0.0
        %2050 = vmatpush.xpose.msra.mxu0 0.0
        %2051 = vmatpush.xpose.msra.mxu0 %v1079
        %2052 = vmatpush.xpose.msra.mxu0 %v1077
        %2053 = vmatpush.xpose.msra.mxu0 %v1075
        %2054 = vmatpush.xpose.msra.mxu0 %v1073
        %2055 = vmatpush.xpose.msra.mxu0 %v1071
        %2056 = vmatpush.xpose.msra.mxu0 %v1069
        %2057 = vmatpush.xpose.msra.mxu0 %v1067
        %2058 = vmatpush.xpose.msra.mxu0 %v1065
        %2059 = vmatmul.f32.gmra.mxu0 %v2041
        %v2060 = vpop.f32.mrf.mxu0
        %v2061 = vadd.f32 0.0, %v2060
        %2062 = vdwg.mxu0
        %v2063 = vsel %vm820, %v2061, -inf
        %2064 = vmax.xlane.f32.xlu0 %v2063
        %v2065 = vpop.xlane.xlu0 %2064
        %v2066 = vsub.f32 %v2061, %v2065
        %v2067 = vmul.f32 %v2066, 1.442695
        %v2068 = vpow.pop %v2067
        %v2069 = vsel %vm820, %v2068, 0.0
        %2070 = vadd.xlane.f32.xlu0 %v2069
        %v2071 = vpop.xlane.xlu0 %2070
        %v2072 = vrcp.pop %v2071
        %v2073 = vmul.f32 %v2068, %v2072
        %v2075 = vsel %vm820, %v2073, 0
        %2077 = vmatpush.msra.mxu0 0.0
        %2078 = vmatpush.msra.mxu0 0.0
        %2079 = vmatpush.msra.mxu0 0.0
        %2080 = vmatpush.msra.mxu0 0.0
        %2081 = vmatpush.msra.mxu0 0.0
        %2082 = vmatpush.msra.mxu0 0.0
        %2083 = vmatpush.msra.mxu0 0.0
        %2084 = vmatpush.msra.mxu0 0.0
        %2085 = vmatpush.msra.mxu0 %v1127
        %2086 = vmatpush.msra.mxu0 %v1125
        %2087 = vmatpush.msra.mxu0 %v1123
        %2088 = vmatpush.msra.mxu0 %v1121
        %2089 = vmatpush.msra.mxu0 %v1119
        %2090 = vmatpush.msra.mxu0 %v1117
        %2091 = vmatpush.msra.mxu0 %v1115
        %2092 = vmatpush.msra.mxu0 %v1113
        %2093 = vmatmul.f32.gmra.mxu0 %v2075
        %v2094 = vpop.f32.mrf.mxu0
        %v2095 = vadd.f32 0.0, %v2094
        %2096 = vdwg.mxu0
        %v2098 = vsel %vm346, %v2095, 0
        %2100 = vmatpush.msra.mxu0 0.0
        %2101 = vmatpush.msra.mxu0 0.0
        %2102 = vmatpush.msra.mxu0 0.0
        %2103 = vmatpush.msra.mxu0 0.0
        %2104 = vmatpush.msra.mxu0 0.0
        %2105 = vmatpush.msra.mxu0 0.0
        %2106 = vmatpush.msra.mxu0 0.0
        %2107 = vmatpush.msra.mxu0 0.0
        %2108 = vmatpush.msra.mxu0 0.0
        %2109 = vmatpush.msra.mxu0 0.0
        %2110 = vmatpush.msra.mxu0 0.0
        %2111 = vmatpush.msra.mxu0 0.0
        %2112 = vmatpush.msra.mxu0 0.0
        %2113 = vmatpush.msra.mxu0 0.0
        %2114 = vmatpush.msra.mxu0 0.0
        %2115 = vmatpush.msra.mxu0 %v1160
        %2116 = vmatmul.f32.gmra.mxu0 %v2098
        %v2117 = vpop.f32.mrf.mxu0
        %v2118 = vadd.f32 0.0, %v2117
        %2119 = vdwg.mxu0
        %v2120 = vadd.f32 %v2037, %v2118
        %2121 = vrot.lane.b32.xlu0 %v1876, 104
        %v2122 = vpop.permute.xlu0 %2121
        %v2123 = vsel %vm346, %v2122, 0
        %2125 = vmatpush.xpose.msra.mxu0 0.0
        %2126 = vmatpush.xpose.msra.mxu0 0.0
        %2127 = vmatpush.xpose.msra.mxu0 0.0
        %2128 = vmatpush.xpose.msra.mxu0 0.0
        %2129 = vmatpush.xpose.msra.mxu0 0.0
        %2130 = vmatpush.xpose.msra.mxu0 0.0
        %2131 = vmatpush.xpose.msra.mxu0 0.0
        %2132 = vmatpush.xpose.msra.mxu0 0.0
        %2133 = vmatpush.xpose.msra.mxu0 %v1220
        %2134 = vmatpush.xpose.msra.mxu0 %v1218
        %2135 = vmatpush.xpose.msra.mxu0 %v1216
        %2136 = vmatpush.xpose.msra.mxu0 %v1214
        %2137 = vmatpush.xpose.msra.mxu0 %v1212
        %2138 = vmatpush.xpose.msra.mxu0 %v1210
        %2139 = vmatpush.xpose.msra.mxu0 %v1208
        %2140 = vmatpush.xpose.msra.mxu0 %v1206
        %2141 = vmatmul.f32.gmra.mxu0 %v2123
        %v2142 = vpop.f32.mrf.mxu0
        %v2143 = vadd.f32 0.0, %v2142
        %2144 = vdwg.mxu0
        %v2145 = vsel %vm820, %v2143, -inf
        %2146 = vmax.xlane.f32.xlu0 %v2145
        %v2147 = vpop.xlane.xlu0 %2146
        %v2148 = vsub.f32 %v2143, %v2147
        %v2149 = vmul.f32 %v2148, 1.442695
        %v2150 = vpow.pop %v2149
        %v2151 = vsel %vm820, %v2150, 0.0
        %2152 = vadd.xlane.f32.xlu0 %v2151
        %v2153 = vpop.xlane.xlu0 %2152
        %v2154 = vrcp.pop %v2153
        %v2155 = vmul.f32 %v2150, %v2154
        %v2157 = vsel %vm820, %v2155, 0
        %2159 = vmatpush.msra.mxu0 0.0
        %2160 = vmatpush.msra.mxu0 0.0
        %2161 = vmatpush.msra.mxu0 0.0
        %2162 = vmatpush.msra.mxu0 0.0
        %2163 = vmatpush.msra.mxu0 0.0
        %2164 = vmatpush.msra.mxu0 0.0
        %2165 = vmatpush.msra.mxu0 0.0
        %2166 = vmatpush.msra.mxu0 0.0
        %2167 = vmatpush.msra.mxu0 %v1268
        %2168 = vmatpush.msra.mxu0 %v1266
        %2169 = vmatpush.msra.mxu0 %v1264
        %2170 = vmatpush.msra.mxu0 %v1262
        %2171 = vmatpush.msra.mxu0 %v1260
        %2172 = vmatpush.msra.mxu0 %v1258
        %2173 = vmatpush.msra.mxu0 %v1256
        %2174 = vmatpush.msra.mxu0 %v1254
        %2175 = vmatmul.f32.gmra.mxu0 %v2157
        %v2176 = vpop.f32.mrf.mxu0
        %v2177 = vadd.f32 0.0, %v2176
        %2178 = vdwg.mxu0
        %v2180 = vsel %vm346, %v2177, 0
        %2182 = vmatpush.msra.mxu0 0.0
        %2183 = vmatpush.msra.mxu0 0.0
        %2184 = vmatpush.msra.mxu0 0.0
        %2185 = vmatpush.msra.mxu0 0.0
        %2186 = vmatpush.msra.mxu0 0.0
        %2187 = vmatpush.msra.mxu0 0.0
        %2188 = vmatpush.msra.mxu0 0.0
        %2189 = vmatpush.msra.mxu0 0.0
        %2190 = vmatpush.msra.mxu0 0.0
        %2191 = vmatpush.msra.mxu0 0.0
        %2192 = vmatpush.msra.mxu0 0.0
        %2193 = vmatpush.msra.mxu0 0.0
        %2194 = vmatpush.msra.mxu0 0.0
        %2195 = vmatpush.msra.mxu0 0.0
        %2196 = vmatpush.msra.mxu0 0.0
        %2197 = vmatpush.msra.mxu0 %v1301
        %2198 = vmatmul.f32.gmra.mxu0 %v2180
        %v2199 = vpop.f32.mrf.mxu0
        %v2200 = vadd.f32 0.0, %v2199
        %2201 = vdwg.mxu0
        %v2202 = vadd.f32 %v2120, %v2200
        %v2203 = vadd.f32 %v2202, %v1327
        %v2204 = vadd.f32 %v1854, %v2203
        %v2205 = vsel %vm253, %v2204, 0.0
        %2206 = vadd.xlane.f32.xlu0 %v2205
        %v2207 = vpop.xlane.xlu0 %2206
        %v2208 = vmul.f32 %v2207, %v725
        %v2209 = vsub.f32 %v2204, %v2208
        %v2210 = vmul.f32 %v2209, %v2209
        %v2211 = vsel %vm253, %v2210, 0.0
        %2212 = vadd.xlane.f32.xlu0 %v2211
        %v2213 = vpop.xlane.xlu0 %2212
        %v2214 = vmul.f32 %v2213, %v725
        %v2215 = vadd.f32 %v2214, 1e-05
        %v2216 = vrsqrt.pop %v2215
        %v2217 = vmul.f32 %v2216, %v2215
        %v2218 = vmul.f32 %v2217, %v2216
        %v2219 = vmul.f32 0.5, %v2218
        %v2220 = vsub.f32 1.5, %v2219
        %v2221 = vmul.f32 %v2216, %v2220
        %vm2222 = vweird.f32 %v2215
        %vm2223 = vweird.f32 %v2216
        %vm2224 = vmor %vm2222, %vm2223
        %v2225 = vsel %vm2224, %v2216, %v2221
        %v2226 = vmul.f32 %v2209, %v2225
        %v2227 = vmul.f32 %v2226, %v1352
        %v2228 = vadd.f32 %v2227, %v1354
        %v2230 = vsel %vm253, %v2228, 0
        %2232 = vmatpush.msra.mxu0 0.0
        %2233 = vmatpush.msra.mxu0 0.0
        %2234 = vmatpush.msra.mxu0 0.0
        %2235 = vmatpush.msra.mxu0 0.0
        %2236 = vmatpush.msra.mxu0 0.0
        %2237 = vmatpush.msra.mxu0 0.0
        %2238 = vmatpush.msra.mxu0 0.0
        %2239 = vmatpush.msra.mxu0 0.0
        %2240 = vmatpush.msra.mxu0 0.0
        %2241 = vmatpush.msra.mxu0 0.0
        %2242 = vmatpush.msra.mxu0 0.0
        %2243 = vmatpush.msra.mxu0 0.0
        %2244 = vmatpush.msra.mxu0 %v233
        %2245 = vmatpush.msra.mxu0 %v230
        %2246 = vmatpush.msra.mxu0 %v227
        %2247 = vmatpush.msra.mxu0 %v224
        %2248 = vmatmul.f32.gmra.mxu0 %v2230
        %v2249 = vpop.f32.mrf.mxu0
        %v2250 = vadd.f32 %v1356, %v2249
        %2251 = vdwg.mxu0
        %v2252 = vmax.f32 %v2250, 0.0
        %v2254 = vsel %vm820, %v2252, 0
        %2256 = vmatpush.xpose.msra.mxu0 0.0
        %2257 = vmatpush.xpose.msra.mxu0 0.0
        %2258 = vmatpush.xpose.msra.mxu0 0.0
        %2259 = vmatpush.xpose.msra.mxu0 0.0
        %2260 = vmatpush.xpose.msra.mxu0 0.0
        %2261 = vmatpush.xpose.msra.mxu0 0.0
        %2262 = vmatpush.xpose.msra.mxu0 0.0
        %2263 = vmatpush.xpose.msra.mxu0 0.0
        %2264 = vmatpush.xpose.msra.mxu0 0.0
        %2265 = vmatpush.xpose.msra.mxu0 0.0
        %2266 = vmatpush.xpose.msra.mxu0 0.0
        %2267 = vmatpush.xpose.msra.mxu0 0.0
        %2268 = vmatpush.xpose.msra.mxu0 %v1403
        %2269 = vmatpush.xpose.msra.mxu0 %v1401
        %2270 = vmatpush.xpose.msra.mxu0 %v1399
        %2271 = vmatpush.xpose.msra.mxu0 %v1397
        %2272 = vmatmul.f32.gmra.mxu0 %v2254
        %v2273 = vpop.f32.mrf.mxu0
        %v2274 = vadd.f32 %v1381, %v2273
        %2275 = vdwg.mxu0
        %v2276 = vadd.f32 %v2228, %v2274
        %v2277 = vsel %vm253, %v2276, 0.0
        %2278 = vadd.xlane.f32.xlu0 %v2277
        %v2279 = vpop.xlane.xlu0 %2278
        %v2280 = vmul.f32 %v2279, %v725
        %v2281 = vsub.f32 %v2276, %v2280
        %v2282 = vmul.f32 %v2281, %v2281
        %v2283 = vsel %vm253, %v2282, 0.0
        %2284 = vadd.xlane.f32.xlu0 %v2283
        %v2285 = vpop.xlane.xlu0 %2284
        %v2286 = vmul.f32 %v2285, %v725
        %v2287 = vadd.f32 %v2286, 1e-05
        %v2288 = vrsqrt.pop %v2287
        %v2289 = vmul.f32 %v2288, %v2287
        %v2290 = vmul.f32 %v2289, %v2288
        %v2291 = vmul.f32 0.5, %v2290
        %v2292 = vsub.f32 1.5, %v2291
        %v2293 = vmul.f32 %v2288, %v2292
        %vm2294 = vweird.f32 %v2287
        %vm2295 = vweird.f32 %v2288
        %vm2296 = vmor %vm2294, %vm2295
        %v2297 = vsel %vm2296, %v2288, %v2293
        %v2298 = vmul.f32 %v2281, %v2297
        %v2299 = vmul.f32 %v2298, %v1448
        %v2300 = vadd.f32 %v2299, %v1450
        %s2301 = scalar_lea.vmem %s203, 8 [#allocation2]
        %2302 = vst.msk [vmem:[%s2301] sm:$0xff] %vm253, %v2300
        %v2304 = vsel %vm253, %v2300, 0
        %2306 = vmatpush.msra.mxu0 0.0
        %2307 = vmatpush.msra.mxu0 0.0
        %2308 = vmatpush.msra.mxu0 0.0
        %2309 = vmatpush.msra.mxu0 0.0
        %2310 = vmatpush.msra.mxu0 0.0
        %2311 = vmatpush.msra.mxu0 0.0
        %2312 = vmatpush.msra.mxu0 0.0
        %2313 = vmatpush.msra.mxu0 0.0
        %2314 = vmatpush.msra.mxu0 0.0
        %2315 = vmatpush.msra.mxu0 0.0
        %2316 = vmatpush.msra.mxu0 0.0
        %2317 = vmatpush.msra.mxu0 0.0
        %2318 = vmatpush.msra.mxu0 %v231
        %2319 = vmatpush.msra.mxu0 %v228
        %2320 = vmatpush.msra.mxu0 %v225
        %2321 = vmatpush.msra.mxu0 %v222
        %2322 = vmatmul.f32.gmra.mxu0 %v2304
        %v2323 = vpop.f32.mrf.mxu0
        %v2324 = vadd.f32 %v319, %v2323
        %2325 = vdwg.mxu0
        %2327 = vrot.lane.b32.xlu0 %v2324, 96
        %v2328 = vpop.permute.xlu0 %2327
        %v2329 = vsel %vm346, %v2324, 0
        %v2331 = vsel %vm346, %v2328, 0
        %2333 = vmatpush.xpose.msra.mxu0 0.0
        %2334 = vmatpush.xpose.msra.mxu0 0.0
        %2335 = vmatpush.xpose.msra.mxu0 0.0
        %2336 = vmatpush.xpose.msra.mxu0 0.0
        %2337 = vmatpush.xpose.msra.mxu0 0.0
        %2338 = vmatpush.xpose.msra.mxu0 0.0
        %2339 = vmatpush.xpose.msra.mxu0 0.0
        %2340 = vmatpush.xpose.msra.mxu0 0.0
        %2341 = vmatpush.xpose.msra.mxu0 0.0
        %2342 = vmatpush.xpose.msra.mxu0 0.0
        %2343 = vmatpush.xpose.msra.mxu0 0.0
        %2344 = vmatpush.xpose.msra.mxu0 0.0
        %2345 = vmatpush.xpose.msra.mxu0 0.0
        %2346 = vmatpush.xpose.msra.mxu0 0.0
        %2347 = vmatpush.xpose.msra.mxu0 0.0
        %2348 = vmatpush.xpose.msra.mxu0 %v2331
        %2349 = vmatmul.f32.gmra.mxu0 %v2329
        %v2350 = vpop.f32.mrf.mxu0
        %v2351 = vadd.f32 0.0, %v2350
        %2352 = vdwg.mxu0
        %v2353 = vsel %vm346, %v2351, -inf
        %2354 = vmax.xlane.f32.xlu0 %v2353
        %v2355 = vpop.xlane.xlu0 %2354
        %v2356 = vsub.f32 %v2351, %v2355
        %v2357 = vmul.f32 %v2356, 1.442695
        %v2358 = vpow.pop %v2357
        %v2359 = vsel %vm346, %v2358, 0.0
        %2360 = vadd.xlane.f32.xlu0 %v2359
        %v2361 = vpop.xlane.xlu0 %2360
        %v2362 = vrcp.pop %v2361
        %v2363 = vmul.f32 %v2358, %v2362
        %2364 = vrot.lane.b32.xlu0 %v2324, 64
        %v2365 = vpop.permute.xlu0 %2364
        %v2368 = vsel %vm346, %v2363, 0
        %2370 = vmatpush.msra.mxu0 0.0
        %2371 = vmatpush.msra.mxu0 0.0
        %2372 = vmatpush.msra.mxu0 0.0
        %2373 = vmatpush.msra.mxu0 0.0
        %2374 = vmatpush.msra.mxu0 0.0
        %2375 = vmatpush.msra.mxu0 0.0
        %2376 = vmatpush.msra.mxu0 0.0
        %2377 = vmatpush.msra.mxu0 0.0
        %2378 = vmatpush.msra.mxu0 0.0
        %2379 = vmatpush.msra.mxu0 0.0
        %2380 = vmatpush.msra.mxu0 0.0
        %2381 = vmatpush.msra.mxu0 0.0
        %2382 = vmatpush.msra.mxu0 0.0
        %2383 = vmatpush.msra.mxu0 0.0
        %2384 = vmatpush.msra.mxu0 0.0
        %2385 = vmatpush.msra.mxu0 %v2365
        %2386 = vmatmul.f32.gmra.mxu0 %v2368
        %v2387 = vpop.f32.mrf.mxu0
        %v2388 = vadd.f32 0.0, %v2387
        %2389 = vdwg.mxu0
        %2390 = vrot.lane.b32.xlu0 %v2324, 120
        %v2391 = vpop.permute.xlu0 %2390
        %2392 = vrot.lane.b32.xlu0 %v2324, 88
        %v2393 = vpop.permute.xlu0 %2392
        %v2394 = vsel %vm346, %v2391, 0
        %v2396 = vsel %vm346, %v2393, 0
        %2398 = vmatpush.xpose.msra.mxu0 0.0
        %2399 = vmatpush.xpose.msra.mxu0 0.0
        %2400 = vmatpush.xpose.msra.mxu0 0.0
        %2401 = vmatpush.xpose.msra.mxu0 0.0
        %2402 = vmatpush.xpose.msra.mxu0 0.0
        %2403 = vmatpush.xpose.msra.mxu0 0.0
        %2404 = vmatpush.xpose.msra.mxu0 0.0
        %2405 = vmatpush.xpose.msra.mxu0 0.0
        %2406 = vmatpush.xpose.msra.mxu0 0.0
        %2407 = vmatpush.xpose.msra.mxu0 0.0
        %2408 = vmatpush.xpose.msra.mxu0 0.0
        %2409 = vmatpush.xpose.msra.mxu0 0.0
        %2410 = vmatpush.xpose.msra.mxu0 0.0
        %2411 = vmatpush.xpose.msra.mxu0 0.0
        %2412 = vmatpush.xpose.msra.mxu0 0.0
        %2413 = vmatpush.xpose.msra.mxu0 %v2396
        %2414 = vmatmul.f32.gmra.mxu0 %v2394
        %v2415 = vpop.f32.mrf.mxu0
        %v2416 = vadd.f32 0.0, %v2415
        %2417 = vdwg.mxu0
        %v2418 = vsel %vm346, %v2416, -inf
        %2419 = vmax.xlane.f32.xlu0 %v2418
        %v2420 = vpop.xlane.xlu0 %2419
        %v2421 = vsub.f32 %v2416, %v2420
        %v2422 = vmul.f32 %v2421, 1.442695
        %v2423 = vpow.pop %v2422
        %v2424 = vsel %vm346, %v2423, 0.0
        %2425 = vadd.xlane.f32.xlu0 %v2424
        %v2426 = vpop.xlane.xlu0 %2425
        %v2427 = vrcp.pop %v2426
        %v2428 = vmul.f32 %v2423, %v2427
        %2429 = vrot.lane.b32.xlu0 %v2324, 56
        %v2430 = vpop.permute.xlu0 %2429
        %v2433 = vsel %vm346, %v2428, 0
        %2435 = vmatpush.msra.mxu0 0.0
        %2436 = vmatpush.msra.mxu0 0.0
        %2437 = vmatpush.msra.mxu0 0.0
        %2438 = vmatpush.msra.mxu0 0.0
        %2439 = vmatpush.msra.mxu0 0.0
        %2440 = vmatpush.msra.mxu0 0.0
        %2441 = vmatpush.msra.mxu0 0.0
        %2442 = vmatpush.msra.mxu0 0.0
        %2443 = vmatpush.msra.mxu0 0.0
        %2444 = vmatpush.msra.mxu0 0.0
        %2445 = vmatpush.msra.mxu0 0.0
        %2446 = vmatpush.msra.mxu0 0.0
        %2447 = vmatpush.msra.mxu0 0.0
        %2448 = vmatpush.msra.mxu0 0.0
        %2449 = vmatpush.msra.mxu0 0.0
        %2450 = vmatpush.msra.mxu0 %v2430
        %2451 = vmatmul.f32.gmra.mxu0 %v2433
        %v2452 = vpop.f32.mrf.mxu0
        %v2453 = vadd.f32 0.0, %v2452
        %2454 = vdwg.mxu0
        %v2456 = vsel %vm346, %v2453, 0
        %2458 = vmatpush.msra.mxu0 0.0
        %2459 = vmatpush.msra.mxu0 0.0
        %2460 = vmatpush.msra.mxu0 0.0
        %2461 = vmatpush.msra.mxu0 0.0
        %2462 = vmatpush.msra.mxu0 0.0
        %2463 = vmatpush.msra.mxu0 0.0
        %2464 = vmatpush.msra.mxu0 0.0
        %2465 = vmatpush.msra.mxu0 0.0
        %2466 = vmatpush.msra.mxu0 0.0
        %2467 = vmatpush.msra.mxu0 0.0
        %2468 = vmatpush.msra.mxu0 0.0
        %2469 = vmatpush.msra.mxu0 0.0
        %2470 = vmatpush.msra.mxu0 0.0
        %2471 = vmatpush.msra.mxu0 0.0
        %2472 = vmatpush.msra.mxu0 0.0
        %2473 = vmatpush.msra.mxu0 %v475
        %2474 = vmatmul.f32.gmra.mxu0 %v2456
        %v2475 = vpop.f32.mrf.mxu0
        %v2476 = vadd.f32 0.0, %v2475
        %2477 = vdwg.mxu0
        %v2479 = vsel %vm346, %v2388, 0
        %2481 = vmatpush.msra.mxu0 0.0
        %2482 = vmatpush.msra.mxu0 0.0
        %2483 = vmatpush.msra.mxu0 0.0
        %2484 = vmatpush.msra.mxu0 0.0
        %2485 = vmatpush.msra.mxu0 0.0
        %2486 = vmatpush.msra.mxu0 0.0
        %2487 = vmatpush.msra.mxu0 0.0
        %2488 = vmatpush.msra.mxu0 0.0
        %2489 = vmatpush.msra.mxu0 0.0
        %2490 = vmatpush.msra.mxu0 0.0
        %2491 = vmatpush.msra.mxu0 0.0
        %2492 = vmatpush.msra.mxu0 0.0
        %2493 = vmatpush.msra.mxu0 0.0
        %2494 = vmatpush.msra.mxu0 0.0
        %2495 = vmatpush.msra.mxu0 0.0
        %2496 = vmatpush.msra.mxu0 %v502
        %2497 = vmatmul.f32.gmra.mxu0 %v2479
        %v2498 = vpop.f32.mrf.mxu0
        %v2499 = vadd.f32 %v2476, %v2498
        %2500 = vdwg.mxu0
        %2501 = vrot.lane.b32.xlu0 %v2324, 112
        %v2502 = vpop.permute.xlu0 %2501
        %2503 = vrot.lane.b32.xlu0 %v2324, 80
        %v2504 = vpop.permute.xlu0 %2503
        %v2505 = vsel %vm346, %v2502, 0
        %v2507 = vsel %vm346, %v2504, 0
        %2509 = vmatpush.xpose.msra.mxu0 0.0
        %2510 = vmatpush.xpose.msra.mxu0 0.0
        %2511 = vmatpush.xpose.msra.mxu0 0.0
        %2512 = vmatpush.xpose.msra.mxu0 0.0
        %2513 = vmatpush.xpose.msra.mxu0 0.0
        %2514 = vmatpush.xpose.msra.mxu0 0.0
        %2515 = vmatpush.xpose.msra.mxu0 0.0
        %2516 = vmatpush.xpose.msra.mxu0 0.0
        %2517 = vmatpush.xpose.msra.mxu0 0.0
        %2518 = vmatpush.xpose.msra.mxu0 0.0
        %2519 = vmatpush.xpose.msra.mxu0 0.0
        %2520 = vmatpush.xpose.msra.mxu0 0.0
        %2521 = vmatpush.xpose.msra.mxu0 0.0
        %2522 = vmatpush.xpose.msra.mxu0 0.0
        %2523 = vmatpush.xpose.msra.mxu0 0.0
        %2524 = vmatpush.xpose.msra.mxu0 %v2507
        %2525 = vmatmul.f32.gmra.mxu0 %v2505
        %v2526 = vpop.f32.mrf.mxu0
        %v2527 = vadd.f32 0.0, %v2526
        %2528 = vdwg.mxu0
        %v2529 = vsel %vm346, %v2527, -inf
        %2530 = vmax.xlane.f32.xlu0 %v2529
        %v2531 = vpop.xlane.xlu0 %2530
        %v2532 = vsub.f32 %v2527, %v2531
        %v2533 = vmul.f32 %v2532, 1.442695
        %v2534 = vpow.pop %v2533
        %v2535 = vsel %vm346, %v2534, 0.0
        %2536 = vadd.xlane.f32.xlu0 %v2535
        %v2537 = vpop.xlane.xlu0 %2536
        %v2538 = vrcp.pop %v2537
        %v2539 = vmul.f32 %v2534, %v2538
        %2540 = vrot.lane.b32.xlu0 %v2324, 48
        %v2541 = vpop.permute.xlu0 %2540
        %v2544 = vsel %vm346, %v2539, 0
        %2546 = vmatpush.msra.mxu0 0.0
        %2547 = vmatpush.msra.mxu0 0.0
        %2548 = vmatpush.msra.mxu0 0.0
        %2549 = vmatpush.msra.mxu0 0.0
        %2550 = vmatpush.msra.mxu0 0.0
        %2551 = vmatpush.msra.mxu0 0.0
        %2552 = vmatpush.msra.mxu0 0.0
        %2553 = vmatpush.msra.mxu0 0.0
        %2554 = vmatpush.msra.mxu0 0.0
        %2555 = vmatpush.msra.mxu0 0.0
        %2556 = vmatpush.msra.mxu0 0.0
        %2557 = vmatpush.msra.mxu0 0.0
        %2558 = vmatpush.msra.mxu0 0.0
        %2559 = vmatpush.msra.mxu0 0.0
        %2560 = vmatpush.msra.mxu0 0.0
        %2561 = vmatpush.msra.mxu0 %v2541
        %2562 = vmatmul.f32.gmra.mxu0 %v2544
        %v2563 = vpop.f32.mrf.mxu0
        %v2564 = vadd.f32 0.0, %v2563
        %2565 = vdwg.mxu0
        %v2567 = vsel %vm346, %v2564, 0
        %2569 = vmatpush.msra.mxu0 0.0
        %2570 = vmatpush.msra.mxu0 0.0
        %2571 = vmatpush.msra.mxu0 0.0
        %2572 = vmatpush.msra.mxu0 0.0
        %2573 = vmatpush.msra.mxu0 0.0
        %2574 = vmatpush.msra.mxu0 0.0
        %2575 = vmatpush.msra.mxu0 0.0
        %2576 = vmatpush.msra.mxu0 0.0
        %2577 = vmatpush.msra.mxu0 0.0
        %2578 = vmatpush.msra.mxu0 0.0
        %2579 = vmatpush.msra.mxu0 0.0
        %2580 = vmatpush.msra.mxu0 0.0
        %2581 = vmatpush.msra.mxu0 0.0
        %2582 = vmatpush.msra.mxu0 0.0
        %2583 = vmatpush.msra.mxu0 0.0
        %2584 = vmatpush.msra.mxu0 %v594
        %2585 = vmatmul.f32.gmra.mxu0 %v2567
        %v2586 = vpop.f32.mrf.mxu0
        %v2587 = vadd.f32 0.0, %v2586
        %2588 = vdwg.mxu0
        %v2589 = vadd.f32 %v2499, %v2587
        %2590 = vrot.lane.b32.xlu0 %v2324, 104
        %v2591 = vpop.permute.xlu0 %2590
        %2592 = vrot.lane.b32.xlu0 %v2324, 72
        %v2593 = vpop.permute.xlu0 %2592
        %v2594 = vsel %vm346, %v2591, 0
        %v2596 = vsel %vm346, %v2593, 0
        %2598 = vmatpush.xpose.msra.mxu0 0.0
        %2599 = vmatpush.xpose.msra.mxu0 0.0
        %2600 = vmatpush.xpose.msra.mxu0 0.0
        %2601 = vmatpush.xpose.msra.mxu0 0.0
        %2602 = vmatpush.xpose.msra.mxu0 0.0
        %2603 = vmatpush.xpose.msra.mxu0 0.0
        %2604 = vmatpush.xpose.msra.mxu0 0.0
        %2605 = vmatpush.xpose.msra.mxu0 0.0
        %2606 = vmatpush.xpose.msra.mxu0 0.0
        %2607 = vmatpush.xpose.msra.mxu0 0.0
        %2608 = vmatpush.xpose.msra.mxu0 0.0
        %2609 = vmatpush.xpose.msra.mxu0 0.0
        %2610 = vmatpush.xpose.msra.mxu0 0.0
        %2611 = vmatpush.xpose.msra.mxu0 0.0
        %2612 = vmatpush.xpose.msra.mxu0 0.0
        %2613 = vmatpush.xpose.msra.mxu0 %v2596
        %2614 = vmatmul.f32.gmra.mxu0 %v2594
        %v2615 = vpop.f32.mrf.mxu0
        %v2616 = vadd.f32 0.0, %v2615
        %2617 = vdwg.mxu0
        %v2618 = vsel %vm346, %v2616, -inf
        %2619 = vmax.xlane.f32.xlu0 %v2618
        %v2620 = vpop.xlane.xlu0 %2619
        %v2621 = vsub.f32 %v2616, %v2620
        %v2622 = vmul.f32 %v2621, 1.442695
        %v2623 = vpow.pop %v2622
        %v2624 = vsel %vm346, %v2623, 0.0
        %2625 = vadd.xlane.f32.xlu0 %v2624
        %v2626 = vpop.xlane.xlu0 %2625
        %v2627 = vrcp.pop %v2626
        %v2628 = vmul.f32 %v2623, %v2627
        %2629 = vrot.lane.b32.xlu0 %v2324, 40
        %v2630 = vpop.permute.xlu0 %2629
        %v2633 = vsel %vm346, %v2628, 0
        %2635 = vmatpush.msra.mxu0 0.0
        %2636 = vmatpush.msra.mxu0 0.0
        %2637 = vmatpush.msra.mxu0 0.0
        %2638 = vmatpush.msra.mxu0 0.0
        %2639 = vmatpush.msra.mxu0 0.0
        %2640 = vmatpush.msra.mxu0 0.0
        %2641 = vmatpush.msra.mxu0 0.0
        %2642 = vmatpush.msra.mxu0 0.0
        %2643 = vmatpush.msra.mxu0 0.0
        %2644 = vmatpush.msra.mxu0 0.0
        %2645 = vmatpush.msra.mxu0 0.0
        %2646 = vmatpush.msra.mxu0 0.0
        %2647 = vmatpush.msra.mxu0 0.0
        %2648 = vmatpush.msra.mxu0 0.0
        %2649 = vmatpush.msra.mxu0 0.0
        %2650 = vmatpush.msra.mxu0 %v2630
        %2651 = vmatmul.f32.gmra.mxu0 %v2633
        %v2652 = vpop.f32.mrf.mxu0
        %v2653 = vadd.f32 0.0, %v2652
        %2654 = vdwg.mxu0
        %v2656 = vsel %vm346, %v2653, 0
        %2658 = vmatpush.msra.mxu0 0.0
        %2659 = vmatpush.msra.mxu0 0.0
        %2660 = vmatpush.msra.mxu0 0.0
        %2661 = vmatpush.msra.mxu0 0.0
        %2662 = vmatpush.msra.mxu0 0.0
        %2663 = vmatpush.msra.mxu0 0.0
        %2664 = vmatpush.msra.mxu0 0.0
        %2665 = vmatpush.msra.mxu0 0.0
        %2666 = vmatpush.msra.mxu0 0.0
        %2667 = vmatpush.msra.mxu0 0.0
        %2668 = vmatpush.msra.mxu0 0.0
        %2669 = vmatpush.msra.mxu0 0.0
        %2670 = vmatpush.msra.mxu0 0.0
        %2671 = vmatpush.msra.mxu0 0.0
        %2672 = vmatpush.msra.mxu0 0.0
        %2673 = vmatpush.msra.mxu0 %v687
        %2674 = vmatmul.f32.gmra.mxu0 %v2656
        %v2675 = vpop.f32.mrf.mxu0
        %v2676 = vadd.f32 0.0, %v2675
        %2677 = vdwg.mxu0
        %v2678 = vadd.f32 %v2589, %v2676
        %v2679 = vadd.f32 %v2678, %v713
        %v2680 = vadd.f32 %v2300, %v2679
        %v2681 = vsel %vm253, %v2680, 0.0
        %2682 = vadd.xlane.f32.xlu0 %v2681
        %v2683 = vpop.xlane.xlu0 %2682
        %v2684 = vmul.f32 %v2683, %v725
        %v2685 = vsub.f32 %v2680, %v2684
        %v2686 = vmul.f32 %v2685, %v2685
        %v2687 = vsel %vm253, %v2686, 0.0
        %2688 = vadd.xlane.f32.xlu0 %v2687
        %v2689 = vpop.xlane.xlu0 %2688
        %v2690 = vmul.f32 %v2689, %v725
        %v2691 = vadd.f32 %v2690, 1e-05
        %v2692 = vrsqrt.pop %v2691
        %v2693 = vmul.f32 %v2692, %v2691
        %v2694 = vmul.f32 %v2693, %v2692
        %v2695 = vmul.f32 0.5, %v2694
        %v2696 = vsub.f32 1.5, %v2695
        %v2697 = vmul.f32 %v2692, %v2696
        %vm2698 = vweird.f32 %v2691
        %vm2699 = vweird.f32 %v2692
        %vm2700 = vmor %vm2698, %vm2699
        %v2701 = vsel %vm2700, %v2692, %v2697
        %v2702 = vmul.f32 %v2685, %v2701
        %v2703 = vmul.f32 %v2702, %v745
        %v2704 = vadd.f32 %v2703, %v747
        %v2706 = vsel %vm253, %v2704, 0
        %2708 = vmatpush.msra.mxu0 0.0
        %2709 = vmatpush.msra.mxu0 0.0
        %2710 = vmatpush.msra.mxu0 0.0
        %2711 = vmatpush.msra.mxu0 0.0
        %2712 = vmatpush.msra.mxu0 0.0
        %2713 = vmatpush.msra.mxu0 0.0
        %2714 = vmatpush.msra.mxu0 0.0
        %2715 = vmatpush.msra.mxu0 0.0
        %2716 = vmatpush.msra.mxu0 0.0
        %2717 = vmatpush.msra.mxu0 0.0
        %2718 = vmatpush.msra.mxu0 0.0
        %2719 = vmatpush.msra.mxu0 0.0
        %2720 = vmatpush.msra.mxu0 %v232
        %2721 = vmatpush.msra.mxu0 %v229
        %2722 = vmatpush.msra.mxu0 %v226
        %2723 = vmatpush.msra.mxu0 %v223
        %2724 = vmatmul.f32.gmra.mxu0 %v2706
        %v2725 = vpop.f32.mrf.mxu0
        %v2726 = vadd.f32 %v749, %v2725
        %2727 = vdwg.mxu0
        %v2729 = vsel %vm346, %v2726, 0
        %2731 = vmatpush.xpose.msra.mxu0 0.0
        %2732 = vmatpush.xpose.msra.mxu0 0.0
        %2733 = vmatpush.xpose.msra.mxu0 0.0
        %2734 = vmatpush.xpose.msra.mxu0 0.0
        %2735 = vmatpush.xpose.msra.mxu0 0.0
        %2736 = vmatpush.xpose.msra.mxu0 0.0
        %2737 = vmatpush.xpose.msra.mxu0 0.0
        %2738 = vmatpush.xpose.msra.mxu0 0.0
        %2739 = vmatpush.xpose.msra.mxu0 %v798
        %2740 = vmatpush.xpose.msra.mxu0 %v795
        %2741 = vmatpush.xpose.msra.mxu0 %v792
        %2742 = vmatpush.xpose.msra.mxu0 %v789
        %2743 = vmatpush.xpose.msra.mxu0 %v786
        %2744 = vmatpush.xpose.msra.mxu0 %v783
        %2745 = vmatpush.xpose.msra.mxu0 %v780
        %2746 = vmatpush.xpose.msra.mxu0 %v777
        %2747 = vmatmul.f32.gmra.mxu0 %v2729
        %v2748 = vpop.f32.mrf.mxu0
        %v2749 = vadd.f32 0.0, %v2748
        %2750 = vdwg.mxu0
        %v2751 = vsel %vm820, %v2749, -inf
        %2752 = vmax.xlane.f32.xlu0 %v2751
        %v2753 = vpop.xlane.xlu0 %2752
        %v2754 = vsub.f32 %v2749, %v2753
        %v2755 = vmul.f32 %v2754, 1.442695
        %v2756 = vpow.pop %v2755
        %v2757 = vsel %vm820, %v2756, 0.0
        %2758 = vadd.xlane.f32.xlu0 %v2757
        %v2759 = vpop.xlane.xlu0 %2758
        %v2760 = vrcp.pop %v2759
        %v2761 = vmul.f32 %v2756, %v2760
        %v2763 = vsel %vm820, %v2761, 0
        %2765 = vmatpush.msra.mxu0 0.0
        %2766 = vmatpush.msra.mxu0 0.0
        %2767 = vmatpush.msra.mxu0 0.0
        %2768 = vmatpush.msra.mxu0 0.0
        %2769 = vmatpush.msra.mxu0 0.0
        %2770 = vmatpush.msra.mxu0 0.0
        %2771 = vmatpush.msra.mxu0 0.0
        %2772 = vmatpush.msra.mxu0 0.0
        %2773 = vmatpush.msra.mxu0 %v847
        %2774 = vmatpush.msra.mxu0 %v845
        %2775 = vmatpush.msra.mxu0 %v843
        %2776 = vmatpush.msra.mxu0 %v841
        %2777 = vmatpush.msra.mxu0 %v839
        %2778 = vmatpush.msra.mxu0 %v837
        %2779 = vmatpush.msra.mxu0 %v835
        %2780 = vmatpush.msra.mxu0 %v833
        %2781 = vmatmul.f32.gmra.mxu0 %v2763
        %v2782 = vpop.f32.mrf.mxu0
        %v2783 = vadd.f32 0.0, %v2782
        %2784 = vdwg.mxu0
        %2785 = vrot.lane.b32.xlu0 %v2726, 120
        %v2786 = vpop.permute.xlu0 %2785
        %v2787 = vsel %vm346, %v2786, 0
        %2789 = vmatpush.xpose.msra.mxu0 0.0
        %2790 = vmatpush.xpose.msra.mxu0 0.0
        %2791 = vmatpush.xpose.msra.mxu0 0.0
        %2792 = vmatpush.xpose.msra.mxu0 0.0
        %2793 = vmatpush.xpose.msra.mxu0 0.0
        %2794 = vmatpush.xpose.msra.mxu0 0.0
        %2795 = vmatpush.xpose.msra.mxu0 0.0
        %2796 = vmatpush.xpose.msra.mxu0 0.0
        %2797 = vmatpush.xpose.msra.mxu0 %v913
        %2798 = vmatpush.xpose.msra.mxu0 %v911
        %2799 = vmatpush.xpose.msra.mxu0 %v909
        %2800 = vmatpush.xpose.msra.mxu0 %v907
        %2801 = vmatpush.xpose.msra.mxu0 %v905
        %2802 = vmatpush.xpose.msra.mxu0 %v903
        %2803 = vmatpush.xpose.msra.mxu0 %v901
        %2804 = vmatpush.xpose.msra.mxu0 %v899
        %2805 = vmatmul.f32.gmra.mxu0 %v2787
        %v2806 = vpop.f32.mrf.mxu0
        %v2807 = vadd.f32 0.0, %v2806
        %2808 = vdwg.mxu0
        %v2809 = vsel %vm820, %v2807, -inf
        %2810 = vmax.xlane.f32.xlu0 %v2809
        %v2811 = vpop.xlane.xlu0 %2810
        %v2812 = vsub.f32 %v2807, %v2811
        %v2813 = vmul.f32 %v2812, 1.442695
        %v2814 = vpow.pop %v2813
        %v2815 = vsel %vm820, %v2814, 0.0
        %2816 = vadd.xlane.f32.xlu0 %v2815
        %v2817 = vpop.xlane.xlu0 %2816
        %v2818 = vrcp.pop %v2817
        %v2819 = vmul.f32 %v2814, %v2818
        %v2821 = vsel %vm820, %v2819, 0
        %2823 = vmatpush.msra.mxu0 0.0
        %2824 = vmatpush.msra.mxu0 0.0
        %2825 = vmatpush.msra.mxu0 0.0
        %2826 = vmatpush.msra.mxu0 0.0
        %2827 = vmatpush.msra.mxu0 0.0
        %2828 = vmatpush.msra.mxu0 0.0
        %2829 = vmatpush.msra.mxu0 0.0
        %2830 = vmatpush.msra.mxu0 0.0
        %2831 = vmatpush.msra.mxu0 %v961
        %2832 = vmatpush.msra.mxu0 %v959
        %2833 = vmatpush.msra.mxu0 %v957
        %2834 = vmatpush.msra.mxu0 %v955
        %2835 = vmatpush.msra.mxu0 %v953
        %2836 = vmatpush.msra.mxu0 %v951
        %2837 = vmatpush.msra.mxu0 %v949
        %2838 = vmatpush.msra.mxu0 %v947
        %2839 = vmatmul.f32.gmra.mxu0 %v2821
        %v2840 = vpop.f32.mrf.mxu0
        %v2841 = vadd.f32 0.0, %v2840
        %2842 = vdwg.mxu0
        %v2844 = vsel %vm346, %v2841, 0
        %2846 = vmatpush.msra.mxu0 0.0
        %2847 = vmatpush.msra.mxu0 0.0
        %2848 = vmatpush.msra.mxu0 0.0
        %2849 = vmatpush.msra.mxu0 0.0
        %2850 = vmatpush.msra.mxu0 0.0
        %2851 = vmatpush.msra.mxu0 0.0
        %2852 = vmatpush.msra.mxu0 0.0
        %2853 = vmatpush.msra.mxu0 0.0
        %2854 = vmatpush.msra.mxu0 0.0
        %2855 = vmatpush.msra.mxu0 0.0
        %2856 = vmatpush.msra.mxu0 0.0
        %2857 = vmatpush.msra.mxu0 0.0
        %2858 = vmatpush.msra.mxu0 0.0
        %2859 = vmatpush.msra.mxu0 0.0
        %2860 = vmatpush.msra.mxu0 0.0
        %2861 = vmatpush.msra.mxu0 %v994
        %2862 = vmatmul.f32.gmra.mxu0 %v2844
        %v2863 = vpop.f32.mrf.mxu0
        %v2864 = vadd.f32 0.0, %v2863
        %2865 = vdwg.mxu0
        %v2867 = vsel %vm346, %v2783, 0
        %2869 = vmatpush.msra.mxu0 0.0
        %2870 = vmatpush.msra.mxu0 0.0
        %2871 = vmatpush.msra.mxu0 0.0
        %2872 = vmatpush.msra.mxu0 0.0
        %2873 = vmatpush.msra.mxu0 0.0
        %2874 = vmatpush.msra.mxu0 0.0
        %2875 = vmatpush.msra.mxu0 0.0
        %2876 = vmatpush.msra.mxu0 0.0
        %2877 = vmatpush.msra.mxu0 0.0
        %2878 = vmatpush.msra.mxu0 0.0
        %2879 = vmatpush.msra.mxu0 0.0
        %2880 = vmatpush.msra.mxu0 0.0
        %2881 = vmatpush.msra.mxu0 0.0
        %2882 = vmatpush.msra.mxu0 0.0
        %2883 = vmatpush.msra.mxu0 0.0
        %2884 = vmatpush.msra.mxu0 %v1020
        %2885 = vmatmul.f32.gmra.mxu0 %v2867
        %v2886 = vpop.f32.mrf.mxu0
        %v2887 = vadd.f32 %v2864, %v2886
        %2888 = vdwg.mxu0
        %2889 = vrot.lane.b32.xlu0 %v2726, 112
        %v2890 = vpop.permute.xlu0 %2889
        %v2891 = vsel %vm346, %v2890, 0
        %2893 = vmatpush.xpose.msra.mxu0 0.0
        %2894 = vmatpush.xpose.msra.mxu0 0.0
        %2895 = vmatpush.xpose.msra.mxu0 0.0
        %2896 = vmatpush.xpose.msra.mxu0 0.0
        %2897 = vmatpush.xpose.msra.mxu0 0.0
        %2898 = vmatpush.xpose.msra.mxu0 0.0
        %2899 = vmatpush.xpose.msra.mxu0 0.0
        %2900 = vmatpush.xpose.msra.mxu0 0.0
        %2901 = vmatpush.xpose.msra.mxu0 %v1079
        %2902 = vmatpush.xpose.msra.mxu0 %v1077
        %2903 = vmatpush.xpose.msra.mxu0 %v1075
        %2904 = vmatpush.xpose.msra.mxu0 %v1073
        %2905 = vmatpush.xpose.msra.mxu0 %v1071
        %2906 = vmatpush.xpose.msra.mxu0 %v1069
        %2907 = vmatpush.xpose.msra.mxu0 %v1067
        %2908 = vmatpush.xpose.msra.mxu0 %v1065
        %2909 = vmatmul.f32.gmra.mxu0 %v2891
        %v2910 = vpop.f32.mrf.mxu0
        %v2911 = vadd.f32 0.0, %v2910
        %2912 = vdwg.mxu0
        %v2913 = vsel %vm820, %v2911, -inf
        %2914 = vmax.xlane.f32.xlu0 %v2913
        %v2915 = vpop.xlane.xlu0 %2914
        %v2916 = vsub.f32 %v2911, %v2915
        %v2917 = vmul.f32 %v2916, 1.442695
        %v2918 = vpow.pop %v2917
        %v2919 = vsel %vm820, %v2918, 0.0
        %2920 = vadd.xlane.f32.xlu0 %v2919
        %v2921 = vpop.xlane.xlu0 %2920
        %v2922 = vrcp.pop %v2921
        %v2923 = vmul.f32 %v2918, %v2922
        %v2925 = vsel %vm820, %v2923, 0
        %2927 = vmatpush.msra.mxu0 0.0
        %2928 = vmatpush.msra.mxu0 0.0
        %2929 = vmatpush.msra.mxu0 0.0
        %2930 = vmatpush.msra.mxu0 0.0
        %2931 = vmatpush.msra.mxu0 0.0
        %2932 = vmatpush.msra.mxu0 0.0
        %2933 = vmatpush.msra.mxu0 0.0
        %2934 = vmatpush.msra.mxu0 0.0
        %2935 = vmatpush.msra.mxu0 %v1127
        %2936 = vmatpush.msra.mxu0 %v1125
        %2937 = vmatpush.msra.mxu0 %v1123
        %2938 = vmatpush.msra.mxu0 %v1121
        %2939 = vmatpush.msra.mxu0 %v1119
        %2940 = vmatpush.msra.mxu0 %v1117
        %2941 = vmatpush.msra.mxu0 %v1115
        %2942 = vmatpush.msra.mxu0 %v1113
        %2943 = vmatmul.f32.gmra.mxu0 %v2925
        %v2944 = vpop.f32.mrf.mxu0
        %v2945 = vadd.f32 0.0, %v2944
        %2946 = vdwg.mxu0
        %v2948 = vsel %vm346, %v2945, 0
        %2950 = vmatpush.msra.mxu0 0.0
        %2951 = vmatpush.msra.mxu0 0.0
        %2952 = vmatpush.msra.mxu0 0.0
        %2953 = vmatpush.msra.mxu0 0.0
        %2954 = vmatpush.msra.mxu0 0.0
        %2955 = vmatpush.msra.mxu0 0.0
        %2956 = vmatpush.msra.mxu0 0.0
        %2957 = vmatpush.msra.mxu0 0.0
        %2958 = vmatpush.msra.mxu0 0.0
        %2959 = vmatpush.msra.mxu0 0.0
        %2960 = vmatpush.msra.mxu0 0.0
        %2961 = vmatpush.msra.mxu0 0.0
        %2962 = vmatpush.msra.mxu0 0.0
        %2963 = vmatpush.msra.mxu0 0.0
        %2964 = vmatpush.msra.mxu0 0.0
        %2965 = vmatpush.msra.mxu0 %v1160
        %2966 = vmatmul.f32.gmra.mxu0 %v2948
        %v2967 = vpop.f32.mrf.mxu0
        %v2968 = vadd.f32 0.0, %v2967
        %2969 = vdwg.mxu0
        %v2970 = vadd.f32 %v2887, %v2968
        %2971 = vrot.lane.b32.xlu0 %v2726, 104
        %v2972 = vpop.permute.xlu0 %2971
        %v2973 = vsel %vm346, %v2972, 0
        %2975 = vmatpush.xpose.msra.mxu0 0.0
        %2976 = vmatpush.xpose.msra.mxu0 0.0
        %2977 = vmatpush.xpose.msra.mxu0 0.0
        %2978 = vmatpush.xpose.msra.mxu0 0.0
        %2979 = vmatpush.xpose.msra.mxu0 0.0
        %2980 = vmatpush.xpose.msra.mxu0 0.0
        %2981 = vmatpush.xpose.msra.mxu0 0.0
        %2982 = vmatpush.xpose.msra.mxu0 0.0
        %2983 = vmatpush.xpose.msra.mxu0 %v1220
        %2984 = vmatpush.xpose.msra.mxu0 %v1218
        %2985 = vmatpush.xpose.msra.mxu0 %v1216
        %2986 = vmatpush.xpose.msra.mxu0 %v1214
        %2987 = vmatpush.xpose.msra.mxu0 %v1212
        %2988 = vmatpush.xpose.msra.mxu0 %v1210
        %2989 = vmatpush.xpose.msra.mxu0 %v1208
        %2990 = vmatpush.xpose.msra.mxu0 %v1206
        %2991 = vmatmul.f32.gmra.mxu0 %v2973
        %v2992 = vpop.f32.mrf.mxu0
        %v2993 = vadd.f32 0.0, %v2992
        %2994 = vdwg.mxu0
        %v2995 = vsel %vm820, %v2993, -inf
        %2996 = vmax.xlane.f32.xlu0 %v2995
        %v2997 = vpop.xlane.xlu0 %2996
        %v2998 = vsub.f32 %v2993, %v2997
        %v2999 = vmul.f32 %v2998, 1.442695
        %v3000 = vpow.pop %v2999
        %v3001 = vsel %vm820, %v3000, 0.0
        %3002 = vadd.xlane.f32.xlu0 %v3001
        %v3003 = vpop.xlane.xlu0 %3002
        %v3004 = vrcp.pop %v3003
        %v3005 = vmul.f32 %v3000, %v3004
        %v3007 = vsel %vm820, %v3005, 0
        %3009 = vmatpush.msra.mxu0 0.0
        %3010 = vmatpush.msra.mxu0 0.0
        %3011 = vmatpush.msra.mxu0 0.0
        %3012 = vmatpush.msra.mxu0 0.0
        %3013 = vmatpush.msra.mxu0 0.0
        %3014 = vmatpush.msra.mxu0 0.0
        %3015 = vmatpush.msra.mxu0 0.0
        %3016 = vmatpush.msra.mxu0 0.0
        %3017 = vmatpush.msra.mxu0 %v1268
        %3018 = vmatpush.msra.mxu0 %v1266
        %3019 = vmatpush.msra.mxu0 %v1264
        %3020 = vmatpush.msra.mxu0 %v1262
        %3021 = vmatpush.msra.mxu0 %v1260
        %3022 = vmatpush.msra.mxu0 %v1258
        %3023 = vmatpush.msra.mxu0 %v1256
        %3024 = vmatpush.msra.mxu0 %v1254
        %3025 = vmatmul.f32.gmra.mxu0 %v3007
        %v3026 = vpop.f32.mrf.mxu0
        %v3027 = vadd.f32 0.0, %v3026
        %3028 = vdwg.mxu0
        %v3030 = vsel %vm346, %v3027, 0
        %3032 = vmatpush.msra.mxu0 0.0
        %3033 = vmatpush.msra.mxu0 0.0
        %3034 = vmatpush.msra.mxu0 0.0
        %3035 = vmatpush.msra.mxu0 0.0
        %3036 = vmatpush.msra.mxu0 0.0
        %3037 = vmatpush.msra.mxu0 0.0
        %3038 = vmatpush.msra.mxu0 0.0
        %3039 = vmatpush.msra.mxu0 0.0
        %3040 = vmatpush.msra.mxu0 0.0
        %3041 = vmatpush.msra.mxu0 0.0
        %3042 = vmatpush.msra.mxu0 0.0
        %3043 = vmatpush.msra.mxu0 0.0
        %3044 = vmatpush.msra.mxu0 0.0
        %3045 = vmatpush.msra.mxu0 0.0
        %3046 = vmatpush.msra.mxu0 0.0
        %3047 = vmatpush.msra.mxu0 %v1301
        %3048 = vmatmul.f32.gmra.mxu0 %v3030
        %v3049 = vpop.f32.mrf.mxu0
        %v3050 = vadd.f32 0.0, %v3049
        %3051 = vdwg.mxu0
        %v3052 = vadd.f32 %v2970, %v3050
        %v3053 = vadd.f32 %v3052, %v1327
        %v3054 = vadd.f32 %v2704, %v3053
        %v3055 = vsel %vm253, %v3054, 0.0
        %3056 = vadd.xlane.f32.xlu0 %v3055
        %v3057 = vpop.xlane.xlu0 %3056
        %v3058 = vmul.f32 %v3057, %v725
        %v3059 = vsub.f32 %v3054, %v3058
        %v3060 = vmul.f32 %v3059, %v3059
        %v3061 = vsel %vm253, %v3060, 0.0
        %3062 = vadd.xlane.f32.xlu0 %v3061
        %v3063 = vpop.xlane.xlu0 %3062
        %v3064 = vmul.f32 %v3063, %v725
        %v3065 = vadd.f32 %v3064, 1e-05
        %v3066 = vrsqrt.pop %v3065
        %v3067 = vmul.f32 %v3066, %v3065
        %v3068 = vmul.f32 %v3067, %v3066
        %v3069 = vmul.f32 0.5, %v3068
        %v3070 = vsub.f32 1.5, %v3069
        %v3071 = vmul.f32 %v3066, %v3070
        %vm3072 = vweird.f32 %v3065
        %vm3073 = vweird.f32 %v3066
        %vm3074 = vmor %vm3072, %vm3073
        %v3075 = vsel %vm3074, %v3066, %v3071
        %v3076 = vmul.f32 %v3059, %v3075
        %v3077 = vmul.f32 %v3076, %v1352
        %v3078 = vadd.f32 %v3077, %v1354
        %v3080 = vsel %vm253, %v3078, 0
        %3082 = vmatpush.msra.mxu0 0.0
        %3083 = vmatpush.msra.mxu0 0.0
        %3084 = vmatpush.msra.mxu0 0.0
        %3085 = vmatpush.msra.mxu0 0.0
        %3086 = vmatpush.msra.mxu0 0.0
        %3087 = vmatpush.msra.mxu0 0.0
        %3088 = vmatpush.msra.mxu0 0.0
        %3089 = vmatpush.msra.mxu0 0.0
        %3090 = vmatpush.msra.mxu0 0.0
        %3091 = vmatpush.msra.mxu0 0.0
        %3092 = vmatpush.msra.mxu0 0.0
        %3093 = vmatpush.msra.mxu0 0.0
        %3094 = vmatpush.msra.mxu0 %v233
        %3095 = vmatpush.msra.mxu0 %v230
        %3096 = vmatpush.msra.mxu0 %v227
        %3097 = vmatpush.msra.mxu0 %v224
        %3098 = vmatmul.f32.gmra.mxu0 %v3080
        %v3099 = vpop.f32.mrf.mxu0
        %v3100 = vadd.f32 %v1356, %v3099
        %3101 = vdwg.mxu0
        %v3102 = vmax.f32 %v3100, 0.0
        %v3104 = vsel %vm820, %v3102, 0
        %3106 = vmatpush.xpose.msra.mxu0 0.0
        %3107 = vmatpush.xpose.msra.mxu0 0.0
        %3108 = vmatpush.xpose.msra.mxu0 0.0
        %3109 = vmatpush.xpose.msra.mxu0 0.0
        %3110 = vmatpush.xpose.msra.mxu0 0.0
        %3111 = vmatpush.xpose.msra.mxu0 0.0
        %3112 = vmatpush.xpose.msra.mxu0 0.0
        %3113 = vmatpush.xpose.msra.mxu0 0.0
        %3114 = vmatpush.xpose.msra.mxu0 0.0
        %3115 = vmatpush.xpose.msra.mxu0 0.0
        %3116 = vmatpush.xpose.msra.mxu0 0.0
        %3117 = vmatpush.xpose.msra.mxu0 0.0
        %3118 = vmatpush.xpose.msra.mxu0 %v1403
        %3119 = vmatpush.xpose.msra.mxu0 %v1401
        %3120 = vmatpush.xpose.msra.mxu0 %v1399
        %3121 = vmatpush.xpose.msra.mxu0 %v1397
        %3122 = vmatmul.f32.gmra.mxu0 %v3104
        %v3123 = vpop.f32.mrf.mxu0
        %v3124 = vadd.f32 %v1381, %v3123
        %3125 = vdwg.mxu0
        %v3126 = vadd.f32 %v3078, %v3124
        %v3127 = vsel %vm253, %v3126, 0.0
        %3128 = vadd.xlane.f32.xlu0 %v3127
        %v3129 = vpop.xlane.xlu0 %3128
        %v3130 = vmul.f32 %v3129, %v725
        %v3131 = vsub.f32 %v3126, %v3130
        %v3132 = vmul.f32 %v3131, %v3131
        %v3133 = vsel %vm253, %v3132, 0.0
        %3134 = vadd.xlane.f32.xlu0 %v3133
        %v3135 = vpop.xlane.xlu0 %3134
        %v3136 = vmul.f32 %v3135, %v725
        %v3137 = vadd.f32 %v3136, 1e-05
        %v3138 = vrsqrt.pop %v3137
        %v3139 = vmul.f32 %v3138, %v3137
        %v3140 = vmul.f32 %v3139, %v3138
        %v3141 = vmul.f32 0.5, %v3140
        %v3142 = vsub.f32 1.5, %v3141
        %v3143 = vmul.f32 %v3138, %v3142
        %vm3144 = vweird.f32 %v3137
        %vm3145 = vweird.f32 %v3138
        %vm3146 = vmor %vm3144, %vm3145
        %v3147 = vsel %vm3146, %v3138, %v3143
        %v3148 = vmul.f32 %v3131, %v3147
        %v3149 = vmul.f32 %v3148, %v1448
        %v3150 = vadd.f32 %v3149, %v1450
        %s3151 = scalar_lea.vmem %s203, 16 [#allocation2]
        %3152 = vst.msk [vmem:[%s3151] sm:$0xff] %vm253, %v3150
        %s3153 = sand.u32 %s120, 1
        %s3154 = scalar_lea.sflag [#allocation3], %s3153
        %s3155 = sand.u32 %s120, 1
        %s3156 = smul.addr %s3155, 24
        %s3157 = scalar_lea.vmem [#allocation2], %s3156
        // Predicated region
        $region37: #{tpu_custom_call.1} parent=35 // pred_check
          %p3158 = pneg %p130
        $region38: #{tpu_custom_call.1} parent=35 // pred_check_branch
          %3160 = sbr.rel (%p3158) target = $region40
        $region39: #{tpu_custom_call.1} parent=35 // pred_region
          %3162 = vsyncadd %s3154, 0
          %s3163 = smul.addr %s18, 3
          %s3164 = smul.addr %s3163, 8
          %s3165 = scalar_lea.hbm %s4, %s3164
          %s3166 = sshll.u32 %s3157, 4
          %s3167 = int_to_ptr.vmem [resolvable:$true] %s3166
          %s3168 = sshll.u32 %s3165, 4
          %s3169 = int_to_ptr.hbm [resolvable:$true] %s3168
          %3174 = dma.vmem_to_hbm [thread:$0]  %s3167, 384, %s3169, %s3154, 128, 128, 8
        $region40: #{tpu_custom_call.1} parent=35 // pred_fallthru
          _
      $region36: #{tpu_custom_call.1} parent=5 // pred_fallthru
        _
      %p3175 = scmp.le.s32.totalorder 2, %s13
      // Predicated region
      $region41: #{tpu_custom_call.1} parent=5 // pred_check
        %p3176 = pneg %p3175
      $region42: #{tpu_custom_call.1} parent=5 // pred_check_branch
        %3178 = sbr.rel (%p3176) target = $region44
      $region43: #{tpu_custom_call.1} parent=5 // pred_region
        %s3179 = ssub.s32 %s13, 2
        // Predicated region
        $region45: #{tpu_custom_call.1} parent=43 // pred_check
          %p3180 = pneg %p136
        $region46: #{tpu_custom_call.1} parent=43 // pred_check_branch
          %3182 = sbr.rel (%p3180) target = $region48
        $region47: #{tpu_custom_call.1} parent=43 // pred_region
          %s3183 = sand.u32 %s121, 1
          %s3184 = scalar_lea.sflag [#allocation3], %s3183
          %s3185 = sand.u32 %s121, 1
          %s3186 = smul.addr %s3185, 24
          %s3187 = scalar_lea.vmem [#allocation2], %s3186
          %3189 = dma.done %s3184, 384
        $region48: #{tpu_custom_call.1} parent=43 // pred_fallthru
          _
      $region44: #{tpu_custom_call.1} parent=5 // pred_fallthru
        _
    $region6: #{tpu_custom_call.1} parent=1 // loop_footer
      %s17 = sadd.s32 1, %s13
    $region7: #{tpu_custom_call.1} parent=1 // loop_footer_branch
      %12 = sbr.rel target = $region3
    $region8: #{tpu_custom_call.1} parent=1 // loop_exit
      _
    %3190 = vsyncpa [#allocation3], 1
    %s3191 = scalar_lea.sflag [#allocation3], 1
    %3192 = vsyncpa %s3191, 1

</llo_original>
